<compile_context>
chip_gen: v7x
topology: tpu7x:2x2x1
jax: 0.10.0
libtpu: 0.0.40
codegen_flags: <defaults>
</compile_context>

<pallas_src>
import functools
import math

import jax
import jax.numpy as jnp
from jax.experimental import pallas as pl
from jax.experimental.pallas import tpu as pltpu

EOS_TOKEN_ID = 102
LN_EPS = 1e-12          # BertConfig.layer_norm_eps default
NUM_HEADS = 4


# ----------------------------------------------------------------------------
# In-kernel helpers
# ----------------------------------------------------------------------------
def _ln(x, g, b, eps):
    mu = jnp.mean(x, axis=-1, keepdims=True)
    var = jnp.mean(jnp.square(x - mu), axis=-1, keepdims=True)
    return (x - mu) * jax.lax.rsqrt(var + eps) * g + b


def _gelu_erf(x):
    # Exact (erf-form) GELU, matching HuggingFace/PyTorch BERT.
    return 0.5 * x * (1.0 + jax.lax.erf(x * (1.0 / math.sqrt(2.0))))


# ----------------------------------------------------------------------------
# Whole-network fused kernel: grid = (num_layers,), hidden state resident in
# VMEM scratch, per-layer weights streamed in via layer-indexed BlockSpecs.
# ----------------------------------------------------------------------------
def _student_kernel(eos_ref,                                     # scalar prefetch (SMEM)
                    emb_ref, mask_ref, emb_g_ref, emb_b_ref,
                    qkv_w_ref, qkv_b_ref, wo_ref, bo_ref,
                    ln1_g_ref, ln1_b_ref,
                    wi_ref, bi_ref, wo2_ref, bo2_ref,
                    ln2_g_ref, ln2_b_ref,
                    fin_g_ref, fin_b_ref, proj_w_ref,
                    hs0_ref, hs_ref, text_ref,
                    h_scratch,
                    *, batch, seq, num_heads, head_dim, num_layers, eps):
    l = pl.program_id(0)
    BS = batch * seq
    scale = 1.0 / math.sqrt(head_dim)

    # --- grid step 0: embedding LayerNorm -> hidden_states[0], seed scratch ---
    @pl.when(l == 0)
    def _():
        h0 = _ln(emb_ref[...].astype(jnp.float32),
                 emb_g_ref[...], emb_b_ref[...], eps)
        h_scratch[...] = h0
        hs0_ref[...] = h0

    x = h_scratch[...]                                           # (B*S, H) f32

    # --- fused QKV projection (head-grouped weight layout [q_h|k_h|v_h]) ---
    qkv = (jnp.dot(x, qkv_w_ref[0], preferred_element_type=jnp.float32)
           + qkv_b_ref[0])                                       # (B*S, 3H)

    # --- attention: per-(batch, head), fully unrolled (tiny static loops) ---
    ctx_batches = []
    for b in range(batch):
        qkv_blk = qkv[b * seq:(b + 1) * seq, :]                  # (S, 3H)
        bias_b = mask_ref[b].astype(jnp.float32)                 # (1, S)
        ctx_heads = []
        for hh in range(num_heads):
            g = qkv_blk[:, hh * 3 * head_dim:(hh + 1) * 3 * head_dim]
            q = g[:, :head_dim]
            k = g[:, head_dim:2 * head_dim]
            v = g[:, 2 * head_dim:]
            s = jnp.dot(q, k.T, preferred_element_type=jnp.float32) * scale + bias_b
            s = s - jnp.max(s, axis=-1, keepdims=True)
            p = jnp.exp(s)
            p = p / jnp.sum(p, axis=-1, keepdims=True)           # exact division
            ctx_heads.append(jnp.dot(p, v, preferred_element_type=jnp.float32))
        ctx_batches.append(jnp.concatenate(ctx_heads, axis=1))   # (S, H)
    ctx = jnp.concatenate(ctx_batches, axis=0)                   # (B*S, H)

    # --- attention output projection + residual + LN1 ---
    attn = jnp.dot(ctx, wo_ref[0], preferred_element_type=jnp.float32) + bo_ref[0]
    h1 = _ln(attn + x, ln1_g_ref[0], ln1_b_ref[0], eps)

    # --- FFN (erf GELU) + residual + LN2 ---
    inter = jnp.dot(h1, wi_ref[0], preferred_element_type=jnp.float32) + bi_ref[0]
    inter = _gelu_erf(inter)
    ffn = jnp.dot(inter, wo2_ref[0], preferred_element_type=jnp.float32) + bo2_ref[0]
    h2 = _ln(ffn + h1, ln2_g_ref[0], ln2_b_ref[0], eps)

    h_scratch[...] = h2
    hs_ref[0] = h2                                               # hidden_states[l+1]

    # --- last layer: EOS pooling + final LayerNorm + text projection ---
    @pl.when(l == num_layers - 1)
    def _():
        col = jax.lax.broadcasted_iota(jnp.int32, (1, BS), 1)
        sel_rows = []
        for b in range(batch):
            tgt = b * seq + eos_ref[b]                           # scalar from SMEM
            sel_rows.append((col == tgt).astype(jnp.float32))
        sel = jnp.concatenate(sel_rows, axis=0)                  # (B, B*S) one-hot
        pooled = jnp.dot(sel, h2, preferred_element_type=jnp.float32)    # (B, H)
        y = _ln(pooled, fin_g_ref[...], fin_b_ref[...], eps)
        text_ref[...] = jnp.dot(y, proj_w_ref[...],
                                preferred_element_type=jnp.float32)       # (B, 512)


# ----------------------------------------------------------------------------
# Model wrapper (data-dependent embedding gathers stay in XLA glue).
# ----------------------------------------------------------------------------
def student_forward(params, input_ids, attention_mask):
    B, S = input_ids.shape
    H = params["word_emb"].shape[1]
    L = params["qkv_w"].shape[0]
    I = params["wi"].shape[2]
    P = params["proj_w"].shape[1]
    head_dim = H // NUM_HEADS

    # Embedding sum (gathers); LayerNorm happens inside the fused kernel.
    emb = (params["word_emb"][input_ids]
           + params["pos_emb"][jnp.arange(S)][None, :, :]
           + params["type_emb"][0][None, None, :]).astype(jnp.float32)
    emb2d = emb.reshape(B * S, H)

    # Additive attention-mask bias, kept at [B, 1, S] (no per-head duplication).
    mask_bias = ((1.0 - attention_mask.astype(jnp.float32)) * -1e9)[:, None, :]

    # First EOS (token id 102) position per sequence (argmax -> 0 if absent,
    # matching the PyTorch reference's behavior).
    eos_pos = jnp.argmax((input_ids == EOS_TOKEN_ID).astype(jnp.int32),
                         axis=-1).astype(jnp.int32)

    kernel = functools.partial(_student_kernel, batch=B, seq=S,
                               num_heads=NUM_HEADS, head_dim=head_dim,
                               num_layers=L, eps=LN_EPS)

    cm2 = lambda l, e: (0, 0)          # constant (grid-invariant) 2-D block
    cm3 = lambda l, e: (0, 0, 0)       # constant 3-D block
    lm3 = lambda l, e: (l, 0, 0)       # layer-indexed 3-D block

    grid_spec = pltpu.PrefetchScalarGridSpec(
        num_scalar_prefetch=1,
        grid=(L,),
        in_specs=[
            pl.BlockSpec((B * S, H), cm2),          # pre-LN embeddings
            pl.BlockSpec((B, 1, S), cm3),           # mask bias
            pl.BlockSpec((1, H), cm2),              # emb LN gamma
            pl.BlockSpec((1, H), cm2),              # emb LN beta
            pl.BlockSpec((1, H, 3 * H), lm3),       # fused (head-grouped) QKV W
            pl.BlockSpec((1, 1, 3 * H), lm3),       # fused QKV bias
            pl.BlockSpec((1, H, H), lm3),           # attn out proj W
            pl.BlockSpec((1, 1, H), lm3),           # attn out proj b
            pl.BlockSpec((1, 1, H), lm3),           # LN1 gamma
            pl.BlockSpec((1, 1, H), lm3),           # LN1 beta
            pl.BlockSpec((1, H, I), lm3),           # FFN in W
            pl.BlockSpec((1, 1, I), lm3),           # FFN in b
            pl.BlockSpec((1, I, H), lm3),           # FFN out W
            pl.BlockSpec((1, 1, H), lm3),           # FFN out b
            pl.BlockSpec((1, 1, H), lm3),           # LN2 gamma
            pl.BlockSpec((1, 1, H), lm3),           # LN2 beta
            pl.BlockSpec((1, H), cm2),              # final LN gamma
            pl.BlockSpec((1, H), cm2),              # final LN beta
            pl.BlockSpec((H, P), cm2),              # text projection (lane-dense 512)
        ],
        out_specs=[
            pl.BlockSpec((B * S, H), cm2),          # hidden_states[0]
            pl.BlockSpec((1, B * S, H), lm3),       # hidden_states[1..L]
            pl.BlockSpec((B, P), cm2),              # text_embeds
        ],
        scratch_shapes=[pltpu.VMEM((B * S, H), jnp.float32)],
    )

    hs0, hs_layers, text_embeds = pl.pallas_call(
        kernel,
        grid_spec=grid_spec,
        out_shape=(
            jax.ShapeDtypeStruct((B * S, H), jnp.float32),
            jax.ShapeDtypeStruct((L, B * S, H), jnp.float32),
            jax.ShapeDtypeStruct((B, P), jnp.float32),
        ),
        compiler_params=pltpu.CompilerParams(
            dimension_semantics=("arbitrary",)),     # layers are sequential
    )(eos_pos, emb2d, mask_bias,
      params["emb_ln_g"], params["emb_ln_b"],
      params["qkv_w"], params["qkv_b"], params["wo"], params["bo"],
      params["ln1_g"], params["ln1_b"],
      params["wi"], params["bi"], params["wo2"], params["bo2"],
      params["ln2_g"], params["ln2_b"],
      params["final_ln_g"], params["final_ln_b"], params["proj_w"])

    hidden_states = (hs0.reshape(B, S, H),) + tuple(
        hs_layers[i].reshape(B, S, H) for i in range(L))
    return text_embeds, hidden_states


# ----------------------------------------------------------------------------
# Deterministic parameter init (per-layer weights stacked; QKV columns
# pre-permuted so each head's [q_h | k_h | v_h] columns are contiguous).
# ----------------------------------------------------------------------------
def init_params(key, vocab, max_pos, hidden, intermediate, num_layers, proj_dim,
                num_heads=NUM_HEADS):
    head_dim = hidden // num_heads
    keys = iter(jax.random.split(key, 4 + 6 * num_layers))

    def nrm(shape, scale=0.02):
        return scale * jax.random.normal(next(keys), shape, dtype=jnp.float32)

    qkv_w, wo, wi, wo2 = [], [], [], []
    for _ in range(num_layers):
        wq, wk, wv = (nrm((hidden, hidden)), nrm((hidden, hidden)),
                      nrm((hidden, hidden)))
        cols = []
        for h in range(num_heads):
            sl = slice(h * head_dim, (h + 1) * head_dim)
            cols += [wq[:, sl], wk[:, sl], wv[:, sl]]
        qkv_w.append(jnp.concatenate(cols, axis=1))              # (H, 3H) head-grouped
        wo.append(nrm((hidden, hidden)))
        wi.append(nrm((hidden, intermediate)))
        wo2.append(nrm((intermediate, hidden)))

    L = num_layers
    # TODO(synk): token_type_ids are assumed to be all zeros (row 0 of type_emb),
    # matching the reference call pattern (no token_type_ids passed).
    return {
        "word_emb": nrm((vocab, hidden)),
        "pos_emb": nrm((max_pos, hidden)),
        "type_emb": nrm((2, hidden)),
        "emb_ln_g": jnp.ones((1, hidden), jnp.float32),
        "emb_ln_b": jnp.zeros((1, hidden), jnp.float32),
        "final_ln_g": jnp.ones((1, hidden), jnp.float32),
        "final_ln_b": jnp.zeros((1, hidden), jnp.float32),
        "proj_w": nrm((hidden, proj_dim)),
        "qkv_w": jnp.stack(qkv_w),                               # (L, H, 3H)
        "qkv_b": jnp.zeros((L, 1, 3 * hidden), jnp.float32),
        "wo": jnp.stack(wo),                                     # (L, H, H)
        "bo": jnp.zeros((L, 1, hidden), jnp.float32),
        "ln1_g": jnp.ones((L, 1, hidden), jnp.float32),
        "ln1_b": jnp.zeros((L, 1, hidden), jnp.float32),
        "wi": jnp.stack(wi),                                     # (L, H, I)
        "bi": jnp.zeros((L, 1, intermediate), jnp.float32),
        "wo2": jnp.stack(wo2),                                   # (L, I, H)
        "bo2": jnp.zeros((L, 1, hidden), jnp.float32),
        "ln2_g": jnp.ones((L, 1, hidden), jnp.float32),
        "ln2_b": jnp.zeros((L, 1, hidden), jnp.float32),
    }


# ----------------------------------------------------------------------------
if __name__ == "__main__":
    B, S = 2, 8
    HIDDEN, INTER, LAYERS = 32, 64, 2
    VOCAB, MAX_POS, PROJ = 130, 16, 512

    key = jax.random.PRNGKey(0)
    pkey, ikey = jax.random.split(key)
    params = init_params(pkey, VOCAB, MAX_POS, HIDDEN, INTER, LAYERS, PROJ)

    input_ids = jax.random.randint(ikey, (B, S), 0, VOCAB, dtype=jnp.int32)
    # Ensure no accidental EOS, then place one EOS per sequence.
    input_ids = jnp.where(input_ids == EOS_TOKEN_ID, 1, input_ids)
    input_ids = input_ids.at[0, 5].set(EOS_TOKEN_ID)
    input_ids = input_ids.at[1, 3].set(EOS_TOKEN_ID)

    attention_mask = jnp.ones((B, S), dtype=jnp.int32)
    attention_mask = attention_mask.at[1, 6:].set(0)   # padded tail on row 1

    fwd = jax.jit(student_forward)
    text_embeds, hidden_states = fwd(params, input_ids, attention_mask)
    jax.block_until_ready(text_embeds)
    jax.block_until_ready(hidden_states)

    assert text_embeds.shape == (B, PROJ)
    assert len(hidden_states) == LAYERS + 1
    assert all(hs.shape == (B, S, HIDDEN) for hs in hidden_states)
    assert bool(jnp.all(jnp.isfinite(text_embeds)))
    print("KERNEL_OK")
</pallas_src>

<mosaic_0001>
module attributes {stable_mosaic.version = 11 : i64} {
  func.func @_student_kernel(%arg0: i32, %arg1: memref<2xi32, #tpu.memory_space<smem>>, %arg2: memref<16x32xf32, #tpu.memory_space<vmem>>, %arg3: memref<2x1x8xf32, #tpu.memory_space<vmem>>, %arg4: memref<1x32xf32, #tpu.memory_space<vmem>>, %arg5: memref<1x32xf32, #tpu.memory_space<vmem>>, %arg6: memref<1x32x96xf32, #tpu.memory_space<vmem>>, %arg7: memref<1x1x96xf32, #tpu.memory_space<vmem>>, %arg8: memref<1x32x32xf32, #tpu.memory_space<vmem>>, %arg9: memref<1x1x32xf32, #tpu.memory_space<vmem>>, %arg10: memref<1x1x32xf32, #tpu.memory_space<vmem>>, %arg11: memref<1x1x32xf32, #tpu.memory_space<vmem>>, %arg12: memref<1x32x64xf32, #tpu.memory_space<vmem>>, %arg13: memref<1x1x64xf32, #tpu.memory_space<vmem>>, %arg14: memref<1x64x32xf32, #tpu.memory_space<vmem>>, %arg15: memref<1x1x32xf32, #tpu.memory_space<vmem>>, %arg16: memref<1x1x32xf32, #tpu.memory_space<vmem>>, %arg17: memref<1x1x32xf32, #tpu.memory_space<vmem>>, %arg18: memref<1x32xf32, #tpu.memory_space<vmem>>, %arg19: memref<1x32xf32, #tpu.memory_space<vmem>>, %arg20: memref<32x512xf32, #tpu.memory_space<vmem>>, %arg21: memref<16x32xf32, #tpu.memory_space<vmem>>, %arg22: memref<1x16x32xf32, #tpu.memory_space<vmem>>, %arg23: memref<2x512xf32, #tpu.memory_space<vmem>>, %arg24: memref<16x32xf32, #tpu.memory_space<vmem>>) attributes {dimension_semantics = [#tpu.dimension_semantics<arbitrary>], iteration_bounds = array<i64: 2>, scalar_prefetch = 1 : i64, scratch_operands = 1 : i64, tpu.core_type = #tpu.core_type<tc>, window_params = [{pipeline_mode = #tpu.pipeline_mode<synchronous>, transform_indices = @transform_0, window_bounds = array<i64: 16, 32>}, {pipeline_mode = #tpu.pipeline_mode<synchronous>, transform_indices = @transform_1, window_bounds = array<i64: 2, 1, 8>}, {pipeline_mode = #tpu.pipeline_mode<synchronous>, transform_indices = @transform_2, window_bounds = array<i64: 1, 32>}, {pipeline_mode = #tpu.pipeline_mode<synchronous>, transform_indices = @transform_3, window_bounds = array<i64: 1, 32>}, {transform_indices = @transform_4, window_bounds = array<i64: 1, 32, 96>}, {transform_indices = @transform_5, window_bounds = array<i64: 1, 1, 96>}, {transform_indices = @transform_6, window_bounds = array<i64: 1, 32, 32>}, {transform_indices = @transform_7, window_bounds = array<i64: 1, 1, 32>}, {transform_indices = @transform_8, window_bounds = array<i64: 1, 1, 32>}, {transform_indices = @transform_9, window_bounds = array<i64: 1, 1, 32>}, {transform_indices = @transform_10, window_bounds = array<i64: 1, 32, 64>}, {transform_indices = @transform_11, window_bounds = array<i64: 1, 1, 64>}, {transform_indices = @transform_12, window_bounds = array<i64: 1, 64, 32>}, {transform_indices = @transform_13, window_bounds = array<i64: 1, 1, 32>}, {transform_indices = @transform_14, window_bounds = array<i64: 1, 1, 32>}, {transform_indices = @transform_15, window_bounds = array<i64: 1, 1, 32>}, {pipeline_mode = #tpu.pipeline_mode<synchronous>, transform_indices = @transform_16, window_bounds = array<i64: 1, 32>}, {pipeline_mode = #tpu.pipeline_mode<synchronous>, transform_indices = @transform_17, window_bounds = array<i64: 1, 32>}, {pipeline_mode = #tpu.pipeline_mode<synchronous>, transform_indices = @transform_18, window_bounds = array<i64: 32, 512>}, {pipeline_mode = #tpu.pipeline_mode<synchronous>, transform_indices = @transform_19, window_bounds = array<i64: 16, 32>}, {transform_indices = @transform_20, window_bounds = array<i64: 1, 16, 32>}, {pipeline_mode = #tpu.pipeline_mode<synchronous>, transform_indices = @transform_21, window_bounds = array<i64: 2, 512>}]} {
    %c0_i32 = arith.constant 0 : i32
    %0 = arith.cmpi eq, %arg0, %c0_i32 : i32
    %1 = arith.extui %0 : i1 to i32
    %c0_i32_0 = arith.constant 0 : i32
    %2 = arith.cmpi ne, %1, %c0_i32_0 : i32
    scf.if %2 {
      %c0_105 = arith.constant 0 : index
      %c0_106 = arith.constant 0 : index
      %270 = vector.load %arg2[%c0_105, %c0_106] : memref<16x32xf32, #tpu.memory_space<vmem>>, vector<16x32xf32>
      %c0_107 = arith.constant 0 : index
      %c0_108 = arith.constant 0 : index
      %271 = vector.load %arg4[%c0_107, %c0_108] : memref<1x32xf32, #tpu.memory_space<vmem>>, vector<1x32xf32>
      %c0_109 = arith.constant 0 : index
      %c0_110 = arith.constant 0 : index
      %272 = vector.load %arg5[%c0_109, %c0_110] : memref<1x32xf32, #tpu.memory_space<vmem>>, vector<1x32xf32>
      %cst_111 = arith.constant dense<0.000000e+00> : vector<16xf32>
      %273 = vector.multi_reduction <add>, %270, %cst_111 [1] : vector<16x32xf32> to vector<16xf32>
      %274 = vector.shape_cast %273 : vector<16xf32> to vector<16x1xf32>
      %cst_112 = arith.constant 3.200000e+01 : f32
      %275 = vector.broadcast %cst_112 : f32 to vector<16x1xf32>
      %276 = arith.divf %274, %275 : vector<16x1xf32>
      %277 = vector.broadcast %276 : vector<16x1xf32> to vector<16x32xf32>
      %278 = arith.subf %270, %277 : vector<16x32xf32>
      %279 = arith.mulf %278, %278 : vector<16x32xf32>
      %cst_113 = arith.constant dense<0.000000e+00> : vector<16xf32>
      %280 = vector.multi_reduction <add>, %279, %cst_113 [1] : vector<16x32xf32> to vector<16xf32>
      %281 = vector.shape_cast %280 : vector<16xf32> to vector<16x1xf32>
      %cst_114 = arith.constant 3.200000e+01 : f32
      %282 = vector.broadcast %cst_114 : f32 to vector<16x1xf32>
      %283 = arith.divf %281, %282 : vector<16x1xf32>
      %284 = vector.broadcast %276 : vector<16x1xf32> to vector<16x32xf32>
      %285 = arith.subf %270, %284 : vector<16x32xf32>
      %cst_115 = arith.constant 9.99999996E-13 : f32
      %286 = vector.broadcast %cst_115 : f32 to vector<16x1xf32>
      %287 = arith.addf %283, %286 : vector<16x1xf32>
      %288 = math.rsqrt %287 : vector<16x1xf32>
      %289 = vector.broadcast %288 : vector<16x1xf32> to vector<16x32xf32>
      %290 = arith.mulf %285, %289 : vector<16x32xf32>
      %291 = vector.broadcast %271 : vector<1x32xf32> to vector<16x32xf32>
      %292 = arith.mulf %290, %291 : vector<16x32xf32>
      %293 = vector.broadcast %272 : vector<1x32xf32> to vector<16x32xf32>
      %294 = arith.addf %292, %293 : vector<16x32xf32>
      %c0_116 = arith.constant 0 : index
      %c0_117 = arith.constant 0 : index
      %295 = vector.load %arg24[%c0_116, %c0_117] : memref<16x32xf32, #tpu.memory_space<vmem>>, vector<16x32xf32>
      tpu.vector_store %arg24[%c0_116, %c0_117], %294 {strides = array<i32>} : memref<16x32xf32, #tpu.memory_space<vmem>>, vector<16x32xf32>,
      %c0_118 = arith.constant 0 : index
      %c0_119 = arith.constant 0 : index
      %296 = vector.load %arg21[%c0_118, %c0_119] : memref<16x32xf32, #tpu.memory_space<vmem>>, vector<16x32xf32>
      tpu.vector_store %arg21[%c0_118, %c0_119], %294 {strides = array<i32>} : memref<16x32xf32, #tpu.memory_space<vmem>>, vector<16x32xf32>,
    } else {
    }
    %c0 = arith.constant 0 : index
    %c0_1 = arith.constant 0 : index
    %3 = vector.load %arg24[%c0, %c0_1] : memref<16x32xf32, #tpu.memory_space<vmem>>, vector<16x32xf32>
    %c0_2 = arith.constant 0 : index
    %c0_3 = arith.constant 0 : index
    %c0_4 = arith.constant 0 : index
    %4 = vector.load %arg6[%c0_2, %c0_3, %c0_4] : memref<1x32x96xf32, #tpu.memory_space<vmem>>, vector<1x32x96xf32>
    %5 = vector.shape_cast %4 : vector<1x32x96xf32> to vector<32x96xf32>
    %cst = arith.constant dense<0.000000e+00> : vector<16x96xf32>
    %6 = tpu.matmul %3, %5, %cst {dimension_numbers = #tpu.dot_dimension_numbers<[1], [0], [0], [1], [0, 0, 1, 1], [], []>} : vector<16x32xf32>, vector<32x96xf32>, vector<16x96xf32> -> vector<16x96xf32>
    %c0_5 = arith.constant 0 : index
    %c0_6 = arith.constant 0 : index
    %c0_7 = arith.constant 0 : index
    %7 = vector.load %arg7[%c0_5, %c0_6, %c0_7] : memref<1x1x96xf32, #tpu.memory_space<vmem>>, vector<1x1x96xf32>
    %8 = vector.shape_cast %7 : vector<1x1x96xf32> to vector<1x96xf32>
    %9 = vector.broadcast %8 : vector<1x96xf32> to vector<16x96xf32>
    %10 = arith.addf %6, %9 : vector<16x96xf32>
    %11 = vector.extract_strided_slice %10 {offsets = [0, 0], sizes = [8, 96], strides = [1, 1]} : vector<16x96xf32> to vector<8x96xf32>
    %c0_8 = arith.constant 0 : index
    %c0_9 = arith.constant 0 : index
    %c0_10 = arith.constant 0 : index
    %12 = vector.load %arg3[%c0_8, %c0_9, %c0_10] : memref<2x1x8xf32, #tpu.memory_space<vmem>>, vector<1x1x8xf32>
    %13 = vector.shape_cast %12 : vector<1x1x8xf32> to vector<1x8xf32>
    %14 = vector.extract_strided_slice %11 {offsets = [0, 0], sizes = [8, 24], strides = [1, 1]} : vector<8x96xf32> to vector<8x24xf32>
    %15 = vector.extract_strided_slice %14 {offsets = [0, 0], sizes = [8, 8], strides = [1, 1]} : vector<8x24xf32> to vector<8x8xf32>
    %16 = vector.extract_strided_slice %14 {offsets = [0, 8], sizes = [8, 8], strides = [1, 1]} : vector<8x24xf32> to vector<8x8xf32>
    %17 = vector.extract_strided_slice %14 {offsets = [0, 16], sizes = [8, 8], strides = [1, 1]} : vector<8x24xf32> to vector<8x8xf32>
    %18 = tpu.transpose %16, [1, 0] : vector<8x8xf32> -> vector<8x8xf32>
    %cst_11 = arith.constant dense<0.000000e+00> : vector<8x8xf32>
    %19 = tpu.matmul %15, %18, %cst_11 {dimension_numbers = #tpu.dot_dimension_numbers<[1], [0], [0], [1], [0, 0, 1, 1], [], []>} : vector<8x8xf32>, vector<8x8xf32>, vector<8x8xf32> -> vector<8x8xf32>
    %cst_12 = arith.constant 0.353553385 : f32
    %20 = vector.broadcast %cst_12 : f32 to vector<8x8xf32>
    %21 = arith.mulf %19, %20 : vector<8x8xf32>
    %22 = vector.broadcast %13 : vector<1x8xf32> to vector<8x8xf32>
    %23 = arith.addf %21, %22 : vector<8x8xf32>
    %cst_13 = arith.constant dense<0xFF800000> : vector<8xf32>
    %24 = vector.multi_reduction <maximumf>, %23, %cst_13 [1] : vector<8x8xf32> to vector<8xf32>
    %25 = vector.shape_cast %24 : vector<8xf32> to vector<8x1xf32>
    %26 = vector.broadcast %25 : vector<8x1xf32> to vector<8x8xf32>
    %27 = arith.subf %23, %26 : vector<8x8xf32>
    %28 = math.exp %27 : vector<8x8xf32>
    %cst_14 = arith.constant dense<0.000000e+00> : vector<8xf32>
    %29 = vector.multi_reduction <add>, %28, %cst_14 [1] : vector<8x8xf32> to vector<8xf32>
    %30 = vector.shape_cast %29 : vector<8xf32> to vector<8x1xf32>
    %31 = vector.broadcast %30 : vector<8x1xf32> to vector<8x8xf32>
    %32 = arith.divf %28, %31 : vector<8x8xf32>
    %cst_15 = arith.constant dense<0.000000e+00> : vector<8x8xf32>
    %33 = tpu.matmul %32, %17, %cst_15 {dimension_numbers = #tpu.dot_dimension_numbers<[1], [0], [0], [1], [0, 0, 1, 1], [], []>} : vector<8x8xf32>, vector<8x8xf32>, vector<8x8xf32> -> vector<8x8xf32>
    %34 = vector.extract_strided_slice %11 {offsets = [0, 24], sizes = [8, 24], strides = [1, 1]} : vector<8x96xf32> to vector<8x24xf32>
    %35 = vector.extract_strided_slice %34 {offsets = [0, 0], sizes = [8, 8], strides = [1, 1]} : vector<8x24xf32> to vector<8x8xf32>
    %36 = vector.extract_strided_slice %34 {offsets = [0, 8], sizes = [8, 8], strides = [1, 1]} : vector<8x24xf32> to vector<8x8xf32>
    %37 = vector.extract_strided_slice %34 {offsets = [0, 16], sizes = [8, 8], strides = [1, 1]} : vector<8x24xf32> to vector<8x8xf32>
    %38 = tpu.transpose %36, [1, 0] : vector<8x8xf32> -> vector<8x8xf32>
    %cst_16 = arith.constant dense<0.000000e+00> : vector<8x8xf32>
    %39 = tpu.matmul %35, %38, %cst_16 {dimension_numbers = #tpu.dot_dimension_numbers<[1], [0], [0], [1], [0, 0, 1, 1], [], []>} : vector<8x8xf32>, vector<8x8xf32>, vector<8x8xf32> -> vector<8x8xf32>
    %cst_17 = arith.constant 0.353553385 : f32
    %40 = vector.broadcast %cst_17 : f32 to vector<8x8xf32>
    %41 = arith.mulf %39, %40 : vector<8x8xf32>
    %42 = vector.broadcast %13 : vector<1x8xf32> to vector<8x8xf32>
    %43 = arith.addf %41, %42 : vector<8x8xf32>
    %cst_18 = arith.constant dense<0xFF800000> : vector<8xf32>
    %44 = vector.multi_reduction <maximumf>, %43, %cst_18 [1] : vector<8x8xf32> to vector<8xf32>
    %45 = vector.shape_cast %44 : vector<8xf32> to vector<8x1xf32>
    %46 = vector.broadcast %45 : vector<8x1xf32> to vector<8x8xf32>
    %47 = arith.subf %43, %46 : vector<8x8xf32>
    %48 = math.exp %47 : vector<8x8xf32>
    %cst_19 = arith.constant dense<0.000000e+00> : vector<8xf32>
    %49 = vector.multi_reduction <add>, %48, %cst_19 [1] : vector<8x8xf32> to vector<8xf32>
    %50 = vector.shape_cast %49 : vector<8xf32> to vector<8x1xf32>
    %51 = vector.broadcast %50 : vector<8x1xf32> to vector<8x8xf32>
    %52 = arith.divf %48, %51 : vector<8x8xf32>
    %cst_20 = arith.constant dense<0.000000e+00> : vector<8x8xf32>
    %53 = tpu.matmul %52, %37, %cst_20 {dimension_numbers = #tpu.dot_dimension_numbers<[1], [0], [0], [1], [0, 0, 1, 1], [], []>} : vector<8x8xf32>, vector<8x8xf32>, vector<8x8xf32> -> vector<8x8xf32>
    %54 = vector.extract_strided_slice %11 {offsets = [0, 48], sizes = [8, 24], strides = [1, 1]} : vector<8x96xf32> to vector<8x24xf32>
    %55 = vector.extract_strided_slice %54 {offsets = [0, 0], sizes = [8, 8], strides = [1, 1]} : vector<8x24xf32> to vector<8x8xf32>
    %56 = vector.extract_strided_slice %54 {offsets = [0, 8], sizes = [8, 8], strides = [1, 1]} : vector<8x24xf32> to vector<8x8xf32>
    %57 = vector.extract_strided_slice %54 {offsets = [0, 16], sizes = [8, 8], strides = [1, 1]} : vector<8x24xf32> to vector<8x8xf32>
    %58 = tpu.transpose %56, [1, 0] : vector<8x8xf32> -> vector<8x8xf32>
    %cst_21 = arith.constant dense<0.000000e+00> : vector<8x8xf32>
    %59 = tpu.matmul %55, %58, %cst_21 {dimension_numbers = #tpu.dot_dimension_numbers<[1], [0], [0], [1], [0, 0, 1, 1], [], []>} : vector<8x8xf32>, vector<8x8xf32>, vector<8x8xf32> -> vector<8x8xf32>
    %cst_22 = arith.constant 0.353553385 : f32
    %60 = vector.broadcast %cst_22 : f32 to vector<8x8xf32>
    %61 = arith.mulf %59, %60 : vector<8x8xf32>
    %62 = vector.broadcast %13 : vector<1x8xf32> to vector<8x8xf32>
    %63 = arith.addf %61, %62 : vector<8x8xf32>
    %cst_23 = arith.constant dense<0xFF800000> : vector<8xf32>
    %64 = vector.multi_reduction <maximumf>, %63, %cst_23 [1] : vector<8x8xf32> to vector<8xf32>
    %65 = vector.shape_cast %64 : vector<8xf32> to vector<8x1xf32>
    %66 = vector.broadcast %65 : vector<8x1xf32> to vector<8x8xf32>
    %67 = arith.subf %63, %66 : vector<8x8xf32>
    %68 = math.exp %67 : vector<8x8xf32>
    %cst_24 = arith.constant dense<0.000000e+00> : vector<8xf32>
    %69 = vector.multi_reduction <add>, %68, %cst_24 [1] : vector<8x8xf32> to vector<8xf32>
    %70 = vector.shape_cast %69 : vector<8xf32> to vector<8x1xf32>
    %71 = vector.broadcast %70 : vector<8x1xf32> to vector<8x8xf32>
    %72 = arith.divf %68, %71 : vector<8x8xf32>
    %cst_25 = arith.constant dense<0.000000e+00> : vector<8x8xf32>
    %73 = tpu.matmul %72, %57, %cst_25 {dimension_numbers = #tpu.dot_dimension_numbers<[1], [0], [0], [1], [0, 0, 1, 1], [], []>} : vector<8x8xf32>, vector<8x8xf32>, vector<8x8xf32> -> vector<8x8xf32>
    %74 = vector.extract_strided_slice %11 {offsets = [0, 72], sizes = [8, 24], strides = [1, 1]} : vector<8x96xf32> to vector<8x24xf32>
    %75 = vector.extract_strided_slice %74 {offsets = [0, 0], sizes = [8, 8], strides = [1, 1]} : vector<8x24xf32> to vector<8x8xf32>
    %76 = vector.extract_strided_slice %74 {offsets = [0, 8], sizes = [8, 8], strides = [1, 1]} : vector<8x24xf32> to vector<8x8xf32>
    %77 = vector.extract_strided_slice %74 {offsets = [0, 16], sizes = [8, 8], strides = [1, 1]} : vector<8x24xf32> to vector<8x8xf32>
    %78 = tpu.transpose %76, [1, 0] : vector<8x8xf32> -> vector<8x8xf32>
    %cst_26 = arith.constant dense<0.000000e+00> : vector<8x8xf32>
    %79 = tpu.matmul %75, %78, %cst_26 {dimension_numbers = #tpu.dot_dimension_numbers<[1], [0], [0], [1], [0, 0, 1, 1], [], []>} : vector<8x8xf32>, vector<8x8xf32>, vector<8x8xf32> -> vector<8x8xf32>
    %cst_27 = arith.constant 0.353553385 : f32
    %80 = vector.broadcast %cst_27 : f32 to vector<8x8xf32>
    %81 = arith.mulf %79, %80 : vector<8x8xf32>
    %82 = vector.broadcast %13 : vector<1x8xf32> to vector<8x8xf32>
    %83 = arith.addf %81, %82 : vector<8x8xf32>
    %cst_28 = arith.constant dense<0xFF800000> : vector<8xf32>
    %84 = vector.multi_reduction <maximumf>, %83, %cst_28 [1] : vector<8x8xf32> to vector<8xf32>
    %85 = vector.shape_cast %84 : vector<8xf32> to vector<8x1xf32>
    %86 = vector.broadcast %85 : vector<8x1xf32> to vector<8x8xf32>
    %87 = arith.subf %83, %86 : vector<8x8xf32>
    %88 = math.exp %87 : vector<8x8xf32>
    %cst_29 = arith.constant dense<0.000000e+00> : vector<8xf32>
    %89 = vector.multi_reduction <add>, %88, %cst_29 [1] : vector<8x8xf32> to vector<8xf32>
    %90 = vector.shape_cast %89 : vector<8xf32> to vector<8x1xf32>
    %91 = vector.broadcast %90 : vector<8x1xf32> to vector<8x8xf32>
    %92 = arith.divf %88, %91 : vector<8x8xf32>
    %cst_30 = arith.constant dense<0.000000e+00> : vector<8x8xf32>
    %93 = tpu.matmul %92, %77, %cst_30 {dimension_numbers = #tpu.dot_dimension_numbers<[1], [0], [0], [1], [0, 0, 1, 1], [], []>} : vector<8x8xf32>, vector<8x8xf32>, vector<8x8xf32> -> vector<8x8xf32>
    %94 = tpu.concatenate %33, %53, %73, %93 in 1 : vector<8x8xf32>, vector<8x8xf32>, vector<8x8xf32>, vector<8x8xf32> -> vector<8x32xf32>
    %95 = vector.extract_strided_slice %10 {offsets = [8, 0], sizes = [8, 96], strides = [1, 1]} : vector<16x96xf32> to vector<8x96xf32>
    %c1 = arith.constant 1 : index
    %c0_31 = arith.constant 0 : index
    %c0_32 = arith.constant 0 : index
    %96 = vector.load %arg3[%c1, %c0_31, %c0_32] : memref<2x1x8xf32, #tpu.memory_space<vmem>>, vector<1x1x8xf32>
    %97 = vector.shape_cast %96 : vector<1x1x8xf32> to vector<1x8xf32>
    %98 = vector.extract_strided_slice %95 {offsets = [0, 0], sizes = [8, 24], strides = [1, 1]} : vector<8x96xf32> to vector<8x24xf32>
    %99 = vector.extract_strided_slice %98 {offsets = [0, 0], sizes = [8, 8], strides = [1, 1]} : vector<8x24xf32> to vector<8x8xf32>
    %100 = vector.extract_strided_slice %98 {offsets = [0, 8], sizes = [8, 8], strides = [1, 1]} : vector<8x24xf32> to vector<8x8xf32>
    %101 = vector.extract_strided_slice %98 {offsets = [0, 16], sizes = [8, 8], strides = [1, 1]} : vector<8x24xf32> to vector<8x8xf32>
    %102 = tpu.transpose %100, [1, 0] : vector<8x8xf32> -> vector<8x8xf32>
    %cst_33 = arith.constant dense<0.000000e+00> : vector<8x8xf32>
    %103 = tpu.matmul %99, %102, %cst_33 {dimension_numbers = #tpu.dot_dimension_numbers<[1], [0], [0], [1], [0, 0, 1, 1], [], []>} : vector<8x8xf32>, vector<8x8xf32>, vector<8x8xf32> -> vector<8x8xf32>
    %cst_34 = arith.constant 0.353553385 : f32
    %104 = vector.broadcast %cst_34 : f32 to vector<8x8xf32>
    %105 = arith.mulf %103, %104 : vector<8x8xf32>
    %106 = vector.broadcast %97 : vector<1x8xf32> to vector<8x8xf32>
    %107 = arith.addf %105, %106 : vector<8x8xf32>
    %cst_35 = arith.constant dense<0xFF800000> : vector<8xf32>
    %108 = vector.multi_reduction <maximumf>, %107, %cst_35 [1] : vector<8x8xf32> to vector<8xf32>
    %109 = vector.shape_cast %108 : vector<8xf32> to vector<8x1xf32>
    %110 = vector.broadcast %109 : vector<8x1xf32> to vector<8x8xf32>
    %111 = arith.subf %107, %110 : vector<8x8xf32>
    %112 = math.exp %111 : vector<8x8xf32>
    %cst_36 = arith.constant dense<0.000000e+00> : vector<8xf32>
    %113 = vector.multi_reduction <add>, %112, %cst_36 [1] : vector<8x8xf32> to vector<8xf32>
    %114 = vector.shape_cast %113 : vector<8xf32> to vector<8x1xf32>
    %115 = vector.broadcast %114 : vector<8x1xf32> to vector<8x8xf32>
    %116 = arith.divf %112, %115 : vector<8x8xf32>
    %cst_37 = arith.constant dense<0.000000e+00> : vector<8x8xf32>
    %117 = tpu.matmul %116, %101, %cst_37 {dimension_numbers = #tpu.dot_dimension_numbers<[1], [0], [0], [1], [0, 0, 1, 1], [], []>} : vector<8x8xf32>, vector<8x8xf32>, vector<8x8xf32> -> vector<8x8xf32>
    %118 = vector.extract_strided_slice %95 {offsets = [0, 24], sizes = [8, 24], strides = [1, 1]} : vector<8x96xf32> to vector<8x24xf32>
    %119 = vector.extract_strided_slice %118 {offsets = [0, 0], sizes = [8, 8], strides = [1, 1]} : vector<8x24xf32> to vector<8x8xf32>
    %120 = vector.extract_strided_slice %118 {offsets = [0, 8], sizes = [8, 8], strides = [1, 1]} : vector<8x24xf32> to vector<8x8xf32>
    %121 = vector.extract_strided_slice %118 {offsets = [0, 16], sizes = [8, 8], strides = [1, 1]} : vector<8x24xf32> to vector<8x8xf32>
    %122 = tpu.transpose %120, [1, 0] : vector<8x8xf32> -> vector<8x8xf32>
    %cst_38 = arith.constant dense<0.000000e+00> : vector<8x8xf32>
    %123 = tpu.matmul %119, %122, %cst_38 {dimension_numbers = #tpu.dot_dimension_numbers<[1], [0], [0], [1], [0, 0, 1, 1], [], []>} : vector<8x8xf32>, vector<8x8xf32>, vector<8x8xf32> -> vector<8x8xf32>
    %cst_39 = arith.constant 0.353553385 : f32
    %124 = vector.broadcast %cst_39 : f32 to vector<8x8xf32>
    %125 = arith.mulf %123, %124 : vector<8x8xf32>
    %126 = vector.broadcast %97 : vector<1x8xf32> to vector<8x8xf32>
    %127 = arith.addf %125, %126 : vector<8x8xf32>
    %cst_40 = arith.constant dense<0xFF800000> : vector<8xf32>
    %128 = vector.multi_reduction <maximumf>, %127, %cst_40 [1] : vector<8x8xf32> to vector<8xf32>
    %129 = vector.shape_cast %128 : vector<8xf32> to vector<8x1xf32>
    %130 = vector.broadcast %129 : vector<8x1xf32> to vector<8x8xf32>
    %131 = arith.subf %127, %130 : vector<8x8xf32>
    %132 = math.exp %131 : vector<8x8xf32>
    %cst_41 = arith.constant dense<0.000000e+00> : vector<8xf32>
    %133 = vector.multi_reduction <add>, %132, %cst_41 [1] : vector<8x8xf32> to vector<8xf32>
    %134 = vector.shape_cast %133 : vector<8xf32> to vector<8x1xf32>
    %135 = vector.broadcast %134 : vector<8x1xf32> to vector<8x8xf32>
    %136 = arith.divf %132, %135 : vector<8x8xf32>
    %cst_42 = arith.constant dense<0.000000e+00> : vector<8x8xf32>
    %137 = tpu.matmul %136, %121, %cst_42 {dimension_numbers = #tpu.dot_dimension_numbers<[1], [0], [0], [1], [0, 0, 1, 1], [], []>} : vector<8x8xf32>, vector<8x8xf32>, vector<8x8xf32> -> vector<8x8xf32>
    %138 = vector.extract_strided_slice %95 {offsets = [0, 48], sizes = [8, 24], strides = [1, 1]} : vector<8x96xf32> to vector<8x24xf32>
    %139 = vector.extract_strided_slice %138 {offsets = [0, 0], sizes = [8, 8], strides = [1, 1]} : vector<8x24xf32> to vector<8x8xf32>
    %140 = vector.extract_strided_slice %138 {offsets = [0, 8], sizes = [8, 8], strides = [1, 1]} : vector<8x24xf32> to vector<8x8xf32>
    %141 = vector.extract_strided_slice %138 {offsets = [0, 16], sizes = [8, 8], strides = [1, 1]} : vector<8x24xf32> to vector<8x8xf32>
    %142 = tpu.transpose %140, [1, 0] : vector<8x8xf32> -> vector<8x8xf32>
    %cst_43 = arith.constant dense<0.000000e+00> : vector<8x8xf32>
    %143 = tpu.matmul %139, %142, %cst_43 {dimension_numbers = #tpu.dot_dimension_numbers<[1], [0], [0], [1], [0, 0, 1, 1], [], []>} : vector<8x8xf32>, vector<8x8xf32>, vector<8x8xf32> -> vector<8x8xf32>
    %cst_44 = arith.constant 0.353553385 : f32
    %144 = vector.broadcast %cst_44 : f32 to vector<8x8xf32>
    %145 = arith.mulf %143, %144 : vector<8x8xf32>
    %146 = vector.broadcast %97 : vector<1x8xf32> to vector<8x8xf32>
    %147 = arith.addf %145, %146 : vector<8x8xf32>
    %cst_45 = arith.constant dense<0xFF800000> : vector<8xf32>
    %148 = vector.multi_reduction <maximumf>, %147, %cst_45 [1] : vector<8x8xf32> to vector<8xf32>
    %149 = vector.shape_cast %148 : vector<8xf32> to vector<8x1xf32>
    %150 = vector.broadcast %149 : vector<8x1xf32> to vector<8x8xf32>
    %151 = arith.subf %147, %150 : vector<8x8xf32>
    %152 = math.exp %151 : vector<8x8xf32>
    %cst_46 = arith.constant dense<0.000000e+00> : vector<8xf32>
    %153 = vector.multi_reduction <add>, %152, %cst_46 [1] : vector<8x8xf32> to vector<8xf32>
    %154 = vector.shape_cast %153 : vector<8xf32> to vector<8x1xf32>
    %155 = vector.broadcast %154 : vector<8x1xf32> to vector<8x8xf32>
    %156 = arith.divf %152, %155 : vector<8x8xf32>
    %cst_47 = arith.constant dense<0.000000e+00> : vector<8x8xf32>
    %157 = tpu.matmul %156, %141, %cst_47 {dimension_numbers = #tpu.dot_dimension_numbers<[1], [0], [0], [1], [0, 0, 1, 1], [], []>} : vector<8x8xf32>, vector<8x8xf32>, vector<8x8xf32> -> vector<8x8xf32>
    %158 = vector.extract_strided_slice %95 {offsets = [0, 72], sizes = [8, 24], strides = [1, 1]} : vector<8x96xf32> to vector<8x24xf32>
    %159 = vector.extract_strided_slice %158 {offsets = [0, 0], sizes = [8, 8], strides = [1, 1]} : vector<8x24xf32> to vector<8x8xf32>
    %160 = vector.extract_strided_slice %158 {offsets = [0, 8], sizes = [8, 8], strides = [1, 1]} : vector<8x24xf32> to vector<8x8xf32>
    %161 = vector.extract_strided_slice %158 {offsets = [0, 16], sizes = [8, 8], strides = [1, 1]} : vector<8x24xf32> to vector<8x8xf32>
    %162 = tpu.transpose %160, [1, 0] : vector<8x8xf32> -> vector<8x8xf32>
    %cst_48 = arith.constant dense<0.000000e+00> : vector<8x8xf32>
    %163 = tpu.matmul %159, %162, %cst_48 {dimension_numbers = #tpu.dot_dimension_numbers<[1], [0], [0], [1], [0, 0, 1, 1], [], []>} : vector<8x8xf32>, vector<8x8xf32>, vector<8x8xf32> -> vector<8x8xf32>
    %cst_49 = arith.constant 0.353553385 : f32
    %164 = vector.broadcast %cst_49 : f32 to vector<8x8xf32>
    %165 = arith.mulf %163, %164 : vector<8x8xf32>
    %166 = vector.broadcast %97 : vector<1x8xf32> to vector<8x8xf32>
    %167 = arith.addf %165, %166 : vector<8x8xf32>
    %cst_50 = arith.constant dense<0xFF800000> : vector<8xf32>
    %168 = vector.multi_reduction <maximumf>, %167, %cst_50 [1] : vector<8x8xf32> to vector<8xf32>
    %169 = vector.shape_cast %168 : vector<8xf32> to vector<8x1xf32>
    %170 = vector.broadcast %169 : vector<8x1xf32> to vector<8x8xf32>
    %171 = arith.subf %167, %170 : vector<8x8xf32>
    %172 = math.exp %171 : vector<8x8xf32>
    %cst_51 = arith.constant dense<0.000000e+00> : vector<8xf32>
    %173 = vector.multi_reduction <add>, %172, %cst_51 [1] : vector<8x8xf32> to vector<8xf32>
    %174 = vector.shape_cast %173 : vector<8xf32> to vector<8x1xf32>
    %175 = vector.broadcast %174 : vector<8x1xf32> to vector<8x8xf32>
    %176 = arith.divf %172, %175 : vector<8x8xf32>
    %cst_52 = arith.constant dense<0.000000e+00> : vector<8x8xf32>
    %177 = tpu.matmul %176, %161, %cst_52 {dimension_numbers = #tpu.dot_dimension_numbers<[1], [0], [0], [1], [0, 0, 1, 1], [], []>} : vector<8x8xf32>, vector<8x8xf32>, vector<8x8xf32> -> vector<8x8xf32>
    %178 = tpu.concatenate %117, %137, %157, %177 in 1 : vector<8x8xf32>, vector<8x8xf32>, vector<8x8xf32>, vector<8x8xf32> -> vector<8x32xf32>
    %179 = tpu.concatenate %94, %178 in 0 : vector<8x32xf32>, vector<8x32xf32> -> vector<16x32xf32>
    %c0_53 = arith.constant 0 : index
    %c0_54 = arith.constant 0 : index
    %c0_55 = arith.constant 0 : index
    %180 = vector.load %arg8[%c0_53, %c0_54, %c0_55] : memref<1x32x32xf32, #tpu.memory_space<vmem>>, vector<1x32x32xf32>
    %181 = vector.shape_cast %180 : vector<1x32x32xf32> to vector<32x32xf32>
    %cst_56 = arith.constant dense<0.000000e+00> : vector<16x32xf32>
    %182 = tpu.matmul %179, %181, %cst_56 {dimension_numbers = #tpu.dot_dimension_numbers<[1], [0], [0], [1], [0, 0, 1, 1], [], []>} : vector<16x32xf32>, vector<32x32xf32>, vector<16x32xf32> -> vector<16x32xf32>
    %c0_57 = arith.constant 0 : index
    %c0_58 = arith.constant 0 : index
    %c0_59 = arith.constant 0 : index
    %183 = vector.load %arg9[%c0_57, %c0_58, %c0_59] : memref<1x1x32xf32, #tpu.memory_space<vmem>>, vector<1x1x32xf32>
    %184 = vector.shape_cast %183 : vector<1x1x32xf32> to vector<1x32xf32>
    %185 = vector.broadcast %184 : vector<1x32xf32> to vector<16x32xf32>
    %186 = arith.addf %182, %185 : vector<16x32xf32>
    %187 = arith.addf %186, %3 : vector<16x32xf32>
    %c0_60 = arith.constant 0 : index
    %c0_61 = arith.constant 0 : index
    %c0_62 = arith.constant 0 : index
    %188 = vector.load %arg10[%c0_60, %c0_61, %c0_62] : memref<1x1x32xf32, #tpu.memory_space<vmem>>, vector<1x1x32xf32>
    %189 = vector.shape_cast %188 : vector<1x1x32xf32> to vector<1x32xf32>
    %c0_63 = arith.constant 0 : index
    %c0_64 = arith.constant 0 : index
    %c0_65 = arith.constant 0 : index
    %190 = vector.load %arg11[%c0_63, %c0_64, %c0_65] : memref<1x1x32xf32, #tpu.memory_space<vmem>>, vector<1x1x32xf32>
    %191 = vector.shape_cast %190 : vector<1x1x32xf32> to vector<1x32xf32>
    %cst_66 = arith.constant dense<0.000000e+00> : vector<16xf32>
    %192 = vector.multi_reduction <add>, %187, %cst_66 [1] : vector<16x32xf32> to vector<16xf32>
    %193 = vector.shape_cast %192 : vector<16xf32> to vector<16x1xf32>
    %cst_67 = arith.constant 3.200000e+01 : f32
    %194 = vector.broadcast %cst_67 : f32 to vector<16x1xf32>
    %195 = arith.divf %193, %194 : vector<16x1xf32>
    %196 = vector.broadcast %195 : vector<16x1xf32> to vector<16x32xf32>
    %197 = arith.subf %187, %196 : vector<16x32xf32>
    %198 = arith.mulf %197, %197 : vector<16x32xf32>
    %cst_68 = arith.constant dense<0.000000e+00> : vector<16xf32>
    %199 = vector.multi_reduction <add>, %198, %cst_68 [1] : vector<16x32xf32> to vector<16xf32>
    %200 = vector.shape_cast %199 : vector<16xf32> to vector<16x1xf32>
    %cst_69 = arith.constant 3.200000e+01 : f32
    %201 = vector.broadcast %cst_69 : f32 to vector<16x1xf32>
    %202 = arith.divf %200, %201 : vector<16x1xf32>
    %203 = vector.broadcast %195 : vector<16x1xf32> to vector<16x32xf32>
    %204 = arith.subf %187, %203 : vector<16x32xf32>
    %cst_70 = arith.constant 9.99999996E-13 : f32
    %205 = vector.broadcast %cst_70 : f32 to vector<16x1xf32>
    %206 = arith.addf %202, %205 : vector<16x1xf32>
    %207 = math.rsqrt %206 : vector<16x1xf32>
    %208 = vector.broadcast %207 : vector<16x1xf32> to vector<16x32xf32>
    %209 = arith.mulf %204, %208 : vector<16x32xf32>
    %210 = vector.broadcast %189 : vector<1x32xf32> to vector<16x32xf32>
    %211 = arith.mulf %209, %210 : vector<16x32xf32>
    %212 = vector.broadcast %191 : vector<1x32xf32> to vector<16x32xf32>
    %213 = arith.addf %211, %212 : vector<16x32xf32>
    %c0_71 = arith.constant 0 : index
    %c0_72 = arith.constant 0 : index
    %c0_73 = arith.constant 0 : index
    %214 = vector.load %arg12[%c0_71, %c0_72, %c0_73] : memref<1x32x64xf32, #tpu.memory_space<vmem>>, vector<1x32x64xf32>
    %215 = vector.shape_cast %214 : vector<1x32x64xf32> to vector<32x64xf32>
    %cst_74 = arith.constant dense<0.000000e+00> : vector<16x64xf32>
    %216 = tpu.matmul %213, %215, %cst_74 {dimension_numbers = #tpu.dot_dimension_numbers<[1], [0], [0], [1], [0, 0, 1, 1], [], []>} : vector<16x32xf32>, vector<32x64xf32>, vector<16x64xf32> -> vector<16x64xf32>
    %c0_75 = arith.constant 0 : index
    %c0_76 = arith.constant 0 : index
    %c0_77 = arith.constant 0 : index
    %217 = vector.load %arg13[%c0_75, %c0_76, %c0_77] : memref<1x1x64xf32, #tpu.memory_space<vmem>>, vector<1x1x64xf32>
    %218 = vector.shape_cast %217 : vector<1x1x64xf32> to vector<1x64xf32>
    %219 = vector.broadcast %218 : vector<1x64xf32> to vector<16x64xf32>
    %220 = arith.addf %216, %219 : vector<16x64xf32>
    %cst_78 = arith.constant 5.000000e-01 : f32
    %221 = vector.broadcast %cst_78 : f32 to vector<16x64xf32>
    %222 = arith.mulf %221, %220 : vector<16x64xf32>
    %cst_79 = arith.constant 0.707106769 : f32
    %223 = vector.broadcast %cst_79 : f32 to vector<16x64xf32>
    %224 = arith.mulf %220, %223 : vector<16x64xf32>
    %225 = math.erf %224 : vector<16x64xf32>
    %cst_80 = arith.constant 1.000000e+00 : f32
    %226 = vector.broadcast %cst_80 : f32 to vector<16x64xf32>
    %227 = arith.addf %226, %225 : vector<16x64xf32>
    %228 = arith.mulf %222, %227 : vector<16x64xf32>
    %c0_81 = arith.constant 0 : index
    %c0_82 = arith.constant 0 : index
    %c0_83 = arith.constant 0 : index
    %229 = vector.load %arg14[%c0_81, %c0_82, %c0_83] : memref<1x64x32xf32, #tpu.memory_space<vmem>>, vector<1x64x32xf32>
    %230 = vector.shape_cast %229 : vector<1x64x32xf32> to vector<64x32xf32>
    %cst_84 = arith.constant dense<0.000000e+00> : vector<16x32xf32>
    %231 = tpu.matmul %228, %230, %cst_84 {dimension_numbers = #tpu.dot_dimension_numbers<[1], [0], [0], [1], [0, 0, 1, 1], [], []>} : vector<16x64xf32>, vector<64x32xf32>, vector<16x32xf32> -> vector<16x32xf32>
    %c0_85 = arith.constant 0 : index
    %c0_86 = arith.constant 0 : index
    %c0_87 = arith.constant 0 : index
    %232 = vector.load %arg15[%c0_85, %c0_86, %c0_87] : memref<1x1x32xf32, #tpu.memory_space<vmem>>, vector<1x1x32xf32>
    %233 = vector.shape_cast %232 : vector<1x1x32xf32> to vector<1x32xf32>
    %234 = vector.broadcast %233 : vector<1x32xf32> to vector<16x32xf32>
    %235 = arith.addf %231, %234 : vector<16x32xf32>
    %236 = arith.addf %235, %213 : vector<16x32xf32>
    %c0_88 = arith.constant 0 : index
    %c0_89 = arith.constant 0 : index
    %c0_90 = arith.constant 0 : index
    %237 = vector.load %arg16[%c0_88, %c0_89, %c0_90] : memref<1x1x32xf32, #tpu.memory_space<vmem>>, vector<1x1x32xf32>
    %238 = vector.shape_cast %237 : vector<1x1x32xf32> to vector<1x32xf32>
    %c0_91 = arith.constant 0 : index
    %c0_92 = arith.constant 0 : index
    %c0_93 = arith.constant 0 : index
    %239 = vector.load %arg17[%c0_91, %c0_92, %c0_93] : memref<1x1x32xf32, #tpu.memory_space<vmem>>, vector<1x1x32xf32>
    %240 = vector.shape_cast %239 : vector<1x1x32xf32> to vector<1x32xf32>
    %cst_94 = arith.constant dense<0.000000e+00> : vector<16xf32>
    %241 = vector.multi_reduction <add>, %236, %cst_94 [1] : vector<16x32xf32> to vector<16xf32>
    %242 = vector.shape_cast %241 : vector<16xf32> to vector<16x1xf32>
    %cst_95 = arith.constant 3.200000e+01 : f32
    %243 = vector.broadcast %cst_95 : f32 to vector<16x1xf32>
    %244 = arith.divf %242, %243 : vector<16x1xf32>
    %245 = vector.broadcast %244 : vector<16x1xf32> to vector<16x32xf32>
    %246 = arith.subf %236, %245 : vector<16x32xf32>
    %247 = arith.mulf %246, %246 : vector<16x32xf32>
    %cst_96 = arith.constant dense<0.000000e+00> : vector<16xf32>
    %248 = vector.multi_reduction <add>, %247, %cst_96 [1] : vector<16x32xf32> to vector<16xf32>
    %249 = vector.shape_cast %248 : vector<16xf32> to vector<16x1xf32>
    %cst_97 = arith.constant 3.200000e+01 : f32
    %250 = vector.broadcast %cst_97 : f32 to vector<16x1xf32>
    %251 = arith.divf %249, %250 : vector<16x1xf32>
    %252 = vector.broadcast %244 : vector<16x1xf32> to vector<16x32xf32>
    %253 = arith.subf %236, %252 : vector<16x32xf32>
    %cst_98 = arith.constant 9.99999996E-13 : f32
    %254 = vector.broadcast %cst_98 : f32 to vector<16x1xf32>
    %255 = arith.addf %251, %254 : vector<16x1xf32>
    %256 = math.rsqrt %255 : vector<16x1xf32>
    %257 = vector.broadcast %256 : vector<16x1xf32> to vector<16x32xf32>
    %258 = arith.mulf %253, %257 : vector<16x32xf32>
    %259 = vector.broadcast %238 : vector<1x32xf32> to vector<16x32xf32>
    %260 = arith.mulf %258, %259 : vector<16x32xf32>
    %261 = vector.broadcast %240 : vector<1x32xf32> to vector<16x32xf32>
    %262 = arith.addf %260, %261 : vector<16x32xf32>
    %c0_99 = arith.constant 0 : index
    %c0_100 = arith.constant 0 : index
    %263 = vector.load %arg24[%c0_99, %c0_100] : memref<16x32xf32, #tpu.memory_space<vmem>>, vector<16x32xf32>
    tpu.vector_store %arg24[%c0_99, %c0_100], %262 {strides = array<i32>} : memref<16x32xf32, #tpu.memory_space<vmem>>, vector<16x32xf32>,
    %c0_101 = arith.constant 0 : index
    %c0_102 = arith.constant 0 : index
    %c0_103 = arith.constant 0 : index
    %264 = vector.load %arg22[%c0_101, %c0_102, %c0_103] : memref<1x16x32xf32, #tpu.memory_space<vmem>>, vector<1x16x32xf32>
    %265 = vector.shape_cast %264 : vector<1x16x32xf32> to vector<16x32xf32>
    %266 = vector.shape_cast %262 : vector<16x32xf32> to vector<1x16x32xf32>
    tpu.vector_store %arg22[%c0_101, %c0_102, %c0_103], %266 {strides = array<i32>} : memref<1x16x32xf32, #tpu.memory_space<vmem>>, vector<1x16x32xf32>,
    %c1_i32 = arith.constant 1 : i32
    %267 = arith.cmpi eq, %arg0, %c1_i32 : i32
    %268 = arith.extui %267 : i1 to i32
    %c0_i32_104 = arith.constant 0 : i32
    %269 = arith.cmpi ne, %268, %c0_i32_104 : i32
    scf.if %269 {
      %270 = tpu.iota {dimensions = array<i32: 1>} : vector<1x16xi32>
      %c0_105 = arith.constant 0 : index
      %271 = memref.load %arg1[%c0_105] : memref<2xi32, #tpu.memory_space<smem>>
      %c0_i32_106 = arith.constant 0 : i32
      %272 = arith.addi %c0_i32_106, %271 : i32
      %273 = vector.broadcast %272 : i32 to vector<1x16xi32>
      %274 = arith.cmpi eq, %270, %273 : vector<1x16xi32>
      %275 = arith.extui %274 : vector<1x16xi1> to vector<1x16xi32>
      %276 = arith.sitofp %275 : vector<1x16xi32> to vector<1x16xf32>
      %c1_107 = arith.constant 1 : index
      %277 = memref.load %arg1[%c1_107] : memref<2xi32, #tpu.memory_space<smem>>
      %c8_i32 = arith.constant 8 : i32
      %278 = arith.addi %c8_i32, %277 : i32
      %279 = vector.broadcast %278 : i32 to vector<1x16xi32>
      %280 = arith.cmpi eq, %270, %279 : vector<1x16xi32>
      %281 = arith.extui %280 : vector<1x16xi1> to vector<1x16xi32>
      %282 = arith.sitofp %281 : vector<1x16xi32> to vector<1x16xf32>
      %283 = tpu.concatenate %276, %282 in 0 : vector<1x16xf32>, vector<1x16xf32> -> vector<2x16xf32>
      %cst_108 = arith.constant dense<0.000000e+00> : vector<2x32xf32>
      %284 = tpu.matmul %283, %262, %cst_108 {dimension_numbers = #tpu.dot_dimension_numbers<[1], [0], [0], [1], [0, 0, 1, 1], [], []>} : vector<2x16xf32>, vector<16x32xf32>, vector<2x32xf32> -> vector<2x32xf32>
      %c0_109 = arith.constant 0 : index
      %c0_110 = arith.constant 0 : index
      %285 = vector.load %arg18[%c0_109, %c0_110] : memref<1x32xf32, #tpu.memory_space<vmem>>, vector<1x32xf32>
      %c0_111 = arith.constant 0 : index
      %c0_112 = arith.constant 0 : index
      %286 = vector.load %arg19[%c0_111, %c0_112] : memref<1x32xf32, #tpu.memory_space<vmem>>, vector<1x32xf32>
      %cst_113 = arith.constant dense<0.000000e+00> : vector<2xf32>
      %287 = vector.multi_reduction <add>, %284, %cst_113 [1] : vector<2x32xf32> to vector<2xf32>
      %288 = vector.shape_cast %287 : vector<2xf32> to vector<2x1xf32>
      %cst_114 = arith.constant 3.200000e+01 : f32
      %289 = vector.broadcast %cst_114 : f32 to vector<2x1xf32>
      %290 = arith.divf %288, %289 : vector<2x1xf32>
      %291 = vector.broadcast %290 : vector<2x1xf32> to vector<2x32xf32>
      %292 = arith.subf %284, %291 : vector<2x32xf32>
      %293 = arith.mulf %292, %292 : vector<2x32xf32>
      %cst_115 = arith.constant dense<0.000000e+00> : vector<2xf32>
      %294 = vector.multi_reduction <add>, %293, %cst_115 [1] : vector<2x32xf32> to vector<2xf32>
      %295 = vector.shape_cast %294 : vector<2xf32> to vector<2x1xf32>
      %cst_116 = arith.constant 3.200000e+01 : f32
      %296 = vector.broadcast %cst_116 : f32 to vector<2x1xf32>
      %297 = arith.divf %295, %296 : vector<2x1xf32>
      %298 = vector.broadcast %290 : vector<2x1xf32> to vector<2x32xf32>
      %299 = arith.subf %284, %298 : vector<2x32xf32>
      %cst_117 = arith.constant 9.99999996E-13 : f32
      %300 = vector.broadcast %cst_117 : f32 to vector<2x1xf32>
      %301 = arith.addf %297, %300 : vector<2x1xf32>
      %302 = math.rsqrt %301 : vector<2x1xf32>
      %303 = vector.broadcast %302 : vector<2x1xf32> to vector<2x32xf32>
      %304 = arith.mulf %299, %303 : vector<2x32xf32>
      %305 = vector.broadcast %285 : vector<1x32xf32> to vector<2x32xf32>
      %306 = arith.mulf %304, %305 : vector<2x32xf32>
      %307 = vector.broadcast %286 : vector<1x32xf32> to vector<2x32xf32>
      %308 = arith.addf %306, %307 : vector<2x32xf32>
      %c0_118 = arith.constant 0 : index
      %c0_119 = arith.constant 0 : index
      %309 = vector.load %arg20[%c0_118, %c0_119] : memref<32x512xf32, #tpu.memory_space<vmem>>, vector<32x512xf32>
      %cst_120 = arith.constant dense<0.000000e+00> : vector<2x512xf32>
      %310 = tpu.matmul %308, %309, %cst_120 {dimension_numbers = #tpu.dot_dimension_numbers<[1], [0], [0], [1], [0, 0, 1, 1], [], []>} : vector<2x32xf32>, vector<32x512xf32>, vector<2x512xf32> -> vector<2x512xf32>
      %c0_121 = arith.constant 0 : index
      %c0_122 = arith.constant 0 : index
      %311 = vector.load %arg23[%c0_121, %c0_122] : memref<2x512xf32, #tpu.memory_space<vmem>>, vector<2x512xf32>
      tpu.vector_store %arg23[%c0_121, %c0_122], %310 {strides = array<i32>} : memref<2x512xf32, #tpu.memory_space<vmem>>, vector<2x512xf32>,
    } else {
    }
    return
  }
  func.func @transform_0(%arg0: i32, %arg1: memref<2xi32, #tpu.memory_space<smem>>) -> (i32, i32) {
    %c0_i32 = arith.constant 0 : i32
    %c0_i32_0 = arith.constant 0 : i32
    %c0_i32_1 = arith.constant 0 : i32
    return %c0_i32, %c0_i32_0 : i32, i32
  }
  func.func @transform_1(%arg0: i32, %arg1: memref<2xi32, #tpu.memory_space<smem>>) -> (i32, i32, i32) {
    %c0_i32 = arith.constant 0 : i32
    %c0_i32_0 = arith.constant 0 : i32
    %c0_i32_1 = arith.constant 0 : i32
    %c0_i32_2 = arith.constant 0 : i32
    return %c0_i32, %c0_i32_0, %c0_i32_1 : i32, i32, i32
  }
  func.func @transform_2(%arg0: i32, %arg1: memref<2xi32, #tpu.memory_space<smem>>) -> (i32, i32) {
    %c0_i32 = arith.constant 0 : i32
    %c0_i32_0 = arith.constant 0 : i32
    %c0_i32_1 = arith.constant 0 : i32
    return %c0_i32, %c0_i32_0 : i32, i32
  }
  func.func @transform_3(%arg0: i32, %arg1: memref<2xi32, #tpu.memory_space<smem>>) -> (i32, i32) {
    %c0_i32 = arith.constant 0 : i32
    %c0_i32_0 = arith.constant 0 : i32
    %c0_i32_1 = arith.constant 0 : i32
    return %c0_i32, %c0_i32_0 : i32, i32
  }
  func.func @transform_4(%arg0: i32, %arg1: memref<2xi32, #tpu.memory_space<smem>>) -> (i32, i32, i32) {
    %c0_i32 = arith.constant 0 : i32
    %c0_i32_0 = arith.constant 0 : i32
    %c0_i32_1 = arith.constant 0 : i32
    return %arg0, %c0_i32, %c0_i32_0 : i32, i32, i32
  }
  func.func @transform_5(%arg0: i32, %arg1: memref<2xi32, #tpu.memory_space<smem>>) -> (i32, i32, i32) {
    %c0_i32 = arith.constant 0 : i32
    %c0_i32_0 = arith.constant 0 : i32
    %c0_i32_1 = arith.constant 0 : i32
    return %arg0, %c0_i32, %c0_i32_0 : i32, i32, i32
  }
  func.func @transform_6(%arg0: i32, %arg1: memref<2xi32, #tpu.memory_space<smem>>) -> (i32, i32, i32) {
    %c0_i32 = arith.constant 0 : i32
    %c0_i32_0 = arith.constant 0 : i32
    %c0_i32_1 = arith.constant 0 : i32
    return %arg0, %c0_i32, %c0_i32_0 : i32, i32, i32
  }
  func.func @transform_7(%arg0: i32, %arg1: memref<2xi32, #tpu.memory_space<smem>>) -> (i32, i32, i32) {
    %c0_i32 = arith.constant 0 : i32
    %c0_i32_0 = arith.constant 0 : i32
    %c0_i32_1 = arith.constant 0 : i32
    return %arg0, %c0_i32, %c0_i32_0 : i32, i32, i32
  }
  func.func @transform_8(%arg0: i32, %arg1: memref<2xi32, #tpu.memory_space<smem>>) -> (i32, i32, i32) {
    %c0_i32 = arith.constant 0 : i32
    %c0_i32_0 = arith.constant 0 : i32
    %c0_i32_1 = arith.constant 0 : i32
    return %arg0, %c0_i32, %c0_i32_0 : i32, i32, i32
  }
  func.func @transform_9(%arg0: i32, %arg1: memref<2xi32, #tpu.memory_space<smem>>) -> (i32, i32, i32) {
    %c0_i32 = arith.constant 0 : i32
    %c0_i32_0 = arith.constant 0 : i32
    %c0_i32_1 = arith.constant 0 : i32
    return %arg0, %c0_i32, %c0_i32_0 : i32, i32, i32
  }
  func.func @transform_10(%arg0: i32, %arg1: memref<2xi32, #tpu.memory_space<smem>>) -> (i32, i32, i32) {
    %c0_i32 = arith.constant 0 : i32
    %c0_i32_0 = arith.constant 0 : i32
    %c0_i32_1 = arith.constant 0 : i32
    return %arg0, %c0_i32, %c0_i32_0 : i32, i32, i32
  }
  func.func @transform_11(%arg0: i32, %arg1: memref<2xi32, #tpu.memory_space<smem>>) -> (i32, i32, i32) {
    %c0_i32 = arith.constant 0 : i32
    %c0_i32_0 = arith.constant 0 : i32
    %c0_i32_1 = arith.constant 0 : i32
    return %arg0, %c0_i32, %c0_i32_0 : i32, i32, i32
  }
  func.func @transform_12(%arg0: i32, %arg1: memref<2xi32, #tpu.memory_space<smem>>) -> (i32, i32, i32) {
    %c0_i32 = arith.constant 0 : i32
    %c0_i32_0 = arith.constant 0 : i32
    %c0_i32_1 = arith.constant 0 : i32
    return %arg0, %c0_i32, %c0_i32_0 : i32, i32, i32
  }
  func.func @transform_13(%arg0: i32, %arg1: memref<2xi32, #tpu.memory_space<smem>>) -> (i32, i32, i32) {
    %c0_i32 = arith.constant 0 : i32
    %c0_i32_0 = arith.constant 0 : i32
    %c0_i32_1 = arith.constant 0 : i32
    return %arg0, %c0_i32, %c0_i32_0 : i32, i32, i32
  }
  func.func @transform_14(%arg0: i32, %arg1: memref<2xi32, #tpu.memory_space<smem>>) -> (i32, i32, i32) {
    %c0_i32 = arith.constant 0 : i32
    %c0_i32_0 = arith.constant 0 : i32
    %c0_i32_1 = arith.constant 0 : i32
    return %arg0, %c0_i32, %c0_i32_0 : i32, i32, i32
  }
  func.func @transform_15(%arg0: i32, %arg1: memref<2xi32, #tpu.memory_space<smem>>) -> (i32, i32, i32) {
    %c0_i32 = arith.constant 0 : i32
    %c0_i32_0 = arith.constant 0 : i32
    %c0_i32_1 = arith.constant 0 : i32
    return %arg0, %c0_i32, %c0_i32_0 : i32, i32, i32
  }
  func.func @transform_16(%arg0: i32, %arg1: memref<2xi32, #tpu.memory_space<smem>>) -> (i32, i32) {
    %c0_i32 = arith.constant 0 : i32
    %c0_i32_0 = arith.constant 0 : i32
    %c0_i32_1 = arith.constant 0 : i32
    return %c0_i32, %c0_i32_0 : i32, i32
  }
  func.func @transform_17(%arg0: i32, %arg1: memref<2xi32, #tpu.memory_space<smem>>) -> (i32, i32) {
    %c0_i32 = arith.constant 0 : i32
    %c0_i32_0 = arith.constant 0 : i32
    %c0_i32_1 = arith.constant 0 : i32
    return %c0_i32, %c0_i32_0 : i32, i32
  }
  func.func @transform_18(%arg0: i32, %arg1: memref<2xi32, #tpu.memory_space<smem>>) -> (i32, i32) {
    %c0_i32 = arith.constant 0 : i32
    %c0_i32_0 = arith.constant 0 : i32
    %c0_i32_1 = arith.constant 0 : i32
    return %c0_i32, %c0_i32_0 : i32, i32
  }
  func.func @transform_19(%arg0: i32, %arg1: memref<2xi32, #tpu.memory_space<smem>>) -> (i32, i32) {
    %c0_i32 = arith.constant 0 : i32
    %c0_i32_0 = arith.constant 0 : i32
    %c0_i32_1 = arith.constant 0 : i32
    return %c0_i32, %c0_i32_0 : i32, i32
  }
  func.func @transform_20(%arg0: i32, %arg1: memref<2xi32, #tpu.memory_space<smem>>) -> (i32, i32, i32) {
    %c0_i32 = arith.constant 0 : i32
    %c0_i32_0 = arith.constant 0 : i32
    %c0_i32_1 = arith.constant 0 : i32
    return %arg0, %c0_i32, %c0_i32_0 : i32, i32, i32
  }
  func.func @transform_21(%arg0: i32, %arg1: memref<2xi32, #tpu.memory_space<smem>>) -> (i32, i32) {
    %c0_i32 = arith.constant 0 : i32
    %c0_i32_0 = arith.constant 0 : i32
    %c0_i32_1 = arith.constant 0 : i32
    return %c0_i32, %c0_i32_0 : i32, i32
  }
}

</mosaic_0001>

<llo_original>
// kernel: student_forward.1
$region0: #{student_forward.1}
  #allocation0 [shape = 'u32[]', space=smem, size = 0x4, offset = 0x4, fixed_abs, tag = 'smem constant byte address 0x4 - core index']
  #allocation1 [shape = 'u32[144,128]{1,0:T(1,128)}', space=vmem, size = 0x12000, scoped, tag = 'internal scratch']
  #allocation2 [shape = 'f32[16,32]{1,0:T(8,128)}', space=vmem, size = 0x2000, scoped, tag = 'scratch operand']
  #allocation3 [shape = 's32[1]{0}', space=sflag, size = 0x4, scoped, tag = 'scoped memory for student_forward.1']
  #allocation4 [shape = 'u8[512]{0}', space=smem, size = 0x200, scoped, tag = 'prefetched SMEM operand 0']
  %s0 = inlined_call_operand.vmem [shape: s32[2], index: 0, kind: input, shape index: {}]
  %s1 = inlined_call_operand.vmem [shape: f32[16,32], index: 1, kind: input, shape index: {}]
  %s2 = inlined_call_operand.vmem [shape: f32[2,1,8], index: 2, kind: input, shape index: {}]
  %s3 = inlined_call_operand.vmem [shape: f32[1,32], index: 3, kind: input, shape index: {}]
  %s4 = inlined_call_operand.vmem [shape: f32[1,32], index: 4, kind: input, shape index: {}]
  %s5 = inlined_call_operand.vmem [shape: f32[2,32,96], index: 5, kind: input, shape index: {}]
  %s6 = inlined_call_operand.vmem [shape: f32[2,1,96], index: 6, kind: input, shape index: {}]
  %s7 = inlined_call_operand.vmem [shape: f32[2,32,32], index: 7, kind: input, shape index: {}]
  %s8 = inlined_call_operand.vmem [shape: f32[2,1,32], index: 8, kind: input, shape index: {}]
  %s9 = inlined_call_operand.vmem [shape: f32[2,1,32], index: 9, kind: input, shape index: {}]
  %s10 = inlined_call_operand.vmem [shape: f32[2,1,32], index: 10, kind: input, shape index: {}]
  %s11 = inlined_call_operand.vmem [shape: f32[2,32,64], index: 11, kind: input, shape index: {}]
  %s12 = inlined_call_operand.vmem [shape: f32[2,1,64], index: 12, kind: input, shape index: {}]
  %s13 = inlined_call_operand.vmem [shape: f32[2,64,32], index: 13, kind: input, shape index: {}]
  %s14 = inlined_call_operand.vmem [shape: f32[2,1,32], index: 14, kind: input, shape index: {}]
  %s15 = inlined_call_operand.vmem [shape: f32[2,1,32], index: 15, kind: input, shape index: {}]
  %s16 = inlined_call_operand.vmem [shape: f32[2,1,32], index: 16, kind: input, shape index: {}]
  %s17 = inlined_call_operand.vmem [shape: f32[1,32], index: 17, kind: input, shape index: {}]
  %s18 = inlined_call_operand.vmem [shape: f32[1,32], index: 18, kind: input, shape index: {}]
  %s19 = inlined_call_operand.vmem [shape: f32[32,512], index: 19, kind: input, shape index: {}]
  %s20 = inlined_call_operand.hbm [shape: f32[16,32], index: 20, kind: output, shape index: {0}]
  %s21 = inlined_call_operand.vmem [shape: f32[2,16,32], index: 21, kind: output, shape index: {1}]
  %s22 = inlined_call_operand.hbm [shape: f32[2,512], index: 22, kind: output, shape index: {2}]
  %23 = xla_tuple %s20, %s21, %s22
  %s24 = sld [smem:[#allocation0]]
  $region133: #{student_forward.1} parent=0
    _
  %s26 = ssub.s32 1, %s24
  %s27 = scalar_select 0, %s26, %s24
  %s28 = sshll.u32 %s0, 4
  %s29 = int_to_ptr.vmem [resolvable:$true] %s28
  %31 = dma.vmem_to_smem %s29, 16, [#allocation4], [#allocation3]
  %32 = dma.done [#allocation3], 16
  %33 = sfence
  $region1: #{student_forward.1} parent=0
    #allocation5 [shape = 'u8[8192]{0}', space=vmem, size = 0x2000, scoped, tag = 'output window, operand 0, single buffered']
    #allocation6 [shape = 's32[2]{0}', space=sflag, size = 0x8, scoped, tag = 'scoped memory for student_forward.1']
    #allocation7 [shape = 'u8[4096]{0}', space=vmem, size = 0x1000, scoped, tag = 'output window, operand 2, single buffered']
    #allocation8 [shape = 's32[1]{0}', space=sflag, size = 0x4, scoped, tag = 'scoped memory for student_forward.1']
    %34 = vsyncpa [#allocation6], 0
    %35 = vsyncpa [#allocation8], 0
    loop: start=0, step=1, limit=4
    $region2: #{student_forward.1} parent=1 // loop_pre_header
      _
    $region3: #{student_forward.1} parent=1 // loop_header
      %s37 = sphi 0, %s41
      %p38 = scmp.ge.s32.totalorder %s37, 4
      %s45 = sphi 0, %s45
      %s47 = sphi 0, %s45
      %s48 = sphi 0, %s47
      %s62 = sphi 0, %s48
      %s66 = sphi 0, %s66
      %s68 = sphi 0, %s66
      %s69 = sphi 0, %s68
      %s83 = sphi 0, %s69
      %s87 = sphi 0, %s87
      %s89 = sphi 0, %s87
      %s90 = sphi 0, %s89
      %s104 = sphi 0, %s90
      %s108 = sphi 0, %s108
      %s110 = sphi 0, %s108
      %s111 = sphi 0, %s110
      %s125 = sphi 0, %s111
      %s131 = sphi 0, %s133
      %s134 = sphi 0, %s131
      %s135 = sphi 0, %s134
      %s151 = sphi 0, %s135
      %s157 = sphi 0, %s159
      %s160 = sphi 0, %s157
      %s161 = sphi 0, %s160
      %s177 = sphi 0, %s161
      %s183 = sphi 0, %s185
      %s186 = sphi 0, %s183
      %s187 = sphi 0, %s186
      %s203 = sphi 0, %s187
      %s209 = sphi 0, %s211
      %s212 = sphi 0, %s209
      %s213 = sphi 0, %s212
      %s229 = sphi 0, %s213
      %s235 = sphi 0, %s237
      %s238 = sphi 0, %s235
      %s239 = sphi 0, %s238
      %s255 = sphi 0, %s239
      %s261 = sphi 0, %s263
      %s264 = sphi 0, %s261
      %s265 = sphi 0, %s264
      %s281 = sphi 0, %s265
      %s287 = sphi 0, %s289
      %s290 = sphi 0, %s287
      %s291 = sphi 0, %s290
      %s307 = sphi 0, %s291
      %s313 = sphi 0, %s315
      %s316 = sphi 0, %s313
      %s317 = sphi 0, %s316
      %s333 = sphi 0, %s317
      %s339 = sphi 0, %s341
      %s342 = sphi 0, %s339
      %s343 = sphi 0, %s342
      %s359 = sphi 0, %s343
      %s365 = sphi 0, %s367
      %s368 = sphi 0, %s365
      %s369 = sphi 0, %s368
      %s385 = sphi 0, %s369
      %s391 = sphi 0, %s393
      %s394 = sphi 0, %s391
      %s395 = sphi 0, %s394
      %s411 = sphi 0, %s395
      %s417 = sphi 0, %s419
      %s420 = sphi 0, %s417
      %s421 = sphi 0, %s420
      %s437 = sphi 0, %s421
      %s441 = sphi 0, %s441
      %s443 = sphi 0, %s441
      %s444 = sphi 0, %s443
      %s458 = sphi 0, %s444
      %s462 = sphi 0, %s462
      %s464 = sphi 0, %s462
      %s465 = sphi 0, %s464
      %s479 = sphi 0, %s465
      %s483 = sphi 0, %s483
      %s485 = sphi 0, %s483
      %s486 = sphi 0, %s485
      %s500 = sphi 0, %s486
      %s504 = sphi 0, %s504
      %s506 = sphi 0, %s504
      %s507 = sphi 0, %s506
      %s521 = sphi 0, %s507
      %s527 = sphi 0, %s529
      %s530 = sphi 0, %s527
      %s531 = sphi 0, %s530
      %s547 = sphi 0, %s531
      %s551 = sphi 0, %s551
      %s553 = sphi 0, %s551
      %s554 = sphi 0, %s553
      %s568 = sphi 0, %s554
    $region4: #{student_forward.1} parent=1 // loop_header_branch
      %40 = sbr.rel (%p38) target = $region8
    $region5: #{student_forward.1} parent=1 // loop_body
      %s42 = ssub.s32 %s37, 1
      %s43 = ssub.s32 %s37, 2
      %s44 = sadd.s32 %s37, 1
      %s46 = sadd.s32 %s45, 1
      %p49 = scmp.eq.s32.totalorder %s37, 1
      %p50 = scmp.ne.s32.totalorder %s45, %s47
      %p51 = scmp.eq.s32.totalorder %s37, 0
      %p52 = por %p50, %p51
      %p53 = scmp.ne.s32.totalorder %s45, %s47
      %p54 = scmp.eq.s32.totalorder %s42, 1
      %p55 = por %p53, %p54
      %p56 = scmp.ne.s32.totalorder %s47, %s48
      %p57 = scmp.eq.s32.totalorder %s42, 0
      %p58 = por %p56, %p57
      %p59 = scmp.ne.s32.totalorder %s47, %s48
      %p60 = scmp.eq.s32.totalorder %s43, 1
      %p61 = por %p59, %p60
      %p63 = scmp.ne.s32.totalorder %s48, %s62
      %p64 = scmp.eq.s32.totalorder %s43, 0
      %p65 = por %p63, %p64
      %s67 = sadd.s32 %s66, 1
      %p70 = scmp.eq.s32.totalorder %s37, 1
      %p71 = scmp.ne.s32.totalorder %s66, %s68
      %p72 = scmp.eq.s32.totalorder %s37, 0
      %p73 = por %p71, %p72
      %p74 = scmp.ne.s32.totalorder %s66, %s68
      %p75 = scmp.eq.s32.totalorder %s42, 1
      %p76 = por %p74, %p75
      %p77 = scmp.ne.s32.totalorder %s68, %s69
      %p78 = scmp.eq.s32.totalorder %s42, 0
      %p79 = por %p77, %p78
      %p80 = scmp.ne.s32.totalorder %s68, %s69
      %p81 = scmp.eq.s32.totalorder %s43, 1
      %p82 = por %p80, %p81
      %p84 = scmp.ne.s32.totalorder %s69, %s83
      %p85 = scmp.eq.s32.totalorder %s43, 0
      %p86 = por %p84, %p85
      %s88 = sadd.s32 %s87, 1
      %p91 = scmp.eq.s32.totalorder %s37, 1
      %p92 = scmp.ne.s32.totalorder %s87, %s89
      %p93 = scmp.eq.s32.totalorder %s37, 0
      %p94 = por %p92, %p93
      %p95 = scmp.ne.s32.totalorder %s87, %s89
      %p96 = scmp.eq.s32.totalorder %s42, 1
      %p97 = por %p95, %p96
      %p98 = scmp.ne.s32.totalorder %s89, %s90
      %p99 = scmp.eq.s32.totalorder %s42, 0
      %p100 = por %p98, %p99
      %p101 = scmp.ne.s32.totalorder %s89, %s90
      %p102 = scmp.eq.s32.totalorder %s43, 1
      %p103 = por %p101, %p102
      %p105 = scmp.ne.s32.totalorder %s90, %s104
      %p106 = scmp.eq.s32.totalorder %s43, 0
      %p107 = por %p105, %p106
      %s109 = sadd.s32 %s108, 1
      %p112 = scmp.eq.s32.totalorder %s37, 1
      %p113 = scmp.ne.s32.totalorder %s108, %s110
      %p114 = scmp.eq.s32.totalorder %s37, 0
      %p115 = por %p113, %p114
      %p116 = scmp.ne.s32.totalorder %s108, %s110
      %p117 = scmp.eq.s32.totalorder %s42, 1
      %p118 = por %p116, %p117
      %p119 = scmp.ne.s32.totalorder %s110, %s111
      %p120 = scmp.eq.s32.totalorder %s42, 0
      %p121 = por %p119, %p120
      %p122 = scmp.ne.s32.totalorder %s110, %s111
      %p123 = scmp.eq.s32.totalorder %s43, 1
      %p124 = por %p122, %p123
      %p126 = scmp.ne.s32.totalorder %s111, %s125
      %p127 = scmp.eq.s32.totalorder %s43, 0
      %p128 = por %p126, %p127
      %s129 = ssub.s32 %s37, %s44
      %p130 = scmp.eq.s32.totalorder %s129, 0
      %s132 = sadd.s32 %s131, 1
      %s133 = scalar_select %p130, %s131, %s132
      %p136 = pneg %p130
      %p137 = scmp.eq.s32.totalorder %s37, 1
      %p138 = por %p136, %p137
      %p139 = scmp.ne.s32.totalorder %s131, %s134
      %p140 = scmp.eq.s32.totalorder %s37, 0
      %p141 = por %p139, %p140
      %p142 = scmp.ne.s32.totalorder %s131, %s134
      %p143 = scmp.eq.s32.totalorder %s42, 1
      %p144 = por %p142, %p143
      %p145 = scmp.ne.s32.totalorder %s134, %s135
      %p146 = scmp.eq.s32.totalorder %s42, 0
      %p147 = por %p145, %p146
      %p148 = scmp.ne.s32.totalorder %s134, %s135
      %p149 = scmp.eq.s32.totalorder %s43, 1
      %p150 = por %p148, %p149
      %p152 = scmp.ne.s32.totalorder %s135, %s151
      %p153 = scmp.eq.s32.totalorder %s43, 0
      %p154 = por %p152, %p153
      %s155 = ssub.s32 %s37, %s44
      %p156 = scmp.eq.s32.totalorder %s155, 0
      %s158 = sadd.s32 %s157, 1
      %s159 = scalar_select %p156, %s157, %s158
      %p162 = pneg %p156
      %p163 = scmp.eq.s32.totalorder %s37, 1
      %p164 = por %p162, %p163
      %p165 = scmp.ne.s32.totalorder %s157, %s160
      %p166 = scmp.eq.s32.totalorder %s37, 0
      %p167 = por %p165, %p166
      %p168 = scmp.ne.s32.totalorder %s157, %s160
      %p169 = scmp.eq.s32.totalorder %s42, 1
      %p170 = por %p168, %p169
      %p171 = scmp.ne.s32.totalorder %s160, %s161
      %p172 = scmp.eq.s32.totalorder %s42, 0
      %p173 = por %p171, %p172
      %p174 = scmp.ne.s32.totalorder %s160, %s161
      %p175 = scmp.eq.s32.totalorder %s43, 1
      %p176 = por %p174, %p175
      %p178 = scmp.ne.s32.totalorder %s161, %s177
      %p179 = scmp.eq.s32.totalorder %s43, 0
      %p180 = por %p178, %p179
      %s181 = ssub.s32 %s37, %s44
      %p182 = scmp.eq.s32.totalorder %s181, 0
      %s184 = sadd.s32 %s183, 1
      %s185 = scalar_select %p182, %s183, %s184
      %p188 = pneg %p182
      %p189 = scmp.eq.s32.totalorder %s37, 1
      %p190 = por %p188, %p189
      %p191 = scmp.ne.s32.totalorder %s183, %s186
      %p192 = scmp.eq.s32.totalorder %s37, 0
      %p193 = por %p191, %p192
      %p194 = scmp.ne.s32.totalorder %s183, %s186
      %p195 = scmp.eq.s32.totalorder %s42, 1
      %p196 = por %p194, %p195
      %p197 = scmp.ne.s32.totalorder %s186, %s187
      %p198 = scmp.eq.s32.totalorder %s42, 0
      %p199 = por %p197, %p198
      %p200 = scmp.ne.s32.totalorder %s186, %s187
      %p201 = scmp.eq.s32.totalorder %s43, 1
      %p202 = por %p200, %p201
      %p204 = scmp.ne.s32.totalorder %s187, %s203
      %p205 = scmp.eq.s32.totalorder %s43, 0
      %p206 = por %p204, %p205
      %s207 = ssub.s32 %s37, %s44
      %p208 = scmp.eq.s32.totalorder %s207, 0
      %s210 = sadd.s32 %s209, 1
      %s211 = scalar_select %p208, %s209, %s210
      %p214 = pneg %p208
      %p215 = scmp.eq.s32.totalorder %s37, 1
      %p216 = por %p214, %p215
      %p217 = scmp.ne.s32.totalorder %s209, %s212
      %p218 = scmp.eq.s32.totalorder %s37, 0
      %p219 = por %p217, %p218
      %p220 = scmp.ne.s32.totalorder %s209, %s212
      %p221 = scmp.eq.s32.totalorder %s42, 1
      %p222 = por %p220, %p221
      %p223 = scmp.ne.s32.totalorder %s212, %s213
      %p224 = scmp.eq.s32.totalorder %s42, 0
      %p225 = por %p223, %p224
      %p226 = scmp.ne.s32.totalorder %s212, %s213
      %p227 = scmp.eq.s32.totalorder %s43, 1
      %p228 = por %p226, %p227
      %p230 = scmp.ne.s32.totalorder %s213, %s229
      %p231 = scmp.eq.s32.totalorder %s43, 0
      %p232 = por %p230, %p231
      %s233 = ssub.s32 %s37, %s44
      %p234 = scmp.eq.s32.totalorder %s233, 0
      %s236 = sadd.s32 %s235, 1
      %s237 = scalar_select %p234, %s235, %s236
      %p240 = pneg %p234
      %p241 = scmp.eq.s32.totalorder %s37, 1
      %p242 = por %p240, %p241
      %p243 = scmp.ne.s32.totalorder %s235, %s238
      %p244 = scmp.eq.s32.totalorder %s37, 0
      %p245 = por %p243, %p244
      %p246 = scmp.ne.s32.totalorder %s235, %s238
      %p247 = scmp.eq.s32.totalorder %s42, 1
      %p248 = por %p246, %p247
      %p249 = scmp.ne.s32.totalorder %s238, %s239
      %p250 = scmp.eq.s32.totalorder %s42, 0
      %p251 = por %p249, %p250
      %p252 = scmp.ne.s32.totalorder %s238, %s239
      %p253 = scmp.eq.s32.totalorder %s43, 1
      %p254 = por %p252, %p253
      %p256 = scmp.ne.s32.totalorder %s239, %s255
      %p257 = scmp.eq.s32.totalorder %s43, 0
      %p258 = por %p256, %p257
      %s259 = ssub.s32 %s37, %s44
      %p260 = scmp.eq.s32.totalorder %s259, 0
      %s262 = sadd.s32 %s261, 1
      %s263 = scalar_select %p260, %s261, %s262
      %p266 = pneg %p260
      %p267 = scmp.eq.s32.totalorder %s37, 1
      %p268 = por %p266, %p267
      %p269 = scmp.ne.s32.totalorder %s261, %s264
      %p270 = scmp.eq.s32.totalorder %s37, 0
      %p271 = por %p269, %p270
      %p272 = scmp.ne.s32.totalorder %s261, %s264
      %p273 = scmp.eq.s32.totalorder %s42, 1
      %p274 = por %p272, %p273
      %p275 = scmp.ne.s32.totalorder %s264, %s265
      %p276 = scmp.eq.s32.totalorder %s42, 0
      %p277 = por %p275, %p276
      %p278 = scmp.ne.s32.totalorder %s264, %s265
      %p279 = scmp.eq.s32.totalorder %s43, 1
      %p280 = por %p278, %p279
      %p282 = scmp.ne.s32.totalorder %s265, %s281
      %p283 = scmp.eq.s32.totalorder %s43, 0
      %p284 = por %p282, %p283
      %s285 = ssub.s32 %s37, %s44
      %p286 = scmp.eq.s32.totalorder %s285, 0
      %s288 = sadd.s32 %s287, 1
      %s289 = scalar_select %p286, %s287, %s288
      %p292 = pneg %p286
      %p293 = scmp.eq.s32.totalorder %s37, 1
      %p294 = por %p292, %p293
      %p295 = scmp.ne.s32.totalorder %s287, %s290
      %p296 = scmp.eq.s32.totalorder %s37, 0
      %p297 = por %p295, %p296
      %p298 = scmp.ne.s32.totalorder %s287, %s290
      %p299 = scmp.eq.s32.totalorder %s42, 1
      %p300 = por %p298, %p299
      %p301 = scmp.ne.s32.totalorder %s290, %s291
      %p302 = scmp.eq.s32.totalorder %s42, 0
      %p303 = por %p301, %p302
      %p304 = scmp.ne.s32.totalorder %s290, %s291
      %p305 = scmp.eq.s32.totalorder %s43, 1
      %p306 = por %p304, %p305
      %p308 = scmp.ne.s32.totalorder %s291, %s307
      %p309 = scmp.eq.s32.totalorder %s43, 0
      %p310 = por %p308, %p309
      %s311 = ssub.s32 %s37, %s44
      %p312 = scmp.eq.s32.totalorder %s311, 0
      %s314 = sadd.s32 %s313, 1
      %s315 = scalar_select %p312, %s313, %s314
      %p318 = pneg %p312
      %p319 = scmp.eq.s32.totalorder %s37, 1
      %p320 = por %p318, %p319
      %p321 = scmp.ne.s32.totalorder %s313, %s316
      %p322 = scmp.eq.s32.totalorder %s37, 0
      %p323 = por %p321, %p322
      %p324 = scmp.ne.s32.totalorder %s313, %s316
      %p325 = scmp.eq.s32.totalorder %s42, 1
      %p326 = por %p324, %p325
      %p327 = scmp.ne.s32.totalorder %s316, %s317
      %p328 = scmp.eq.s32.totalorder %s42, 0
      %p329 = por %p327, %p328
      %p330 = scmp.ne.s32.totalorder %s316, %s317
      %p331 = scmp.eq.s32.totalorder %s43, 1
      %p332 = por %p330, %p331
      %p334 = scmp.ne.s32.totalorder %s317, %s333
      %p335 = scmp.eq.s32.totalorder %s43, 0
      %p336 = por %p334, %p335
      %s337 = ssub.s32 %s37, %s44
      %p338 = scmp.eq.s32.totalorder %s337, 0
      %s340 = sadd.s32 %s339, 1
      %s341 = scalar_select %p338, %s339, %s340
      %p344 = pneg %p338
      %p345 = scmp.eq.s32.totalorder %s37, 1
      %p346 = por %p344, %p345
      %p347 = scmp.ne.s32.totalorder %s339, %s342
      %p348 = scmp.eq.s32.totalorder %s37, 0
      %p349 = por %p347, %p348
      %p350 = scmp.ne.s32.totalorder %s339, %s342
      %p351 = scmp.eq.s32.totalorder %s42, 1
      %p352 = por %p350, %p351
      %p353 = scmp.ne.s32.totalorder %s342, %s343
      %p354 = scmp.eq.s32.totalorder %s42, 0
      %p355 = por %p353, %p354
      %p356 = scmp.ne.s32.totalorder %s342, %s343
      %p357 = scmp.eq.s32.totalorder %s43, 1
      %p358 = por %p356, %p357
      %p360 = scmp.ne.s32.totalorder %s343, %s359
      %p361 = scmp.eq.s32.totalorder %s43, 0
      %p362 = por %p360, %p361
      %s363 = ssub.s32 %s37, %s44
      %p364 = scmp.eq.s32.totalorder %s363, 0
      %s366 = sadd.s32 %s365, 1
      %s367 = scalar_select %p364, %s365, %s366
      %p370 = pneg %p364
      %p371 = scmp.eq.s32.totalorder %s37, 1
      %p372 = por %p370, %p371
      %p373 = scmp.ne.s32.totalorder %s365, %s368
      %p374 = scmp.eq.s32.totalorder %s37, 0
      %p375 = por %p373, %p374
      %p376 = scmp.ne.s32.totalorder %s365, %s368
      %p377 = scmp.eq.s32.totalorder %s42, 1
      %p378 = por %p376, %p377
      %p379 = scmp.ne.s32.totalorder %s368, %s369
      %p380 = scmp.eq.s32.totalorder %s42, 0
      %p381 = por %p379, %p380
      %p382 = scmp.ne.s32.totalorder %s368, %s369
      %p383 = scmp.eq.s32.totalorder %s43, 1
      %p384 = por %p382, %p383
      %p386 = scmp.ne.s32.totalorder %s369, %s385
      %p387 = scmp.eq.s32.totalorder %s43, 0
      %p388 = por %p386, %p387
      %s389 = ssub.s32 %s37, %s44
      %p390 = scmp.eq.s32.totalorder %s389, 0
      %s392 = sadd.s32 %s391, 1
      %s393 = scalar_select %p390, %s391, %s392
      %p396 = pneg %p390
      %p397 = scmp.eq.s32.totalorder %s37, 1
      %p398 = por %p396, %p397
      %p399 = scmp.ne.s32.totalorder %s391, %s394
      %p400 = scmp.eq.s32.totalorder %s37, 0
      %p401 = por %p399, %p400
      %p402 = scmp.ne.s32.totalorder %s391, %s394
      %p403 = scmp.eq.s32.totalorder %s42, 1
      %p404 = por %p402, %p403
      %p405 = scmp.ne.s32.totalorder %s394, %s395
      %p406 = scmp.eq.s32.totalorder %s42, 0
      %p407 = por %p405, %p406
      %p408 = scmp.ne.s32.totalorder %s394, %s395
      %p409 = scmp.eq.s32.totalorder %s43, 1
      %p410 = por %p408, %p409
      %p412 = scmp.ne.s32.totalorder %s395, %s411
      %p413 = scmp.eq.s32.totalorder %s43, 0
      %p414 = por %p412, %p413
      %s415 = ssub.s32 %s37, %s44
      %p416 = scmp.eq.s32.totalorder %s415, 0
      %s418 = sadd.s32 %s417, 1
      %s419 = scalar_select %p416, %s417, %s418
      %p422 = pneg %p416
      %p423 = scmp.eq.s32.totalorder %s37, 1
      %p424 = por %p422, %p423
      %p425 = scmp.ne.s32.totalorder %s417, %s420
      %p426 = scmp.eq.s32.totalorder %s37, 0
      %p427 = por %p425, %p426
      %p428 = scmp.ne.s32.totalorder %s417, %s420
      %p429 = scmp.eq.s32.totalorder %s42, 1
      %p430 = por %p428, %p429
      %p431 = scmp.ne.s32.totalorder %s420, %s421
      %p432 = scmp.eq.s32.totalorder %s42, 0
      %p433 = por %p431, %p432
      %p434 = scmp.ne.s32.totalorder %s420, %s421
      %p435 = scmp.eq.s32.totalorder %s43, 1
      %p436 = por %p434, %p435
      %p438 = scmp.ne.s32.totalorder %s421, %s437
      %p439 = scmp.eq.s32.totalorder %s43, 0
      %p440 = por %p438, %p439
      %s442 = sadd.s32 %s441, 1
      %p445 = scmp.eq.s32.totalorder %s37, 1
      %p446 = scmp.ne.s32.totalorder %s441, %s443
      %p447 = scmp.eq.s32.totalorder %s37, 0
      %p448 = por %p446, %p447
      %p449 = scmp.ne.s32.totalorder %s441, %s443
      %p450 = scmp.eq.s32.totalorder %s42, 1
      %p451 = por %p449, %p450
      %p452 = scmp.ne.s32.totalorder %s443, %s444
      %p453 = scmp.eq.s32.totalorder %s42, 0
      %p454 = por %p452, %p453
      %p455 = scmp.ne.s32.totalorder %s443, %s444
      %p456 = scmp.eq.s32.totalorder %s43, 1
      %p457 = por %p455, %p456
      %p459 = scmp.ne.s32.totalorder %s444, %s458
      %p460 = scmp.eq.s32.totalorder %s43, 0
      %p461 = por %p459, %p460
      %s463 = sadd.s32 %s462, 1
      %p466 = scmp.eq.s32.totalorder %s37, 1
      %p467 = scmp.ne.s32.totalorder %s462, %s464
      %p468 = scmp.eq.s32.totalorder %s37, 0
      %p469 = por %p467, %p468
      %p470 = scmp.ne.s32.totalorder %s462, %s464
      %p471 = scmp.eq.s32.totalorder %s42, 1
      %p472 = por %p470, %p471
      %p473 = scmp.ne.s32.totalorder %s464, %s465
      %p474 = scmp.eq.s32.totalorder %s42, 0
      %p475 = por %p473, %p474
      %p476 = scmp.ne.s32.totalorder %s464, %s465
      %p477 = scmp.eq.s32.totalorder %s43, 1
      %p478 = por %p476, %p477
      %p480 = scmp.ne.s32.totalorder %s465, %s479
      %p481 = scmp.eq.s32.totalorder %s43, 0
      %p482 = por %p480, %p481
      %s484 = sadd.s32 %s483, 1
      %p487 = scmp.eq.s32.totalorder %s37, 1
      %p488 = scmp.ne.s32.totalorder %s483, %s485
      %p489 = scmp.eq.s32.totalorder %s37, 0
      %p490 = por %p488, %p489
      %p491 = scmp.ne.s32.totalorder %s483, %s485
      %p492 = scmp.eq.s32.totalorder %s42, 1
      %p493 = por %p491, %p492
      %p494 = scmp.ne.s32.totalorder %s485, %s486
      %p495 = scmp.eq.s32.totalorder %s42, 0
      %p496 = por %p494, %p495
      %p497 = scmp.ne.s32.totalorder %s485, %s486
      %p498 = scmp.eq.s32.totalorder %s43, 1
      %p499 = por %p497, %p498
      %p501 = scmp.ne.s32.totalorder %s486, %s500
      %p502 = scmp.eq.s32.totalorder %s43, 0
      %p503 = por %p501, %p502
      %s505 = sadd.s32 %s504, 1
      %p508 = scmp.eq.s32.totalorder %s37, 1
      %p509 = scmp.ne.s32.totalorder %s504, %s506
      %p510 = scmp.eq.s32.totalorder %s37, 0
      %p511 = por %p509, %p510
      %p512 = scmp.ne.s32.totalorder %s504, %s506
      %p513 = scmp.eq.s32.totalorder %s42, 1
      %p514 = por %p512, %p513
      %p515 = scmp.ne.s32.totalorder %s506, %s507
      %p516 = scmp.eq.s32.totalorder %s42, 0
      %p517 = por %p515, %p516
      %p518 = scmp.ne.s32.totalorder %s506, %s507
      %p519 = scmp.eq.s32.totalorder %s43, 1
      %p520 = por %p518, %p519
      %p522 = scmp.ne.s32.totalorder %s507, %s521
      %p523 = scmp.eq.s32.totalorder %s43, 0
      %p524 = por %p522, %p523
      %s525 = ssub.s32 %s37, %s44
      %p526 = scmp.eq.s32.totalorder %s525, 0
      %s528 = sadd.s32 %s527, 1
      %s529 = scalar_select %p526, %s527, %s528
      %p532 = pneg %p526
      %p533 = scmp.eq.s32.totalorder %s37, 1
      %p534 = por %p532, %p533
      %p535 = scmp.ne.s32.totalorder %s527, %s530
      %p536 = scmp.eq.s32.totalorder %s37, 0
      %p537 = por %p535, %p536
      %p538 = scmp.ne.s32.totalorder %s527, %s530
      %p539 = scmp.eq.s32.totalorder %s42, 1
      %p540 = por %p538, %p539
      %p541 = scmp.ne.s32.totalorder %s530, %s531
      %p542 = scmp.eq.s32.totalorder %s42, 0
      %p543 = por %p541, %p542
      %p544 = scmp.ne.s32.totalorder %s530, %s531
      %p545 = scmp.eq.s32.totalorder %s43, 1
      %p546 = por %p544, %p545
      %p548 = scmp.ne.s32.totalorder %s531, %s547
      %p549 = scmp.eq.s32.totalorder %s43, 0
      %p550 = por %p548, %p549
      %s552 = sadd.s32 %s551, 1
      %p555 = scmp.eq.s32.totalorder %s37, 1
      %p556 = scmp.ne.s32.totalorder %s551, %s553
      %p557 = scmp.eq.s32.totalorder %s37, 0
      %p558 = por %p556, %p557
      %p559 = scmp.ne.s32.totalorder %s551, %s553
      %p560 = scmp.eq.s32.totalorder %s42, 1
      %p561 = por %p559, %p560
      %p562 = scmp.ne.s32.totalorder %s553, %s554
      %p563 = scmp.eq.s32.totalorder %s42, 0
      %p564 = por %p562, %p563
      %p565 = scmp.ne.s32.totalorder %s553, %s554
      %p566 = scmp.eq.s32.totalorder %s43, 1
      %p567 = por %p565, %p566
      %p569 = scmp.ne.s32.totalorder %s554, %s568
      %p570 = scmp.eq.s32.totalorder %s43, 0
      %p571 = por %p569, %p570
      %p572 = scmp.le.s32.totalorder 1, %s37
      %p573 = scmp.lt.s32.totalorder %s37, 3
      %p574 = pnand %p572, %p573
      %p575 = pneg %p574
      // Predicated region
      $region9: #{student_forward.1} parent=5 // pred_check
        _
      $region10: #{student_forward.1} parent=5 // pred_check_branch
        %577 = sbr.rel (%p574) target = $region12
      $region11: #{student_forward.1} parent=5 // pred_region
        %s578 = ssub.s32 %s37, 1
        // Predicated region
        $region13: #{student_forward.1} parent=11 // pred_check
          %p579 = pneg %p58
        $region14: #{student_forward.1} parent=11 // pred_check_branch
          %581 = sbr.rel (%p579) target = $region16
        $region15: #{student_forward.1} parent=11 // pred_region
          _
        $region16: #{student_forward.1} parent=11 // pred_fallthru
          _
        // Predicated region
        $region17: #{student_forward.1} parent=11 // pred_check
          %p582 = pneg %p79
        $region18: #{student_forward.1} parent=11 // pred_check_branch
          %584 = sbr.rel (%p582) target = $region20
        $region19: #{student_forward.1} parent=11 // pred_region
          _
        $region20: #{student_forward.1} parent=11 // pred_fallthru
          _
        // Predicated region
        $region21: #{student_forward.1} parent=11 // pred_check
          %p585 = pneg %p100
        $region22: #{student_forward.1} parent=11 // pred_check_branch
          %587 = sbr.rel (%p585) target = $region24
        $region23: #{student_forward.1} parent=11 // pred_region
          _
        $region24: #{student_forward.1} parent=11 // pred_fallthru
          _
        // Predicated region
        $region25: #{student_forward.1} parent=11 // pred_check
          %p588 = pneg %p121
        $region26: #{student_forward.1} parent=11 // pred_check_branch
          %590 = sbr.rel (%p588) target = $region28
        $region27: #{student_forward.1} parent=11 // pred_region
          _
        $region28: #{student_forward.1} parent=11 // pred_fallthru
          _
        // Predicated region
        $region29: #{student_forward.1} parent=11 // pred_check
          %p591 = pneg %p454
        $region30: #{student_forward.1} parent=11 // pred_check_branch
          %593 = sbr.rel (%p591) target = $region32
        $region31: #{student_forward.1} parent=11 // pred_region
          _
        $region32: #{student_forward.1} parent=11 // pred_fallthru
          _
        // Predicated region
        $region33: #{student_forward.1} parent=11 // pred_check
          %p594 = pneg %p475
        $region34: #{student_forward.1} parent=11 // pred_check_branch
          %596 = sbr.rel (%p594) target = $region36
        $region35: #{student_forward.1} parent=11 // pred_region
          _
        $region36: #{student_forward.1} parent=11 // pred_fallthru
          _
        // Predicated region
        $region37: #{student_forward.1} parent=11 // pred_check
          %p597 = pneg %p496
        $region38: #{student_forward.1} parent=11 // pred_check_branch
          %599 = sbr.rel (%p597) target = $region40
        $region39: #{student_forward.1} parent=11 // pred_region
          _
        $region40: #{student_forward.1} parent=11 // pred_fallthru
          _
      $region12: #{student_forward.1} parent=5 // pred_fallthru
        _
      %p600 = scmp.lt.s32.totalorder %s37, 2
      // Predicated region
      $region41: #{student_forward.1} parent=5 // pred_check
        %p601 = pneg %p600
      $region42: #{student_forward.1} parent=5 // pred_check_branch
        %603 = sbr.rel (%p601) target = $region44
      $region43: #{student_forward.1} parent=5 // pred_region
        // Predicated region
        $region45: #{student_forward.1} parent=43 // pred_check
          %p604 = pneg %p141
        $region46: #{student_forward.1} parent=43 // pred_check_branch
          %606 = sbr.rel (%p604) target = $region48
        $region47: #{student_forward.1} parent=43 // pred_region
          %p607 = scmp.lt.s32.totalorder %s37, 1
          %s608 = scalar_select %p607, %s37, 1
          %s609 = smul.addr %s608, 4
          %s610 = smul.addr %s609, 8
          %s611 = scalar_lea.vmem %s5, %s610
        $region48: #{student_forward.1} parent=43 // pred_fallthru
          _
        // Predicated region
        $region49: #{student_forward.1} parent=43 // pred_check
          %p612 = pneg %p167
        $region50: #{student_forward.1} parent=43 // pred_check_branch
          %614 = sbr.rel (%p612) target = $region52
        $region51: #{student_forward.1} parent=43 // pred_region
          %p615 = scmp.lt.s32.totalorder %s37, 1
          %s616 = scalar_select %p615, %s37, 1
          %s617 = scalar_lea.vmem %s6, %s616
        $region52: #{student_forward.1} parent=43 // pred_fallthru
          _
        // Predicated region
        $region53: #{student_forward.1} parent=43 // pred_check
          %p618 = pneg %p193
        $region54: #{student_forward.1} parent=43 // pred_check_branch
          %620 = sbr.rel (%p618) target = $region56
        $region55: #{student_forward.1} parent=43 // pred_region
          %p621 = scmp.lt.s32.totalorder %s37, 1
          %s622 = scalar_select %p621, %s37, 1
          %s623 = smul.addr %s622, 4
          %s624 = smul.addr %s623, 8
          %s625 = scalar_lea.vmem %s7, %s624
        $region56: #{student_forward.1} parent=43 // pred_fallthru
          _
        // Predicated region
        $region57: #{student_forward.1} parent=43 // pred_check
          %p626 = pneg %p219
        $region58: #{student_forward.1} parent=43 // pred_check_branch
          %628 = sbr.rel (%p626) target = $region60
        $region59: #{student_forward.1} parent=43 // pred_region
          %p629 = scmp.lt.s32.totalorder %s37, 1
          %s630 = scalar_select %p629, %s37, 1
          %s631 = scalar_lea.vmem %s8, %s630
        $region60: #{student_forward.1} parent=43 // pred_fallthru
          _
        // Predicated region
        $region61: #{student_forward.1} parent=43 // pred_check
          %p632 = pneg %p245
        $region62: #{student_forward.1} parent=43 // pred_check_branch
          %634 = sbr.rel (%p632) target = $region64
        $region63: #{student_forward.1} parent=43 // pred_region
          %p635 = scmp.lt.s32.totalorder %s37, 1
          %s636 = scalar_select %p635, %s37, 1
          %s637 = scalar_lea.vmem %s9, %s636
        $region64: #{student_forward.1} parent=43 // pred_fallthru
          _
        // Predicated region
        $region65: #{student_forward.1} parent=43 // pred_check
          %p638 = pneg %p271
        $region66: #{student_forward.1} parent=43 // pred_check_branch
          %640 = sbr.rel (%p638) target = $region68
        $region67: #{student_forward.1} parent=43 // pred_region
          %p641 = scmp.lt.s32.totalorder %s37, 1
          %s642 = scalar_select %p641, %s37, 1
          %s643 = scalar_lea.vmem %s10, %s642
        $region68: #{student_forward.1} parent=43 // pred_fallthru
          _
        // Predicated region
        $region69: #{student_forward.1} parent=43 // pred_check
          %p644 = pneg %p297
        $region70: #{student_forward.1} parent=43 // pred_check_branch
          %646 = sbr.rel (%p644) target = $region72
        $region71: #{student_forward.1} parent=43 // pred_region
          %p647 = scmp.lt.s32.totalorder %s37, 1
          %s648 = scalar_select %p647, %s37, 1
          %s649 = smul.addr %s648, 4
          %s650 = smul.addr %s649, 8
          %s651 = scalar_lea.vmem %s11, %s650
        $region72: #{student_forward.1} parent=43 // pred_fallthru
          _
        // Predicated region
        $region73: #{student_forward.1} parent=43 // pred_check
          %p652 = pneg %p323
        $region74: #{student_forward.1} parent=43 // pred_check_branch
          %654 = sbr.rel (%p652) target = $region76
        $region75: #{student_forward.1} parent=43 // pred_region
          %p655 = scmp.lt.s32.totalorder %s37, 1
          %s656 = scalar_select %p655, %s37, 1
          %s657 = scalar_lea.vmem %s12, %s656
        $region76: #{student_forward.1} parent=43 // pred_fallthru
          _
        // Predicated region
        $region77: #{student_forward.1} parent=43 // pred_check
          %p658 = pneg %p349
        $region78: #{student_forward.1} parent=43 // pred_check_branch
          %660 = sbr.rel (%p658) target = $region80
        $region79: #{student_forward.1} parent=43 // pred_region
          %p661 = scmp.lt.s32.totalorder %s37, 1
          %s662 = scalar_select %p661, %s37, 1
          %s663 = smul.addr %s662, 8
          %s664 = smul.addr %s663, 8
          %s665 = scalar_lea.vmem %s13, %s664
        $region80: #{student_forward.1} parent=43 // pred_fallthru
          _
        // Predicated region
        $region81: #{student_forward.1} parent=43 // pred_check
          %p666 = pneg %p375
        $region82: #{student_forward.1} parent=43 // pred_check_branch
          %668 = sbr.rel (%p666) target = $region84
        $region83: #{student_forward.1} parent=43 // pred_region
          %p669 = scmp.lt.s32.totalorder %s37, 1
          %s670 = scalar_select %p669, %s37, 1
          %s671 = scalar_lea.vmem %s14, %s670
        $region84: #{student_forward.1} parent=43 // pred_fallthru
          _
        // Predicated region
        $region85: #{student_forward.1} parent=43 // pred_check
          %p672 = pneg %p401
        $region86: #{student_forward.1} parent=43 // pred_check_branch
          %674 = sbr.rel (%p672) target = $region88
        $region87: #{student_forward.1} parent=43 // pred_region
          %p675 = scmp.lt.s32.totalorder %s37, 1
          %s676 = scalar_select %p675, %s37, 1
          %s677 = scalar_lea.vmem %s15, %s676
        $region88: #{student_forward.1} parent=43 // pred_fallthru
          _
        // Predicated region
        $region89: #{student_forward.1} parent=43 // pred_check
          %p678 = pneg %p427
        $region90: #{student_forward.1} parent=43 // pred_check_branch
          %680 = sbr.rel (%p678) target = $region92
        $region91: #{student_forward.1} parent=43 // pred_region
          %p681 = scmp.lt.s32.totalorder %s37, 1
          %s682 = scalar_select %p681, %s37, 1
          %s683 = scalar_lea.vmem %s16, %s682
        $region92: #{student_forward.1} parent=43 // pred_fallthru
          _
      $region44: #{student_forward.1} parent=5 // pred_fallthru
        _
      %p684 = scmp.le.s32.totalorder 1, %s37
      %p685 = scmp.lt.s32.totalorder %s37, 3
      %p686 = pnand %p684, %p685
      %p687 = pneg %p686
      // Predicated region
      $region93: #{student_forward.1} parent=5 // pred_check
        _
      $region94: #{student_forward.1} parent=5 // pred_check_branch
        %689 = sbr.rel (%p686) target = $region96
      $region95: #{student_forward.1} parent=5 // pred_region
        %s690 = ssub.s32 %s37, 1
        %p691 = pneg %p58
        %p692 = pneg %p55
        %p693 = pneg %p79
        %p694 = pneg %p76
        %p695 = pneg %p100
        %p696 = pneg %p97
        %p697 = pneg %p121
        %p698 = pneg %p118
        %p699 = scmp.lt.s32.totalorder %s42, 1
        %s700 = scalar_select %p699, %s42, 1
        %s701 = smul.addr %s700, 4
        %s702 = smul.addr %s701, 8
        %s703 = scalar_lea.vmem %s5, %s702
        %p704 = pneg %p147
        %p705 = pneg %p144
        %p706 = scmp.lt.s32.totalorder %s42, 1
        %s707 = scalar_select %p706, %s42, 1
        %s708 = scalar_lea.vmem %s6, %s707
        %p709 = pneg %p173
        %p710 = pneg %p170
        %p711 = scmp.lt.s32.totalorder %s42, 1
        %s712 = scalar_select %p711, %s42, 1
        %s713 = smul.addr %s712, 4
        %s714 = smul.addr %s713, 8
        %s715 = scalar_lea.vmem %s7, %s714
        %p716 = pneg %p199
        %p717 = pneg %p196
        %p718 = scmp.lt.s32.totalorder %s42, 1
        %s719 = scalar_select %p718, %s42, 1
        %s720 = scalar_lea.vmem %s8, %s719
        %p721 = pneg %p225
        %p722 = pneg %p222
        %p723 = scmp.lt.s32.totalorder %s42, 1
        %s724 = scalar_select %p723, %s42, 1
        %s725 = scalar_lea.vmem %s9, %s724
        %p726 = pneg %p251
        %p727 = pneg %p248
        %p728 = scmp.lt.s32.totalorder %s42, 1
        %s729 = scalar_select %p728, %s42, 1
        %s730 = scalar_lea.vmem %s10, %s729
        %p731 = pneg %p277
        %p732 = pneg %p274
        %p733 = scmp.lt.s32.totalorder %s42, 1
        %s734 = scalar_select %p733, %s42, 1
        %s735 = smul.addr %s734, 4
        %s736 = smul.addr %s735, 8
        %s737 = scalar_lea.vmem %s11, %s736
        %p738 = pneg %p303
        %p739 = pneg %p300
        %p740 = scmp.lt.s32.totalorder %s42, 1
        %s741 = scalar_select %p740, %s42, 1
        %s742 = scalar_lea.vmem %s12, %s741
        %p743 = pneg %p329
        %p744 = pneg %p326
        %p745 = scmp.lt.s32.totalorder %s42, 1
        %s746 = scalar_select %p745, %s42, 1
        %s747 = smul.addr %s746, 8
        %s748 = smul.addr %s747, 8
        %s749 = scalar_lea.vmem %s13, %s748
        %p750 = pneg %p355
        %p751 = pneg %p352
        %p752 = scmp.lt.s32.totalorder %s42, 1
        %s753 = scalar_select %p752, %s42, 1
        %s754 = scalar_lea.vmem %s14, %s753
        %p755 = pneg %p381
        %p756 = pneg %p378
        %p757 = scmp.lt.s32.totalorder %s42, 1
        %s758 = scalar_select %p757, %s42, 1
        %s759 = scalar_lea.vmem %s15, %s758
        %p760 = pneg %p407
        %p761 = pneg %p404
        %p762 = scmp.lt.s32.totalorder %s42, 1
        %s763 = scalar_select %p762, %s42, 1
        %s764 = scalar_lea.vmem %s16, %s763
        %p765 = pneg %p433
        %p766 = pneg %p430
        %p767 = pneg %p454
        %p768 = pneg %p451
        %p769 = pneg %p475
        %p770 = pneg %p472
        %p771 = pneg %p496
        %p772 = pneg %p493
        %p773 = pneg %p517
        %p774 = pneg %p514
        %p775 = pneg %p543
        %p776 = pneg %p540
        %p777 = scmp.lt.s32.totalorder %s42, 1
        %s778 = scalar_select %p777, %s42, 1
        %s779 = smul.addr %s778, 2
        %s780 = smul.addr %s779, 8
        %s781 = scalar_lea.vmem %s21, %s780
        %p782 = pneg %p564
        %p783 = pneg %p561
        %p784 = scmp.lt.s32.totalorder %s42, 1
        %s785 = scalar_select %p784, %s42, 1
        %s786 = smul.addr %s785, 4
        %s787 = smul.addr %s786, 8
        %s788 = scalar_lea.vmem %s5, %s787
        %p789 = scmp.lt.s32.totalorder %s42, 1
        %s790 = scalar_select %p789, %s42, 1
        %s791 = scalar_lea.vmem %s6, %s790
        %p792 = scmp.lt.s32.totalorder %s42, 1
        %s793 = scalar_select %p792, %s42, 1
        %s794 = smul.addr %s793, 4
        %s795 = smul.addr %s794, 8
        %s796 = scalar_lea.vmem %s7, %s795
        %p797 = scmp.lt.s32.totalorder %s42, 1
        %s798 = scalar_select %p797, %s42, 1
        %s799 = scalar_lea.vmem %s8, %s798
        %p800 = scmp.lt.s32.totalorder %s42, 1
        %s801 = scalar_select %p800, %s42, 1
        %s802 = scalar_lea.vmem %s9, %s801
        %p803 = scmp.lt.s32.totalorder %s42, 1
        %s804 = scalar_select %p803, %s42, 1
        %s805 = scalar_lea.vmem %s10, %s804
        %p806 = scmp.lt.s32.totalorder %s42, 1
        %s807 = scalar_select %p806, %s42, 1
        %s808 = smul.addr %s807, 4
        %s809 = smul.addr %s808, 8
        %s810 = scalar_lea.vmem %s11, %s809
        %p811 = scmp.lt.s32.totalorder %s42, 1
        %s812 = scalar_select %p811, %s42, 1
        %s813 = scalar_lea.vmem %s12, %s812
        %p814 = scmp.lt.s32.totalorder %s42, 1
        %s815 = scalar_select %p814, %s42, 1
        %s816 = smul.addr %s815, 8
        %s817 = smul.addr %s816, 8
        %s818 = scalar_lea.vmem %s13, %s817
        %p819 = scmp.lt.s32.totalorder %s42, 1
        %s820 = scalar_select %p819, %s42, 1
        %s821 = scalar_lea.vmem %s14, %s820
        %p822 = scmp.lt.s32.totalorder %s42, 1
        %s823 = scalar_select %p822, %s42, 1
        %s824 = scalar_lea.vmem %s15, %s823
        %p825 = scmp.lt.s32.totalorder %s42, 1
        %s826 = scalar_select %p825, %s42, 1
        %s827 = scalar_lea.vmem %s16, %s826
        %p828 = scmp.lt.s32.totalorder %s42, 1
        %s829 = scalar_select %p828, %s42, 1
        %s830 = smul.addr %s829, 2
        %s831 = smul.addr %s830, 8
        %s832 = scalar_lea.vmem %s21, %s831
        %p833 = scmp.eq.s32.totalorder %s42, 0
        // Predicated region
        $region97: #{student_forward.1} parent=95 // pred_check
          %p834 = pneg %p833
        $region98: #{student_forward.1} parent=95 // pred_check_branch
          %836 = sbr.rel (%p834) target = $region100
        $region99: #{student_forward.1} parent=95 // pred_region
          %v837 = vld [vmem:[%s1] sm:$0xff]
          %v838 = vld [vmem:[%s1 + $0x8] sm:$0xff]
          %v839 = vld [vmem:[%s3] sm:$0x1]
          %v840 = vld [vmem:[%s4] sm:$0x1]
          %vm841 = vcmask 261120
          %v842 = vsel %vm841, %v837, 0.0
          %843 = vadd.xlane.f32.xlu0 %v842
          %v844 = vpop.xlane.xlu0 %843
          %v845 = vsel %vm841, %v838, 0.0
          %846 = vadd.xlane.f32.xlu0 %v845
          %v847 = vpop.xlane.xlu0 %846
          %v848 = vrcp.pop 32.0
          %v849 = vmul.f32 %v844, %v848
          %v850 = vmul.f32 %v847, %v848
          %v851 = vsub.f32 %v837, %v849
          %v852 = vsub.f32 %v838, %v850
          %v853 = vmul.f32 %v851, %v851
          %v854 = vmul.f32 %v852, %v852
          %v855 = vsel %vm841, %v853, 0.0
          %856 = vadd.xlane.f32.xlu0 %v855
          %v857 = vpop.xlane.xlu0 %856
          %v858 = vsel %vm841, %v854, 0.0
          %859 = vadd.xlane.f32.xlu0 %v858
          %v860 = vpop.xlane.xlu0 %859
          %v861 = vmul.f32 %v857, %v848
          %v862 = vmul.f32 %v860, %v848
          %v863 = vadd.f32 %v861, 1e-12
          %v864 = vadd.f32 %v862, 1e-12
          %v865 = vrsqrt.pop %v863
          %v866 = vrsqrt.pop %v864
          %v867 = vmul.f32 %v851, %v865
          %v868 = vmul.f32 %v852, %v866
          %v870 = vlaneseq
          %v871 = vshrl.u32 %v870, 7
          %v872 = vsub.s32 0, %v871
          %v873 = vrot.slane %v839, %v872
          %v875 = vmul.f32 %v867, %v873
          %v876 = vmul.f32 %v868, %v873
          %v878 = vlaneseq
          %v879 = vshrl.u32 %v878, 7
          %v880 = vsub.s32 0, %v879
          %v881 = vrot.slane %v840, %v880
          %v883 = vadd.f32 %v875, %v881
          %v884 = vadd.f32 %v876, %v881
          %885 = vst.msk [vmem:[#allocation2] sm:$0xff] %vm841, %v883
          %886 = vst.msk [vmem:[#allocation2 + $0x8] sm:$0xff] %vm841, %v884
          %887 = vst.msk [vmem:[#allocation5] sm:$0xff] %vm841, %v883
          %888 = vst.msk [vmem:[#allocation5 + $0x8] sm:$0xff] %vm841, %v884
        $region100: #{student_forward.1} parent=95 // pred_fallthru
          _
        %v889 = vld [vmem:[#allocation2] sm:$0xff]
        %v890 = vld [vmem:[#allocation2 + $0x8] sm:$0xff]
        %v891 = vld [vmem:[%s788] sm:$0xff]
        %v892 = vld [vmem:[%s788 + $0x8] sm:$0xff]
        %v893 = vld [vmem:[%s788 + $0x10] sm:$0xff]
        %v894 = vld [vmem:[%s788 + $0x18] sm:$0xff]
        %v895 = vld [vmem:[%s791] sm:$0x1]
        %v897 = vlaneseq
        %v898 = vshrl.u32 %v897, 7
        %v899 = vsub.s32 0, %v898
        %v900 = vrot.slane %v895, %v899
        %vm902 = vcmask 261120
        %v904 = vsel %vm902, %v889, 0
        %v907 = vsel %vm902, %v890, 0
        %909 = vmatprep.subr.mxu0 0.0
        %910 = vmatpush1.msra.mxu0 %v891
        %911 = vmatprep.subr.mxu0 0.0
        %912 = vmatpush1.msra.mxu0 %v892
        %913 = vmatprep.subr.mxu0 0.0
        %914 = vmatpush1.msra.mxu0 %v893
        %915 = vmatprep.subr.mxu0 0.0
        %916 = vmatpush1.msra.mxu0 %v894
        %917 = vmatprep.subr.mxu0 0.0
        %918 = vmatpush1.msra.mxu0 0.0
        %919 = vmatprep.subr.mxu0 0.0
        %920 = vmatpush1.msra.mxu0 0.0
        %921 = vmatprep.subr.mxu0 0.0
        %922 = vmatpush1.msra.mxu0 0.0
        %923 = vmatprep.subr.mxu0 0.0
        %924 = vmatpush1.msra.mxu0 0.0
        %925 = vmatprep.subr.mxu0 0.0
        %926 = vmatpush1.msra.mxu0 0.0
        %927 = vmatprep.subr.mxu0 0.0
        %928 = vmatpush1.msra.mxu0 0.0
        %929 = vmatprep.subr.mxu0 0.0
        %930 = vmatpush1.msra.mxu0 0.0
        %931 = vmatprep.subr.mxu0 0.0
        %932 = vmatpush1.msra.mxu0 0.0
        %933 = vmatprep.subr.mxu0 0.0
        %934 = vmatpush1.msra.mxu0 0.0
        %935 = vmatprep.subr.mxu0 0.0
        %936 = vmatpush1.msra.mxu0 0.0
        %937 = vmatprep.subr.mxu0 0.0
        %938 = vmatpush1.msra.mxu0 0.0
        %939 = vmatprep.subr.mxu0 0.0
        %940 = vmatpush1.msra.mxu0 0.0
        %941 = vmatprep.subr.mxu0 0.0
        %942 = vmatpush1.msra.mxu0 0.0
        %943 = vmatprep.subr.mxu0 0.0
        %944 = vmatpush1.msra.mxu0 0.0
        %945 = vmatprep.subr.mxu0 0.0
        %946 = vmatpush1.msra.mxu0 0.0
        %947 = vmatprep.subr.mxu0 0.0
        %948 = vmatpush1.msra.mxu0 0.0
        %949 = vmatprep.subr.mxu0 0.0
        %950 = vmatpush1.msra.mxu0 0.0
        %951 = vmatprep.subr.mxu0 0.0
        %952 = vmatpush1.msra.mxu0 0.0
        %953 = vmatprep.subr.mxu0 0.0
        %954 = vmatpush1.msra.mxu0 0.0
        %955 = vmatprep.subr.mxu0 0.0
        %956 = vmatpush1.msra.mxu0 0.0
        %957 = vmatprep.subr.mxu0 0.0
        %958 = vmatpush1.msra.mxu0 0.0
        %959 = vmatprep.subr.mxu0 0.0
        %960 = vmatpush1.msra.mxu0 0.0
        %961 = vmatprep.subr.mxu0 0.0
        %962 = vmatpush1.msra.mxu0 0.0
        %963 = vmatprep.subr.mxu0 0.0
        %964 = vmatpush1.msra.mxu0 0.0
        %965 = vmatprep.subr.mxu0 0.0
        %966 = vmatpush1.msra.mxu0 0.0
        %967 = vmatprep.subr.mxu0 0.0
        %968 = vmatpush1.msra.mxu0 0.0
        %969 = vmatprep.subr.mxu0 0.0
        %970 = vmatpush1.msra.mxu0 0.0
        %971 = vmatprep.subr.mxu0 0.0
        %972 = vmatpush1.msra.mxu0 0.0
        %973 = vmatprep.mubr.f32.mxu0 0.0
        %974 = vmatmul.mubr.f32.gmra.mrb[0].mxu0 %v904
        %v975 = vpop.f32.mrb[0].mxu0
        %v976 = vadd.f32 %v900, %v975
        %v977 = vpop.f32.mrb[0].mxu0
        %978 = vmatprep.mubr.f32.mxu0 0.0
        %979 = vmatmul.mubr.f32.gmra.mrb[0].mxu0 %v907
        %v980 = vpop.f32.mrb[0].mxu0
        %v981 = vadd.f32 %v900, %v980
        %v982 = vpop.f32.mrb[0].mxu0
        %983 = vdwg.mxu0
        %v984 = vld [vmem:[%s2] sm:$0x1]
        %986 = vrot.lane.b32.xlu0 %v976, 120
        %v987 = vpop.permute.xlu0 %986
        %vm988 = vcmask 64512
        %v989 = vsel %vm988, %v976, 0
        %v991 = vsel %vm988, %v987, 0
        %993 = vmatprep.subr.mxu0 0.0
        %994 = vmatpush1.xpose.msra.mxu0 %v991
        %995 = vmatprep.subr.mxu0 0.0
        %996 = vmatpush1.xpose.msra.mxu0 0.0
        %997 = vmatprep.subr.mxu0 0.0
        %998 = vmatpush1.xpose.msra.mxu0 0.0
        %999 = vmatprep.subr.mxu0 0.0
        %1000 = vmatpush1.xpose.msra.mxu0 0.0
        %1001 = vmatprep.subr.mxu0 0.0
        %1002 = vmatpush1.xpose.msra.mxu0 0.0
        %1003 = vmatprep.subr.mxu0 0.0
        %1004 = vmatpush1.xpose.msra.mxu0 0.0
        %1005 = vmatprep.subr.mxu0 0.0
        %1006 = vmatpush1.xpose.msra.mxu0 0.0
        %1007 = vmatprep.subr.mxu0 0.0
        %1008 = vmatpush1.xpose.msra.mxu0 0.0
        %1009 = vmatprep.subr.mxu0 0.0
        %1010 = vmatpush1.xpose.msra.mxu0 0.0
        %1011 = vmatprep.subr.mxu0 0.0
        %1012 = vmatpush1.xpose.msra.mxu0 0.0
        %1013 = vmatprep.subr.mxu0 0.0
        %1014 = vmatpush1.xpose.msra.mxu0 0.0
        %1015 = vmatprep.subr.mxu0 0.0
        %1016 = vmatpush1.xpose.msra.mxu0 0.0
        %1017 = vmatprep.subr.mxu0 0.0
        %1018 = vmatpush1.xpose.msra.mxu0 0.0
        %1019 = vmatprep.subr.mxu0 0.0
        %1020 = vmatpush1.xpose.msra.mxu0 0.0
        %1021 = vmatprep.subr.mxu0 0.0
        %1022 = vmatpush1.xpose.msra.mxu0 0.0
        %1023 = vmatprep.subr.mxu0 0.0
        %1024 = vmatpush1.xpose.msra.mxu0 0.0
        %1025 = vmatprep.subr.mxu0 0.0
        %1026 = vmatpush1.xpose.msra.mxu0 0.0
        %1027 = vmatprep.subr.mxu0 0.0
        %1028 = vmatpush1.xpose.msra.mxu0 0.0
        %1029 = vmatprep.subr.mxu0 0.0
        %1030 = vmatpush1.xpose.msra.mxu0 0.0
        %1031 = vmatprep.subr.mxu0 0.0
        %1032 = vmatpush1.xpose.msra.mxu0 0.0
        %1033 = vmatprep.subr.mxu0 0.0
        %1034 = vmatpush1.xpose.msra.mxu0 0.0
        %1035 = vmatprep.subr.mxu0 0.0
        %1036 = vmatpush1.xpose.msra.mxu0 0.0
        %1037 = vmatprep.subr.mxu0 0.0
        %1038 = vmatpush1.xpose.msra.mxu0 0.0
        %1039 = vmatprep.subr.mxu0 0.0
        %1040 = vmatpush1.xpose.msra.mxu0 0.0
        %1041 = vmatprep.subr.mxu0 0.0
        %1042 = vmatpush1.xpose.msra.mxu0 0.0
        %1043 = vmatprep.subr.mxu0 0.0
        %1044 = vmatpush1.xpose.msra.mxu0 0.0
        %1045 = vmatprep.subr.mxu0 0.0
        %1046 = vmatpush1.xpose.msra.mxu0 0.0
        %1047 = vmatprep.subr.mxu0 0.0
        %1048 = vmatpush1.xpose.msra.mxu0 0.0
        %1049 = vmatprep.subr.mxu0 0.0
        %1050 = vmatpush1.xpose.msra.mxu0 0.0
        %1051 = vmatprep.subr.mxu0 0.0
        %1052 = vmatpush1.xpose.msra.mxu0 0.0
        %1053 = vmatprep.subr.mxu0 0.0
        %1054 = vmatpush1.xpose.msra.mxu0 0.0
        %1055 = vmatprep.subr.mxu0 0.0
        %1056 = vmatpush1.xpose.msra.mxu0 0.0
        %1057 = vmatprep.mubr.f32.mxu0 0.0
        %1058 = vmatmul.mubr.f32.gmra.mrb[0].mxu0 %v989
        %v1059 = vpop.f32.mrb[0].mxu0
        %v1060 = vadd.f32 0.0, %v1059
        %v1061 = vpop.f32.mrb[0].mxu0
        %1062 = vdwg.mxu0
        %v1063 = vmul.f32 %v1060, 0.35355338
        %v1065 = vlaneseq
        %v1066 = vshrl.u32 %v1065, 7
        %v1067 = vsub.s32 0, %v1066
        %v1068 = vrot.slane %v984, %v1067
        %v1070 = vadd.f32 %v1063, %v1068
        %v1071 = vsel %vm988, %v1070, -inf
        %1072 = vmax.xlane.f32.xlu0 %v1071
        %v1073 = vpop.xlane.xlu0 %1072
        %v1074 = vsub.f32 %v1070, %v1073
        %v1075 = vmul.f32 %v1074, 1.442695
        %v1076 = vpow.pop %v1075
        %v1077 = vsel %vm988, %v1076, 0.0
        %1078 = vadd.xlane.f32.xlu0 %v1077
        %v1079 = vpop.xlane.xlu0 %1078
        %v1080 = vrcp.pop %v1079
        %v1081 = vmul.f32 %v1076, %v1080
        %1082 = vrot.lane.b32.xlu0 %v976, 112
        %v1083 = vpop.permute.xlu0 %1082
        %v1086 = vsel %vm988, %v1081, 0
        %1088 = vmatprep.subr.mxu0 0.0
        %1089 = vmatpush1.msra.mxu0 %v1083
        %1090 = vmatprep.subr.mxu0 0.0
        %1091 = vmatpush1.msra.mxu0 0.0
        %1092 = vmatprep.subr.mxu0 0.0
        %1093 = vmatpush1.msra.mxu0 0.0
        %1094 = vmatprep.subr.mxu0 0.0
        %1095 = vmatpush1.msra.mxu0 0.0
        %1096 = vmatprep.subr.mxu0 0.0
        %1097 = vmatpush1.msra.mxu0 0.0
        %1098 = vmatprep.subr.mxu0 0.0
        %1099 = vmatpush1.msra.mxu0 0.0
        %1100 = vmatprep.subr.mxu0 0.0
        %1101 = vmatpush1.msra.mxu0 0.0
        %1102 = vmatprep.subr.mxu0 0.0
        %1103 = vmatpush1.msra.mxu0 0.0
        %1104 = vmatprep.subr.mxu0 0.0
        %1105 = vmatpush1.msra.mxu0 0.0
        %1106 = vmatprep.subr.mxu0 0.0
        %1107 = vmatpush1.msra.mxu0 0.0
        %1108 = vmatprep.subr.mxu0 0.0
        %1109 = vmatpush1.msra.mxu0 0.0
        %1110 = vmatprep.subr.mxu0 0.0
        %1111 = vmatpush1.msra.mxu0 0.0
        %1112 = vmatprep.subr.mxu0 0.0
        %1113 = vmatpush1.msra.mxu0 0.0
        %1114 = vmatprep.subr.mxu0 0.0
        %1115 = vmatpush1.msra.mxu0 0.0
        %1116 = vmatprep.subr.mxu0 0.0
        %1117 = vmatpush1.msra.mxu0 0.0
        %1118 = vmatprep.subr.mxu0 0.0
        %1119 = vmatpush1.msra.mxu0 0.0
        %1120 = vmatprep.subr.mxu0 0.0
        %1121 = vmatpush1.msra.mxu0 0.0
        %1122 = vmatprep.subr.mxu0 0.0
        %1123 = vmatpush1.msra.mxu0 0.0
        %1124 = vmatprep.subr.mxu0 0.0
        %1125 = vmatpush1.msra.mxu0 0.0
        %1126 = vmatprep.subr.mxu0 0.0
        %1127 = vmatpush1.msra.mxu0 0.0
        %1128 = vmatprep.subr.mxu0 0.0
        %1129 = vmatpush1.msra.mxu0 0.0
        %1130 = vmatprep.subr.mxu0 0.0
        %1131 = vmatpush1.msra.mxu0 0.0
        %1132 = vmatprep.subr.mxu0 0.0
        %1133 = vmatpush1.msra.mxu0 0.0
        %1134 = vmatprep.subr.mxu0 0.0
        %1135 = vmatpush1.msra.mxu0 0.0
        %1136 = vmatprep.subr.mxu0 0.0
        %1137 = vmatpush1.msra.mxu0 0.0
        %1138 = vmatprep.subr.mxu0 0.0
        %1139 = vmatpush1.msra.mxu0 0.0
        %1140 = vmatprep.subr.mxu0 0.0
        %1141 = vmatpush1.msra.mxu0 0.0
        %1142 = vmatprep.subr.mxu0 0.0
        %1143 = vmatpush1.msra.mxu0 0.0
        %1144 = vmatprep.subr.mxu0 0.0
        %1145 = vmatpush1.msra.mxu0 0.0
        %1146 = vmatprep.subr.mxu0 0.0
        %1147 = vmatpush1.msra.mxu0 0.0
        %1148 = vmatprep.subr.mxu0 0.0
        %1149 = vmatpush1.msra.mxu0 0.0
        %1150 = vmatprep.subr.mxu0 0.0
        %1151 = vmatpush1.msra.mxu0 0.0
        %1152 = vmatprep.mubr.f32.mxu0 0.0
        %1153 = vmatmul.mubr.f32.gmra.mrb[0].mxu0 %v1086
        %v1154 = vpop.f32.mrb[0].mxu0
        %v1155 = vadd.f32 0.0, %v1154
        %v1156 = vpop.f32.mrb[0].mxu0
        %1157 = vdwg.mxu0
        %1158 = vrot.lane.b32.xlu0 %v976, 104
        %v1159 = vpop.permute.xlu0 %1158
        %1160 = vrot.lane.b32.xlu0 %v976, 96
        %v1161 = vpop.permute.xlu0 %1160
        %v1162 = vsel %vm988, %v1159, 0
        %v1164 = vsel %vm988, %v1161, 0
        %1166 = vmatprep.subr.mxu0 0.0
        %1167 = vmatpush1.xpose.msra.mxu0 %v1164
        %1168 = vmatprep.subr.mxu0 0.0
        %1169 = vmatpush1.xpose.msra.mxu0 0.0
        %1170 = vmatprep.subr.mxu0 0.0
        %1171 = vmatpush1.xpose.msra.mxu0 0.0
        %1172 = vmatprep.subr.mxu0 0.0
        %1173 = vmatpush1.xpose.msra.mxu0 0.0
        %1174 = vmatprep.subr.mxu0 0.0
        %1175 = vmatpush1.xpose.msra.mxu0 0.0
        %1176 = vmatprep.subr.mxu0 0.0
        %1177 = vmatpush1.xpose.msra.mxu0 0.0
        %1178 = vmatprep.subr.mxu0 0.0
        %1179 = vmatpush1.xpose.msra.mxu0 0.0
        %1180 = vmatprep.subr.mxu0 0.0
        %1181 = vmatpush1.xpose.msra.mxu0 0.0
        %1182 = vmatprep.subr.mxu0 0.0
        %1183 = vmatpush1.xpose.msra.mxu0 0.0
        %1184 = vmatprep.subr.mxu0 0.0
        %1185 = vmatpush1.xpose.msra.mxu0 0.0
        %1186 = vmatprep.subr.mxu0 0.0
        %1187 = vmatpush1.xpose.msra.mxu0 0.0
        %1188 = vmatprep.subr.mxu0 0.0
        %1189 = vmatpush1.xpose.msra.mxu0 0.0
        %1190 = vmatprep.subr.mxu0 0.0
        %1191 = vmatpush1.xpose.msra.mxu0 0.0
        %1192 = vmatprep.subr.mxu0 0.0
        %1193 = vmatpush1.xpose.msra.mxu0 0.0
        %1194 = vmatprep.subr.mxu0 0.0
        %1195 = vmatpush1.xpose.msra.mxu0 0.0
        %1196 = vmatprep.subr.mxu0 0.0
        %1197 = vmatpush1.xpose.msra.mxu0 0.0
        %1198 = vmatprep.subr.mxu0 0.0
        %1199 = vmatpush1.xpose.msra.mxu0 0.0
        %1200 = vmatprep.subr.mxu0 0.0
        %1201 = vmatpush1.xpose.msra.mxu0 0.0
        %1202 = vmatprep.subr.mxu0 0.0
        %1203 = vmatpush1.xpose.msra.mxu0 0.0
        %1204 = vmatprep.subr.mxu0 0.0
        %1205 = vmatpush1.xpose.msra.mxu0 0.0
        %1206 = vmatprep.subr.mxu0 0.0
        %1207 = vmatpush1.xpose.msra.mxu0 0.0
        %1208 = vmatprep.subr.mxu0 0.0
        %1209 = vmatpush1.xpose.msra.mxu0 0.0
        %1210 = vmatprep.subr.mxu0 0.0
        %1211 = vmatpush1.xpose.msra.mxu0 0.0
        %1212 = vmatprep.subr.mxu0 0.0
        %1213 = vmatpush1.xpose.msra.mxu0 0.0
        %1214 = vmatprep.subr.mxu0 0.0
        %1215 = vmatpush1.xpose.msra.mxu0 0.0
        %1216 = vmatprep.subr.mxu0 0.0
        %1217 = vmatpush1.xpose.msra.mxu0 0.0
        %1218 = vmatprep.subr.mxu0 0.0
        %1219 = vmatpush1.xpose.msra.mxu0 0.0
        %1220 = vmatprep.subr.mxu0 0.0
        %1221 = vmatpush1.xpose.msra.mxu0 0.0
        %1222 = vmatprep.subr.mxu0 0.0
        %1223 = vmatpush1.xpose.msra.mxu0 0.0
        %1224 = vmatprep.subr.mxu0 0.0
        %1225 = vmatpush1.xpose.msra.mxu0 0.0
        %1226 = vmatprep.subr.mxu0 0.0
        %1227 = vmatpush1.xpose.msra.mxu0 0.0
        %1228 = vmatprep.subr.mxu0 0.0
        %1229 = vmatpush1.xpose.msra.mxu0 0.0
        %1230 = vmatprep.mubr.f32.mxu0 0.0
        %1231 = vmatmul.mubr.f32.gmra.mrb[0].mxu0 %v1162
        %v1232 = vpop.f32.mrb[0].mxu0
        %v1233 = vadd.f32 0.0, %v1232
        %v1234 = vpop.f32.mrb[0].mxu0
        %1235 = vdwg.mxu0
        %v1236 = vmul.f32 %v1233, 0.35355338
        %v1237 = vadd.f32 %v1236, %v1068
        %v1238 = vsel %vm988, %v1237, -inf
        %1239 = vmax.xlane.f32.xlu0 %v1238
        %v1240 = vpop.xlane.xlu0 %1239
        %v1241 = vsub.f32 %v1237, %v1240
        %v1242 = vmul.f32 %v1241, 1.442695
        %v1243 = vpow.pop %v1242
        %v1244 = vsel %vm988, %v1243, 0.0
        %1245 = vadd.xlane.f32.xlu0 %v1244
        %v1246 = vpop.xlane.xlu0 %1245
        %v1247 = vrcp.pop %v1246
        %v1248 = vmul.f32 %v1243, %v1247
        %1249 = vrot.lane.b32.xlu0 %v976, 88
        %v1250 = vpop.permute.xlu0 %1249
        %v1253 = vsel %vm988, %v1248, 0
        %1255 = vmatprep.subr.mxu0 0.0
        %1256 = vmatpush1.msra.mxu0 %v1250
        %1257 = vmatprep.subr.mxu0 0.0
        %1258 = vmatpush1.msra.mxu0 0.0
        %1259 = vmatprep.subr.mxu0 0.0
        %1260 = vmatpush1.msra.mxu0 0.0
        %1261 = vmatprep.subr.mxu0 0.0
        %1262 = vmatpush1.msra.mxu0 0.0
        %1263 = vmatprep.subr.mxu0 0.0
        %1264 = vmatpush1.msra.mxu0 0.0
        %1265 = vmatprep.subr.mxu0 0.0
        %1266 = vmatpush1.msra.mxu0 0.0
        %1267 = vmatprep.subr.mxu0 0.0
        %1268 = vmatpush1.msra.mxu0 0.0
        %1269 = vmatprep.subr.mxu0 0.0
        %1270 = vmatpush1.msra.mxu0 0.0
        %1271 = vmatprep.subr.mxu0 0.0
        %1272 = vmatpush1.msra.mxu0 0.0
        %1273 = vmatprep.subr.mxu0 0.0
        %1274 = vmatpush1.msra.mxu0 0.0
        %1275 = vmatprep.subr.mxu0 0.0
        %1276 = vmatpush1.msra.mxu0 0.0
        %1277 = vmatprep.subr.mxu0 0.0
        %1278 = vmatpush1.msra.mxu0 0.0
        %1279 = vmatprep.subr.mxu0 0.0
        %1280 = vmatpush1.msra.mxu0 0.0
        %1281 = vmatprep.subr.mxu0 0.0
        %1282 = vmatpush1.msra.mxu0 0.0
        %1283 = vmatprep.subr.mxu0 0.0
        %1284 = vmatpush1.msra.mxu0 0.0
        %1285 = vmatprep.subr.mxu0 0.0
        %1286 = vmatpush1.msra.mxu0 0.0
        %1287 = vmatprep.subr.mxu0 0.0
        %1288 = vmatpush1.msra.mxu0 0.0
        %1289 = vmatprep.subr.mxu0 0.0
        %1290 = vmatpush1.msra.mxu0 0.0
        %1291 = vmatprep.subr.mxu0 0.0
        %1292 = vmatpush1.msra.mxu0 0.0
        %1293 = vmatprep.subr.mxu0 0.0
        %1294 = vmatpush1.msra.mxu0 0.0
        %1295 = vmatprep.subr.mxu0 0.0
        %1296 = vmatpush1.msra.mxu0 0.0
        %1297 = vmatprep.subr.mxu0 0.0
        %1298 = vmatpush1.msra.mxu0 0.0
        %1299 = vmatprep.subr.mxu0 0.0
        %1300 = vmatpush1.msra.mxu0 0.0
        %1301 = vmatprep.subr.mxu0 0.0
        %1302 = vmatpush1.msra.mxu0 0.0
        %1303 = vmatprep.subr.mxu0 0.0
        %1304 = vmatpush1.msra.mxu0 0.0
        %1305 = vmatprep.subr.mxu0 0.0
        %1306 = vmatpush1.msra.mxu0 0.0
        %1307 = vmatprep.subr.mxu0 0.0
        %1308 = vmatpush1.msra.mxu0 0.0
        %1309 = vmatprep.subr.mxu0 0.0
        %1310 = vmatpush1.msra.mxu0 0.0
        %1311 = vmatprep.subr.mxu0 0.0
        %1312 = vmatpush1.msra.mxu0 0.0
        %1313 = vmatprep.subr.mxu0 0.0
        %1314 = vmatpush1.msra.mxu0 0.0
        %1315 = vmatprep.subr.mxu0 0.0
        %1316 = vmatpush1.msra.mxu0 0.0
        %1317 = vmatprep.subr.mxu0 0.0
        %1318 = vmatpush1.msra.mxu0 0.0
        %1319 = vmatprep.mubr.f32.mxu0 0.0
        %1320 = vmatmul.mubr.f32.gmra.mrb[0].mxu0 %v1253
        %v1321 = vpop.f32.mrb[0].mxu0
        %v1322 = vadd.f32 0.0, %v1321
        %v1323 = vpop.f32.mrb[0].mxu0
        %1324 = vdwg.mxu0
        %1325 = vrot.lane.b32.xlu0 %v976, 80
        %v1326 = vpop.permute.xlu0 %1325
        %1327 = vrot.lane.b32.xlu0 %v976, 72
        %v1328 = vpop.permute.xlu0 %1327
        %v1329 = vsel %vm988, %v1326, 0
        %v1331 = vsel %vm988, %v1328, 0
        %1333 = vmatprep.subr.mxu0 0.0
        %1334 = vmatpush1.xpose.msra.mxu0 %v1331
        %1335 = vmatprep.subr.mxu0 0.0
        %1336 = vmatpush1.xpose.msra.mxu0 0.0
        %1337 = vmatprep.subr.mxu0 0.0
        %1338 = vmatpush1.xpose.msra.mxu0 0.0
        %1339 = vmatprep.subr.mxu0 0.0
        %1340 = vmatpush1.xpose.msra.mxu0 0.0
        %1341 = vmatprep.subr.mxu0 0.0
        %1342 = vmatpush1.xpose.msra.mxu0 0.0
        %1343 = vmatprep.subr.mxu0 0.0
        %1344 = vmatpush1.xpose.msra.mxu0 0.0
        %1345 = vmatprep.subr.mxu0 0.0
        %1346 = vmatpush1.xpose.msra.mxu0 0.0
        %1347 = vmatprep.subr.mxu0 0.0
        %1348 = vmatpush1.xpose.msra.mxu0 0.0
        %1349 = vmatprep.subr.mxu0 0.0
        %1350 = vmatpush1.xpose.msra.mxu0 0.0
        %1351 = vmatprep.subr.mxu0 0.0
        %1352 = vmatpush1.xpose.msra.mxu0 0.0
        %1353 = vmatprep.subr.mxu0 0.0
        %1354 = vmatpush1.xpose.msra.mxu0 0.0
        %1355 = vmatprep.subr.mxu0 0.0
        %1356 = vmatpush1.xpose.msra.mxu0 0.0
        %1357 = vmatprep.subr.mxu0 0.0
        %1358 = vmatpush1.xpose.msra.mxu0 0.0
        %1359 = vmatprep.subr.mxu0 0.0
        %1360 = vmatpush1.xpose.msra.mxu0 0.0
        %1361 = vmatprep.subr.mxu0 0.0
        %1362 = vmatpush1.xpose.msra.mxu0 0.0
        %1363 = vmatprep.subr.mxu0 0.0
        %1364 = vmatpush1.xpose.msra.mxu0 0.0
        %1365 = vmatprep.subr.mxu0 0.0
        %1366 = vmatpush1.xpose.msra.mxu0 0.0
        %1367 = vmatprep.subr.mxu0 0.0
        %1368 = vmatpush1.xpose.msra.mxu0 0.0
        %1369 = vmatprep.subr.mxu0 0.0
        %1370 = vmatpush1.xpose.msra.mxu0 0.0
        %1371 = vmatprep.subr.mxu0 0.0
        %1372 = vmatpush1.xpose.msra.mxu0 0.0
        %1373 = vmatprep.subr.mxu0 0.0
        %1374 = vmatpush1.xpose.msra.mxu0 0.0
        %1375 = vmatprep.subr.mxu0 0.0
        %1376 = vmatpush1.xpose.msra.mxu0 0.0
        %1377 = vmatprep.subr.mxu0 0.0
        %1378 = vmatpush1.xpose.msra.mxu0 0.0
        %1379 = vmatprep.subr.mxu0 0.0
        %1380 = vmatpush1.xpose.msra.mxu0 0.0
        %1381 = vmatprep.subr.mxu0 0.0
        %1382 = vmatpush1.xpose.msra.mxu0 0.0
        %1383 = vmatprep.subr.mxu0 0.0
        %1384 = vmatpush1.xpose.msra.mxu0 0.0
        %1385 = vmatprep.subr.mxu0 0.0
        %1386 = vmatpush1.xpose.msra.mxu0 0.0
        %1387 = vmatprep.subr.mxu0 0.0
        %1388 = vmatpush1.xpose.msra.mxu0 0.0
        %1389 = vmatprep.subr.mxu0 0.0
        %1390 = vmatpush1.xpose.msra.mxu0 0.0
        %1391 = vmatprep.subr.mxu0 0.0
        %1392 = vmatpush1.xpose.msra.mxu0 0.0
        %1393 = vmatprep.subr.mxu0 0.0
        %1394 = vmatpush1.xpose.msra.mxu0 0.0
        %1395 = vmatprep.subr.mxu0 0.0
        %1396 = vmatpush1.xpose.msra.mxu0 0.0
        %1397 = vmatprep.mubr.f32.mxu0 0.0
        %1398 = vmatmul.mubr.f32.gmra.mrb[0].mxu0 %v1329
        %v1399 = vpop.f32.mrb[0].mxu0
        %v1400 = vadd.f32 0.0, %v1399
        %v1401 = vpop.f32.mrb[0].mxu0
        %1402 = vdwg.mxu0
        %v1403 = vmul.f32 %v1400, 0.35355338
        %v1404 = vadd.f32 %v1403, %v1068
        %v1405 = vsel %vm988, %v1404, -inf
        %1406 = vmax.xlane.f32.xlu0 %v1405
        %v1407 = vpop.xlane.xlu0 %1406
        %v1408 = vsub.f32 %v1404, %v1407
        %v1409 = vmul.f32 %v1408, 1.442695
        %v1410 = vpow.pop %v1409
        %v1411 = vsel %vm988, %v1410, 0.0
        %1412 = vadd.xlane.f32.xlu0 %v1411
        %v1413 = vpop.xlane.xlu0 %1412
        %v1414 = vrcp.pop %v1413
        %v1415 = vmul.f32 %v1410, %v1414
        %1416 = vrot.lane.b32.xlu0 %v976, 64
        %v1417 = vpop.permute.xlu0 %1416
        %v1420 = vsel %vm988, %v1415, 0
        %1422 = vmatprep.subr.mxu0 0.0
        %1423 = vmatpush1.msra.mxu0 %v1417
        %1424 = vmatprep.subr.mxu0 0.0
        %1425 = vmatpush1.msra.mxu0 0.0
        %1426 = vmatprep.subr.mxu0 0.0
        %1427 = vmatpush1.msra.mxu0 0.0
        %1428 = vmatprep.subr.mxu0 0.0
        %1429 = vmatpush1.msra.mxu0 0.0
        %1430 = vmatprep.subr.mxu0 0.0
        %1431 = vmatpush1.msra.mxu0 0.0
        %1432 = vmatprep.subr.mxu0 0.0
        %1433 = vmatpush1.msra.mxu0 0.0
        %1434 = vmatprep.subr.mxu0 0.0
        %1435 = vmatpush1.msra.mxu0 0.0
        %1436 = vmatprep.subr.mxu0 0.0
        %1437 = vmatpush1.msra.mxu0 0.0
        %1438 = vmatprep.subr.mxu0 0.0
        %1439 = vmatpush1.msra.mxu0 0.0
        %1440 = vmatprep.subr.mxu0 0.0
        %1441 = vmatpush1.msra.mxu0 0.0
        %1442 = vmatprep.subr.mxu0 0.0
        %1443 = vmatpush1.msra.mxu0 0.0
        %1444 = vmatprep.subr.mxu0 0.0
        %1445 = vmatpush1.msra.mxu0 0.0
        %1446 = vmatprep.subr.mxu0 0.0
        %1447 = vmatpush1.msra.mxu0 0.0
        %1448 = vmatprep.subr.mxu0 0.0
        %1449 = vmatpush1.msra.mxu0 0.0
        %1450 = vmatprep.subr.mxu0 0.0
        %1451 = vmatpush1.msra.mxu0 0.0
        %1452 = vmatprep.subr.mxu0 0.0
        %1453 = vmatpush1.msra.mxu0 0.0
        %1454 = vmatprep.subr.mxu0 0.0
        %1455 = vmatpush1.msra.mxu0 0.0
        %1456 = vmatprep.subr.mxu0 0.0
        %1457 = vmatpush1.msra.mxu0 0.0
        %1458 = vmatprep.subr.mxu0 0.0
        %1459 = vmatpush1.msra.mxu0 0.0
        %1460 = vmatprep.subr.mxu0 0.0
        %1461 = vmatpush1.msra.mxu0 0.0
        %1462 = vmatprep.subr.mxu0 0.0
        %1463 = vmatpush1.msra.mxu0 0.0
        %1464 = vmatprep.subr.mxu0 0.0
        %1465 = vmatpush1.msra.mxu0 0.0
        %1466 = vmatprep.subr.mxu0 0.0
        %1467 = vmatpush1.msra.mxu0 0.0
        %1468 = vmatprep.subr.mxu0 0.0
        %1469 = vmatpush1.msra.mxu0 0.0
        %1470 = vmatprep.subr.mxu0 0.0
        %1471 = vmatpush1.msra.mxu0 0.0
        %1472 = vmatprep.subr.mxu0 0.0
        %1473 = vmatpush1.msra.mxu0 0.0
        %1474 = vmatprep.subr.mxu0 0.0
        %1475 = vmatpush1.msra.mxu0 0.0
        %1476 = vmatprep.subr.mxu0 0.0
        %1477 = vmatpush1.msra.mxu0 0.0
        %1478 = vmatprep.subr.mxu0 0.0
        %1479 = vmatpush1.msra.mxu0 0.0
        %1480 = vmatprep.subr.mxu0 0.0
        %1481 = vmatpush1.msra.mxu0 0.0
        %1482 = vmatprep.subr.mxu0 0.0
        %1483 = vmatpush1.msra.mxu0 0.0
        %1484 = vmatprep.subr.mxu0 0.0
        %1485 = vmatpush1.msra.mxu0 0.0
        %1486 = vmatprep.mubr.f32.mxu0 0.0
        %1487 = vmatmul.mubr.f32.gmra.mrb[0].mxu0 %v1420
        %v1488 = vpop.f32.mrb[0].mxu0
        %v1489 = vadd.f32 0.0, %v1488
        %v1490 = vpop.f32.mrb[0].mxu0
        %1491 = vdwg.mxu0
        %1492 = vrot.lane.b32.xlu0 %v976, 56
        %v1493 = vpop.permute.xlu0 %1492
        %1494 = vrot.lane.b32.xlu0 %v976, 48
        %v1495 = vpop.permute.xlu0 %1494
        %v1496 = vsel %vm988, %v1493, 0
        %v1498 = vsel %vm988, %v1495, 0
        %1500 = vmatprep.subr.mxu0 0.0
        %1501 = vmatpush1.xpose.msra.mxu0 %v1498
        %1502 = vmatprep.subr.mxu0 0.0
        %1503 = vmatpush1.xpose.msra.mxu0 0.0
        %1504 = vmatprep.subr.mxu0 0.0
        %1505 = vmatpush1.xpose.msra.mxu0 0.0
        %1506 = vmatprep.subr.mxu0 0.0
        %1507 = vmatpush1.xpose.msra.mxu0 0.0
        %1508 = vmatprep.subr.mxu0 0.0
        %1509 = vmatpush1.xpose.msra.mxu0 0.0
        %1510 = vmatprep.subr.mxu0 0.0
        %1511 = vmatpush1.xpose.msra.mxu0 0.0
        %1512 = vmatprep.subr.mxu0 0.0
        %1513 = vmatpush1.xpose.msra.mxu0 0.0
        %1514 = vmatprep.subr.mxu0 0.0
        %1515 = vmatpush1.xpose.msra.mxu0 0.0
        %1516 = vmatprep.subr.mxu0 0.0
        %1517 = vmatpush1.xpose.msra.mxu0 0.0
        %1518 = vmatprep.subr.mxu0 0.0
        %1519 = vmatpush1.xpose.msra.mxu0 0.0
        %1520 = vmatprep.subr.mxu0 0.0
        %1521 = vmatpush1.xpose.msra.mxu0 0.0
        %1522 = vmatprep.subr.mxu0 0.0
        %1523 = vmatpush1.xpose.msra.mxu0 0.0
        %1524 = vmatprep.subr.mxu0 0.0
        %1525 = vmatpush1.xpose.msra.mxu0 0.0
        %1526 = vmatprep.subr.mxu0 0.0
        %1527 = vmatpush1.xpose.msra.mxu0 0.0
        %1528 = vmatprep.subr.mxu0 0.0
        %1529 = vmatpush1.xpose.msra.mxu0 0.0
        %1530 = vmatprep.subr.mxu0 0.0
        %1531 = vmatpush1.xpose.msra.mxu0 0.0
        %1532 = vmatprep.subr.mxu0 0.0
        %1533 = vmatpush1.xpose.msra.mxu0 0.0
        %1534 = vmatprep.subr.mxu0 0.0
        %1535 = vmatpush1.xpose.msra.mxu0 0.0
        %1536 = vmatprep.subr.mxu0 0.0
        %1537 = vmatpush1.xpose.msra.mxu0 0.0
        %1538 = vmatprep.subr.mxu0 0.0
        %1539 = vmatpush1.xpose.msra.mxu0 0.0
        %1540 = vmatprep.subr.mxu0 0.0
        %1541 = vmatpush1.xpose.msra.mxu0 0.0
        %1542 = vmatprep.subr.mxu0 0.0
        %1543 = vmatpush1.xpose.msra.mxu0 0.0
        %1544 = vmatprep.subr.mxu0 0.0
        %1545 = vmatpush1.xpose.msra.mxu0 0.0
        %1546 = vmatprep.subr.mxu0 0.0
        %1547 = vmatpush1.xpose.msra.mxu0 0.0
        %1548 = vmatprep.subr.mxu0 0.0
        %1549 = vmatpush1.xpose.msra.mxu0 0.0
        %1550 = vmatprep.subr.mxu0 0.0
        %1551 = vmatpush1.xpose.msra.mxu0 0.0
        %1552 = vmatprep.subr.mxu0 0.0
        %1553 = vmatpush1.xpose.msra.mxu0 0.0
        %1554 = vmatprep.subr.mxu0 0.0
        %1555 = vmatpush1.xpose.msra.mxu0 0.0
        %1556 = vmatprep.subr.mxu0 0.0
        %1557 = vmatpush1.xpose.msra.mxu0 0.0
        %1558 = vmatprep.subr.mxu0 0.0
        %1559 = vmatpush1.xpose.msra.mxu0 0.0
        %1560 = vmatprep.subr.mxu0 0.0
        %1561 = vmatpush1.xpose.msra.mxu0 0.0
        %1562 = vmatprep.subr.mxu0 0.0
        %1563 = vmatpush1.xpose.msra.mxu0 0.0
        %1564 = vmatprep.mubr.f32.mxu0 0.0
        %1565 = vmatmul.mubr.f32.gmra.mrb[0].mxu0 %v1496
        %v1566 = vpop.f32.mrb[0].mxu0
        %v1567 = vadd.f32 0.0, %v1566
        %v1568 = vpop.f32.mrb[0].mxu0
        %1569 = vdwg.mxu0
        %v1570 = vmul.f32 %v1567, 0.35355338
        %v1571 = vadd.f32 %v1570, %v1068
        %v1572 = vsel %vm988, %v1571, -inf
        %1573 = vmax.xlane.f32.xlu0 %v1572
        %v1574 = vpop.xlane.xlu0 %1573
        %v1575 = vsub.f32 %v1571, %v1574
        %v1576 = vmul.f32 %v1575, 1.442695
        %v1577 = vpow.pop %v1576
        %v1578 = vsel %vm988, %v1577, 0.0
        %1579 = vadd.xlane.f32.xlu0 %v1578
        %v1580 = vpop.xlane.xlu0 %1579
        %v1581 = vrcp.pop %v1580
        %v1582 = vmul.f32 %v1577, %v1581
        %1583 = vrot.lane.b32.xlu0 %v976, 40
        %v1584 = vpop.permute.xlu0 %1583
        %v1587 = vsel %vm988, %v1582, 0
        %1589 = vmatprep.subr.mxu0 0.0
        %1590 = vmatpush1.msra.mxu0 %v1584
        %1591 = vmatprep.subr.mxu0 0.0
        %1592 = vmatpush1.msra.mxu0 0.0
        %1593 = vmatprep.subr.mxu0 0.0
        %1594 = vmatpush1.msra.mxu0 0.0
        %1595 = vmatprep.subr.mxu0 0.0
        %1596 = vmatpush1.msra.mxu0 0.0
        %1597 = vmatprep.subr.mxu0 0.0
        %1598 = vmatpush1.msra.mxu0 0.0
        %1599 = vmatprep.subr.mxu0 0.0
        %1600 = vmatpush1.msra.mxu0 0.0
        %1601 = vmatprep.subr.mxu0 0.0
        %1602 = vmatpush1.msra.mxu0 0.0
        %1603 = vmatprep.subr.mxu0 0.0
        %1604 = vmatpush1.msra.mxu0 0.0
        %1605 = vmatprep.subr.mxu0 0.0
        %1606 = vmatpush1.msra.mxu0 0.0
        %1607 = vmatprep.subr.mxu0 0.0
        %1608 = vmatpush1.msra.mxu0 0.0
        %1609 = vmatprep.subr.mxu0 0.0
        %1610 = vmatpush1.msra.mxu0 0.0
        %1611 = vmatprep.subr.mxu0 0.0
        %1612 = vmatpush1.msra.mxu0 0.0
        %1613 = vmatprep.subr.mxu0 0.0
        %1614 = vmatpush1.msra.mxu0 0.0
        %1615 = vmatprep.subr.mxu0 0.0
        %1616 = vmatpush1.msra.mxu0 0.0
        %1617 = vmatprep.subr.mxu0 0.0
        %1618 = vmatpush1.msra.mxu0 0.0
        %1619 = vmatprep.subr.mxu0 0.0
        %1620 = vmatpush1.msra.mxu0 0.0
        %1621 = vmatprep.subr.mxu0 0.0
        %1622 = vmatpush1.msra.mxu0 0.0
        %1623 = vmatprep.subr.mxu0 0.0
        %1624 = vmatpush1.msra.mxu0 0.0
        %1625 = vmatprep.subr.mxu0 0.0
        %1626 = vmatpush1.msra.mxu0 0.0
        %1627 = vmatprep.subr.mxu0 0.0
        %1628 = vmatpush1.msra.mxu0 0.0
        %1629 = vmatprep.subr.mxu0 0.0
        %1630 = vmatpush1.msra.mxu0 0.0
        %1631 = vmatprep.subr.mxu0 0.0
        %1632 = vmatpush1.msra.mxu0 0.0
        %1633 = vmatprep.subr.mxu0 0.0
        %1634 = vmatpush1.msra.mxu0 0.0
        %1635 = vmatprep.subr.mxu0 0.0
        %1636 = vmatpush1.msra.mxu0 0.0
        %1637 = vmatprep.subr.mxu0 0.0
        %1638 = vmatpush1.msra.mxu0 0.0
        %1639 = vmatprep.subr.mxu0 0.0
        %1640 = vmatpush1.msra.mxu0 0.0
        %1641 = vmatprep.subr.mxu0 0.0
        %1642 = vmatpush1.msra.mxu0 0.0
        %1643 = vmatprep.subr.mxu0 0.0
        %1644 = vmatpush1.msra.mxu0 0.0
        %1645 = vmatprep.subr.mxu0 0.0
        %1646 = vmatpush1.msra.mxu0 0.0
        %1647 = vmatprep.subr.mxu0 0.0
        %1648 = vmatpush1.msra.mxu0 0.0
        %1649 = vmatprep.subr.mxu0 0.0
        %1650 = vmatpush1.msra.mxu0 0.0
        %1651 = vmatprep.subr.mxu0 0.0
        %1652 = vmatpush1.msra.mxu0 0.0
        %1653 = vmatprep.mubr.f32.mxu0 0.0
        %1654 = vmatmul.mubr.f32.gmra.mrb[0].mxu0 %v1587
        %v1655 = vpop.f32.mrb[0].mxu0
        %v1656 = vadd.f32 0.0, %v1655
        %v1657 = vpop.f32.mrb[0].mxu0
        %1658 = vdwg.mxu0
        %1660 = vrot.lane.b32.xlu0 %v1322, 8
        %v1661 = vpop.permute.xlu0 %1660
        %1664 = vrot.lane.b32.xlu0 %v1489, 16
        %v1665 = vpop.permute.xlu0 %1664
        %1668 = vrot.lane.b32.xlu0 %v1656, 24
        %v1669 = vpop.permute.xlu0 %1668
        %v1671 = vsel %vm988, %v1155, %v1661
        %vm1672 = vcmask 130048
        %v1673 = vsel %vm1672, %v1671, %v1665
        %vm1674 = vcmask 195584
        %v1675 = vsel %vm1674, %v1673, %v1669
        %s1676 = scalar_lea.vmem %s2, 1
        %v1677 = vld [vmem:[%s1676] sm:$0x1]
        %1679 = vrot.lane.b32.xlu0 %v981, 120
        %v1680 = vpop.permute.xlu0 %1679
        %v1681 = vsel %vm988, %v981, 0
        %v1683 = vsel %vm988, %v1680, 0
        %1685 = vmatprep.subr.mxu0 0.0
        %1686 = vmatpush1.xpose.msra.mxu0 %v1683
        %1687 = vmatprep.subr.mxu0 0.0
        %1688 = vmatpush1.xpose.msra.mxu0 0.0
        %1689 = vmatprep.subr.mxu0 0.0
        %1690 = vmatpush1.xpose.msra.mxu0 0.0
        %1691 = vmatprep.subr.mxu0 0.0
        %1692 = vmatpush1.xpose.msra.mxu0 0.0
        %1693 = vmatprep.subr.mxu0 0.0
        %1694 = vmatpush1.xpose.msra.mxu0 0.0
        %1695 = vmatprep.subr.mxu0 0.0
        %1696 = vmatpush1.xpose.msra.mxu0 0.0
        %1697 = vmatprep.subr.mxu0 0.0
        %1698 = vmatpush1.xpose.msra.mxu0 0.0
        %1699 = vmatprep.subr.mxu0 0.0
        %1700 = vmatpush1.xpose.msra.mxu0 0.0
        %1701 = vmatprep.subr.mxu0 0.0
        %1702 = vmatpush1.xpose.msra.mxu0 0.0
        %1703 = vmatprep.subr.mxu0 0.0
        %1704 = vmatpush1.xpose.msra.mxu0 0.0
        %1705 = vmatprep.subr.mxu0 0.0
        %1706 = vmatpush1.xpose.msra.mxu0 0.0
        %1707 = vmatprep.subr.mxu0 0.0
        %1708 = vmatpush1.xpose.msra.mxu0 0.0
        %1709 = vmatprep.subr.mxu0 0.0
        %1710 = vmatpush1.xpose.msra.mxu0 0.0
        %1711 = vmatprep.subr.mxu0 0.0
        %1712 = vmatpush1.xpose.msra.mxu0 0.0
        %1713 = vmatprep.subr.mxu0 0.0
        %1714 = vmatpush1.xpose.msra.mxu0 0.0
        %1715 = vmatprep.subr.mxu0 0.0
        %1716 = vmatpush1.xpose.msra.mxu0 0.0
        %1717 = vmatprep.subr.mxu0 0.0
        %1718 = vmatpush1.xpose.msra.mxu0 0.0
        %1719 = vmatprep.subr.mxu0 0.0
        %1720 = vmatpush1.xpose.msra.mxu0 0.0
        %1721 = vmatprep.subr.mxu0 0.0
        %1722 = vmatpush1.xpose.msra.mxu0 0.0
        %1723 = vmatprep.subr.mxu0 0.0
        %1724 = vmatpush1.xpose.msra.mxu0 0.0
        %1725 = vmatprep.subr.mxu0 0.0
        %1726 = vmatpush1.xpose.msra.mxu0 0.0
        %1727 = vmatprep.subr.mxu0 0.0
        %1728 = vmatpush1.xpose.msra.mxu0 0.0
        %1729 = vmatprep.subr.mxu0 0.0
        %1730 = vmatpush1.xpose.msra.mxu0 0.0
        %1731 = vmatprep.subr.mxu0 0.0
        %1732 = vmatpush1.xpose.msra.mxu0 0.0
        %1733 = vmatprep.subr.mxu0 0.0
        %1734 = vmatpush1.xpose.msra.mxu0 0.0
        %1735 = vmatprep.subr.mxu0 0.0
        %1736 = vmatpush1.xpose.msra.mxu0 0.0
        %1737 = vmatprep.subr.mxu0 0.0
        %1738 = vmatpush1.xpose.msra.mxu0 0.0
        %1739 = vmatprep.subr.mxu0 0.0
        %1740 = vmatpush1.xpose.msra.mxu0 0.0
        %1741 = vmatprep.subr.mxu0 0.0
        %1742 = vmatpush1.xpose.msra.mxu0 0.0
        %1743 = vmatprep.subr.mxu0 0.0
        %1744 = vmatpush1.xpose.msra.mxu0 0.0
        %1745 = vmatprep.subr.mxu0 0.0
        %1746 = vmatpush1.xpose.msra.mxu0 0.0
        %1747 = vmatprep.subr.mxu0 0.0
        %1748 = vmatpush1.xpose.msra.mxu0 0.0
        %1749 = vmatprep.mubr.f32.mxu0 0.0
        %1750 = vmatmul.mubr.f32.gmra.mrb[0].mxu0 %v1681
        %v1751 = vpop.f32.mrb[0].mxu0
        %v1752 = vadd.f32 0.0, %v1751
        %v1753 = vpop.f32.mrb[0].mxu0
        %1754 = vdwg.mxu0
        %v1755 = vmul.f32 %v1752, 0.35355338
        %v1757 = vlaneseq
        %v1758 = vshrl.u32 %v1757, 7
        %v1759 = vsub.s32 0, %v1758
        %v1760 = vrot.slane %v1677, %v1759
        %v1762 = vadd.f32 %v1755, %v1760
        %v1763 = vsel %vm988, %v1762, -inf
        %1764 = vmax.xlane.f32.xlu0 %v1763
        %v1765 = vpop.xlane.xlu0 %1764
        %v1766 = vsub.f32 %v1762, %v1765
        %v1767 = vmul.f32 %v1766, 1.442695
        %v1768 = vpow.pop %v1767
        %v1769 = vsel %vm988, %v1768, 0.0
        %1770 = vadd.xlane.f32.xlu0 %v1769
        %v1771 = vpop.xlane.xlu0 %1770
        %v1772 = vrcp.pop %v1771
        %v1773 = vmul.f32 %v1768, %v1772
        %1774 = vrot.lane.b32.xlu0 %v981, 112
        %v1775 = vpop.permute.xlu0 %1774
        %v1778 = vsel %vm988, %v1773, 0
        %1780 = vmatprep.subr.mxu0 0.0
        %1781 = vmatpush1.msra.mxu0 %v1775
        %1782 = vmatprep.subr.mxu0 0.0
        %1783 = vmatpush1.msra.mxu0 0.0
        %1784 = vmatprep.subr.mxu0 0.0
        %1785 = vmatpush1.msra.mxu0 0.0
        %1786 = vmatprep.subr.mxu0 0.0
        %1787 = vmatpush1.msra.mxu0 0.0
        %1788 = vmatprep.subr.mxu0 0.0
        %1789 = vmatpush1.msra.mxu0 0.0
        %1790 = vmatprep.subr.mxu0 0.0
        %1791 = vmatpush1.msra.mxu0 0.0
        %1792 = vmatprep.subr.mxu0 0.0
        %1793 = vmatpush1.msra.mxu0 0.0
        %1794 = vmatprep.subr.mxu0 0.0
        %1795 = vmatpush1.msra.mxu0 0.0
        %1796 = vmatprep.subr.mxu0 0.0
        %1797 = vmatpush1.msra.mxu0 0.0
        %1798 = vmatprep.subr.mxu0 0.0
        %1799 = vmatpush1.msra.mxu0 0.0
        %1800 = vmatprep.subr.mxu0 0.0
        %1801 = vmatpush1.msra.mxu0 0.0
        %1802 = vmatprep.subr.mxu0 0.0
        %1803 = vmatpush1.msra.mxu0 0.0
        %1804 = vmatprep.subr.mxu0 0.0
        %1805 = vmatpush1.msra.mxu0 0.0
        %1806 = vmatprep.subr.mxu0 0.0
        %1807 = vmatpush1.msra.mxu0 0.0
        %1808 = vmatprep.subr.mxu0 0.0
        %1809 = vmatpush1.msra.mxu0 0.0
        %1810 = vmatprep.subr.mxu0 0.0
        %1811 = vmatpush1.msra.mxu0 0.0
        %1812 = vmatprep.subr.mxu0 0.0
        %1813 = vmatpush1.msra.mxu0 0.0
        %1814 = vmatprep.subr.mxu0 0.0
        %1815 = vmatpush1.msra.mxu0 0.0
        %1816 = vmatprep.subr.mxu0 0.0
        %1817 = vmatpush1.msra.mxu0 0.0
        %1818 = vmatprep.subr.mxu0 0.0
        %1819 = vmatpush1.msra.mxu0 0.0
        %1820 = vmatprep.subr.mxu0 0.0
        %1821 = vmatpush1.msra.mxu0 0.0
        %1822 = vmatprep.subr.mxu0 0.0
        %1823 = vmatpush1.msra.mxu0 0.0
        %1824 = vmatprep.subr.mxu0 0.0
        %1825 = vmatpush1.msra.mxu0 0.0
        %1826 = vmatprep.subr.mxu0 0.0
        %1827 = vmatpush1.msra.mxu0 0.0
        %1828 = vmatprep.subr.mxu0 0.0
        %1829 = vmatpush1.msra.mxu0 0.0
        %1830 = vmatprep.subr.mxu0 0.0
        %1831 = vmatpush1.msra.mxu0 0.0
        %1832 = vmatprep.subr.mxu0 0.0
        %1833 = vmatpush1.msra.mxu0 0.0
        %1834 = vmatprep.subr.mxu0 0.0
        %1835 = vmatpush1.msra.mxu0 0.0
        %1836 = vmatprep.subr.mxu0 0.0
        %1837 = vmatpush1.msra.mxu0 0.0
        %1838 = vmatprep.subr.mxu0 0.0
        %1839 = vmatpush1.msra.mxu0 0.0
        %1840 = vmatprep.subr.mxu0 0.0
        %1841 = vmatpush1.msra.mxu0 0.0
        %1842 = vmatprep.subr.mxu0 0.0
        %1843 = vmatpush1.msra.mxu0 0.0
        %1844 = vmatprep.mubr.f32.mxu0 0.0
        %1845 = vmatmul.mubr.f32.gmra.mrb[0].mxu0 %v1778
        %v1846 = vpop.f32.mrb[0].mxu0
        %v1847 = vadd.f32 0.0, %v1846
        %v1848 = vpop.f32.mrb[0].mxu0
        %1849 = vdwg.mxu0
        %1850 = vrot.lane.b32.xlu0 %v981, 104
        %v1851 = vpop.permute.xlu0 %1850
        %1852 = vrot.lane.b32.xlu0 %v981, 96
        %v1853 = vpop.permute.xlu0 %1852
        %v1854 = vsel %vm988, %v1851, 0
        %v1856 = vsel %vm988, %v1853, 0
        %1858 = vmatprep.subr.mxu0 0.0
        %1859 = vmatpush1.xpose.msra.mxu0 %v1856
        %1860 = vmatprep.subr.mxu0 0.0
        %1861 = vmatpush1.xpose.msra.mxu0 0.0
        %1862 = vmatprep.subr.mxu0 0.0
        %1863 = vmatpush1.xpose.msra.mxu0 0.0
        %1864 = vmatprep.subr.mxu0 0.0
        %1865 = vmatpush1.xpose.msra.mxu0 0.0
        %1866 = vmatprep.subr.mxu0 0.0
        %1867 = vmatpush1.xpose.msra.mxu0 0.0
        %1868 = vmatprep.subr.mxu0 0.0
        %1869 = vmatpush1.xpose.msra.mxu0 0.0
        %1870 = vmatprep.subr.mxu0 0.0
        %1871 = vmatpush1.xpose.msra.mxu0 0.0
        %1872 = vmatprep.subr.mxu0 0.0
        %1873 = vmatpush1.xpose.msra.mxu0 0.0
        %1874 = vmatprep.subr.mxu0 0.0
        %1875 = vmatpush1.xpose.msra.mxu0 0.0
        %1876 = vmatprep.subr.mxu0 0.0
        %1877 = vmatpush1.xpose.msra.mxu0 0.0
        %1878 = vmatprep.subr.mxu0 0.0
        %1879 = vmatpush1.xpose.msra.mxu0 0.0
        %1880 = vmatprep.subr.mxu0 0.0
        %1881 = vmatpush1.xpose.msra.mxu0 0.0
        %1882 = vmatprep.subr.mxu0 0.0
        %1883 = vmatpush1.xpose.msra.mxu0 0.0
        %1884 = vmatprep.subr.mxu0 0.0
        %1885 = vmatpush1.xpose.msra.mxu0 0.0
        %1886 = vmatprep.subr.mxu0 0.0
        %1887 = vmatpush1.xpose.msra.mxu0 0.0
        %1888 = vmatprep.subr.mxu0 0.0
        %1889 = vmatpush1.xpose.msra.mxu0 0.0
        %1890 = vmatprep.subr.mxu0 0.0
        %1891 = vmatpush1.xpose.msra.mxu0 0.0
        %1892 = vmatprep.subr.mxu0 0.0
        %1893 = vmatpush1.xpose.msra.mxu0 0.0
        %1894 = vmatprep.subr.mxu0 0.0
        %1895 = vmatpush1.xpose.msra.mxu0 0.0
        %1896 = vmatprep.subr.mxu0 0.0
        %1897 = vmatpush1.xpose.msra.mxu0 0.0
        %1898 = vmatprep.subr.mxu0 0.0
        %1899 = vmatpush1.xpose.msra.mxu0 0.0
        %1900 = vmatprep.subr.mxu0 0.0
        %1901 = vmatpush1.xpose.msra.mxu0 0.0
        %1902 = vmatprep.subr.mxu0 0.0
        %1903 = vmatpush1.xpose.msra.mxu0 0.0
        %1904 = vmatprep.subr.mxu0 0.0
        %1905 = vmatpush1.xpose.msra.mxu0 0.0
        %1906 = vmatprep.subr.mxu0 0.0
        %1907 = vmatpush1.xpose.msra.mxu0 0.0
        %1908 = vmatprep.subr.mxu0 0.0
        %1909 = vmatpush1.xpose.msra.mxu0 0.0
        %1910 = vmatprep.subr.mxu0 0.0
        %1911 = vmatpush1.xpose.msra.mxu0 0.0
        %1912 = vmatprep.subr.mxu0 0.0
        %1913 = vmatpush1.xpose.msra.mxu0 0.0
        %1914 = vmatprep.subr.mxu0 0.0
        %1915 = vmatpush1.xpose.msra.mxu0 0.0
        %1916 = vmatprep.subr.mxu0 0.0
        %1917 = vmatpush1.xpose.msra.mxu0 0.0
        %1918 = vmatprep.subr.mxu0 0.0
        %1919 = vmatpush1.xpose.msra.mxu0 0.0
        %1920 = vmatprep.subr.mxu0 0.0
        %1921 = vmatpush1.xpose.msra.mxu0 0.0
        %1922 = vmatprep.mubr.f32.mxu0 0.0
        %1923 = vmatmul.mubr.f32.gmra.mrb[0].mxu0 %v1854
        %v1924 = vpop.f32.mrb[0].mxu0
        %v1925 = vadd.f32 0.0, %v1924
        %v1926 = vpop.f32.mrb[0].mxu0
        %1927 = vdwg.mxu0
        %v1928 = vmul.f32 %v1925, 0.35355338
        %v1929 = vadd.f32 %v1928, %v1760
        %v1930 = vsel %vm988, %v1929, -inf
        %1931 = vmax.xlane.f32.xlu0 %v1930
        %v1932 = vpop.xlane.xlu0 %1931
        %v1933 = vsub.f32 %v1929, %v1932
        %v1934 = vmul.f32 %v1933, 1.442695
        %v1935 = vpow.pop %v1934
        %v1936 = vsel %vm988, %v1935, 0.0
        %1937 = vadd.xlane.f32.xlu0 %v1936
        %v1938 = vpop.xlane.xlu0 %1937
        %v1939 = vrcp.pop %v1938
        %v1940 = vmul.f32 %v1935, %v1939
        %1941 = vrot.lane.b32.xlu0 %v981, 88
        %v1942 = vpop.permute.xlu0 %1941
        %v1945 = vsel %vm988, %v1940, 0
        %1947 = vmatprep.subr.mxu0 0.0
        %1948 = vmatpush1.msra.mxu0 %v1942
        %1949 = vmatprep.subr.mxu0 0.0
        %1950 = vmatpush1.msra.mxu0 0.0
        %1951 = vmatprep.subr.mxu0 0.0
        %1952 = vmatpush1.msra.mxu0 0.0
        %1953 = vmatprep.subr.mxu0 0.0
        %1954 = vmatpush1.msra.mxu0 0.0
        %1955 = vmatprep.subr.mxu0 0.0
        %1956 = vmatpush1.msra.mxu0 0.0
        %1957 = vmatprep.subr.mxu0 0.0
        %1958 = vmatpush1.msra.mxu0 0.0
        %1959 = vmatprep.subr.mxu0 0.0
        %1960 = vmatpush1.msra.mxu0 0.0
        %1961 = vmatprep.subr.mxu0 0.0
        %1962 = vmatpush1.msra.mxu0 0.0
        %1963 = vmatprep.subr.mxu0 0.0
        %1964 = vmatpush1.msra.mxu0 0.0
        %1965 = vmatprep.subr.mxu0 0.0
        %1966 = vmatpush1.msra.mxu0 0.0
        %1967 = vmatprep.subr.mxu0 0.0
        %1968 = vmatpush1.msra.mxu0 0.0
        %1969 = vmatprep.subr.mxu0 0.0
        %1970 = vmatpush1.msra.mxu0 0.0
        %1971 = vmatprep.subr.mxu0 0.0
        %1972 = vmatpush1.msra.mxu0 0.0
        %1973 = vmatprep.subr.mxu0 0.0
        %1974 = vmatpush1.msra.mxu0 0.0
        %1975 = vmatprep.subr.mxu0 0.0
        %1976 = vmatpush1.msra.mxu0 0.0
        %1977 = vmatprep.subr.mxu0 0.0
        %1978 = vmatpush1.msra.mxu0 0.0
        %1979 = vmatprep.subr.mxu0 0.0
        %1980 = vmatpush1.msra.mxu0 0.0
        %1981 = vmatprep.subr.mxu0 0.0
        %1982 = vmatpush1.msra.mxu0 0.0
        %1983 = vmatprep.subr.mxu0 0.0
        %1984 = vmatpush1.msra.mxu0 0.0
        %1985 = vmatprep.subr.mxu0 0.0
        %1986 = vmatpush1.msra.mxu0 0.0
        %1987 = vmatprep.subr.mxu0 0.0
        %1988 = vmatpush1.msra.mxu0 0.0
        %1989 = vmatprep.subr.mxu0 0.0
        %1990 = vmatpush1.msra.mxu0 0.0
        %1991 = vmatprep.subr.mxu0 0.0
        %1992 = vmatpush1.msra.mxu0 0.0
        %1993 = vmatprep.subr.mxu0 0.0
        %1994 = vmatpush1.msra.mxu0 0.0
        %1995 = vmatprep.subr.mxu0 0.0
        %1996 = vmatpush1.msra.mxu0 0.0
        %1997 = vmatprep.subr.mxu0 0.0
        %1998 = vmatpush1.msra.mxu0 0.0
        %1999 = vmatprep.subr.mxu0 0.0
        %2000 = vmatpush1.msra.mxu0 0.0
        %2001 = vmatprep.subr.mxu0 0.0
        %2002 = vmatpush1.msra.mxu0 0.0
        %2003 = vmatprep.subr.mxu0 0.0
        %2004 = vmatpush1.msra.mxu0 0.0
        %2005 = vmatprep.subr.mxu0 0.0
        %2006 = vmatpush1.msra.mxu0 0.0
        %2007 = vmatprep.subr.mxu0 0.0
        %2008 = vmatpush1.msra.mxu0 0.0
        %2009 = vmatprep.subr.mxu0 0.0
        %2010 = vmatpush1.msra.mxu0 0.0
        %2011 = vmatprep.mubr.f32.mxu0 0.0
        %2012 = vmatmul.mubr.f32.gmra.mrb[0].mxu0 %v1945
        %v2013 = vpop.f32.mrb[0].mxu0
        %v2014 = vadd.f32 0.0, %v2013
        %v2015 = vpop.f32.mrb[0].mxu0
        %2016 = vdwg.mxu0
        %2017 = vrot.lane.b32.xlu0 %v981, 80
        %v2018 = vpop.permute.xlu0 %2017
        %2019 = vrot.lane.b32.xlu0 %v981, 72
        %v2020 = vpop.permute.xlu0 %2019
        %v2021 = vsel %vm988, %v2018, 0
        %v2023 = vsel %vm988, %v2020, 0
        %2025 = vmatprep.subr.mxu0 0.0
        %2026 = vmatpush1.xpose.msra.mxu0 %v2023
        %2027 = vmatprep.subr.mxu0 0.0
        %2028 = vmatpush1.xpose.msra.mxu0 0.0
        %2029 = vmatprep.subr.mxu0 0.0
        %2030 = vmatpush1.xpose.msra.mxu0 0.0
        %2031 = vmatprep.subr.mxu0 0.0
        %2032 = vmatpush1.xpose.msra.mxu0 0.0
        %2033 = vmatprep.subr.mxu0 0.0
        %2034 = vmatpush1.xpose.msra.mxu0 0.0
        %2035 = vmatprep.subr.mxu0 0.0
        %2036 = vmatpush1.xpose.msra.mxu0 0.0
        %2037 = vmatprep.subr.mxu0 0.0
        %2038 = vmatpush1.xpose.msra.mxu0 0.0
        %2039 = vmatprep.subr.mxu0 0.0
        %2040 = vmatpush1.xpose.msra.mxu0 0.0
        %2041 = vmatprep.subr.mxu0 0.0
        %2042 = vmatpush1.xpose.msra.mxu0 0.0
        %2043 = vmatprep.subr.mxu0 0.0
        %2044 = vmatpush1.xpose.msra.mxu0 0.0
        %2045 = vmatprep.subr.mxu0 0.0
        %2046 = vmatpush1.xpose.msra.mxu0 0.0
        %2047 = vmatprep.subr.mxu0 0.0
        %2048 = vmatpush1.xpose.msra.mxu0 0.0
        %2049 = vmatprep.subr.mxu0 0.0
        %2050 = vmatpush1.xpose.msra.mxu0 0.0
        %2051 = vmatprep.subr.mxu0 0.0
        %2052 = vmatpush1.xpose.msra.mxu0 0.0
        %2053 = vmatprep.subr.mxu0 0.0
        %2054 = vmatpush1.xpose.msra.mxu0 0.0
        %2055 = vmatprep.subr.mxu0 0.0
        %2056 = vmatpush1.xpose.msra.mxu0 0.0
        %2057 = vmatprep.subr.mxu0 0.0
        %2058 = vmatpush1.xpose.msra.mxu0 0.0
        %2059 = vmatprep.subr.mxu0 0.0
        %2060 = vmatpush1.xpose.msra.mxu0 0.0
        %2061 = vmatprep.subr.mxu0 0.0
        %2062 = vmatpush1.xpose.msra.mxu0 0.0
        %2063 = vmatprep.subr.mxu0 0.0
        %2064 = vmatpush1.xpose.msra.mxu0 0.0
        %2065 = vmatprep.subr.mxu0 0.0
        %2066 = vmatpush1.xpose.msra.mxu0 0.0
        %2067 = vmatprep.subr.mxu0 0.0
        %2068 = vmatpush1.xpose.msra.mxu0 0.0
        %2069 = vmatprep.subr.mxu0 0.0
        %2070 = vmatpush1.xpose.msra.mxu0 0.0
        %2071 = vmatprep.subr.mxu0 0.0
        %2072 = vmatpush1.xpose.msra.mxu0 0.0
        %2073 = vmatprep.subr.mxu0 0.0
        %2074 = vmatpush1.xpose.msra.mxu0 0.0
        %2075 = vmatprep.subr.mxu0 0.0
        %2076 = vmatpush1.xpose.msra.mxu0 0.0
        %2077 = vmatprep.subr.mxu0 0.0
        %2078 = vmatpush1.xpose.msra.mxu0 0.0
        %2079 = vmatprep.subr.mxu0 0.0
        %2080 = vmatpush1.xpose.msra.mxu0 0.0
        %2081 = vmatprep.subr.mxu0 0.0
        %2082 = vmatpush1.xpose.msra.mxu0 0.0
        %2083 = vmatprep.subr.mxu0 0.0
        %2084 = vmatpush1.xpose.msra.mxu0 0.0
        %2085 = vmatprep.subr.mxu0 0.0
        %2086 = vmatpush1.xpose.msra.mxu0 0.0
        %2087 = vmatprep.subr.mxu0 0.0
        %2088 = vmatpush1.xpose.msra.mxu0 0.0
        %2089 = vmatprep.mubr.f32.mxu0 0.0
        %2090 = vmatmul.mubr.f32.gmra.mrb[0].mxu0 %v2021
        %v2091 = vpop.f32.mrb[0].mxu0
        %v2092 = vadd.f32 0.0, %v2091
        %v2093 = vpop.f32.mrb[0].mxu0
        %2094 = vdwg.mxu0
        %v2095 = vmul.f32 %v2092, 0.35355338
        %v2096 = vadd.f32 %v2095, %v1760
        %v2097 = vsel %vm988, %v2096, -inf
        %2098 = vmax.xlane.f32.xlu0 %v2097
        %v2099 = vpop.xlane.xlu0 %2098
        %v2100 = vsub.f32 %v2096, %v2099
        %v2101 = vmul.f32 %v2100, 1.442695
        %v2102 = vpow.pop %v2101
        %v2103 = vsel %vm988, %v2102, 0.0
        %2104 = vadd.xlane.f32.xlu0 %v2103
        %v2105 = vpop.xlane.xlu0 %2104
        %v2106 = vrcp.pop %v2105
        %v2107 = vmul.f32 %v2102, %v2106
        %2108 = vrot.lane.b32.xlu0 %v981, 64
        %v2109 = vpop.permute.xlu0 %2108
        %v2112 = vsel %vm988, %v2107, 0
        %2114 = vmatprep.subr.mxu0 0.0
        %2115 = vmatpush1.msra.mxu0 %v2109
        %2116 = vmatprep.subr.mxu0 0.0
        %2117 = vmatpush1.msra.mxu0 0.0
        %2118 = vmatprep.subr.mxu0 0.0
        %2119 = vmatpush1.msra.mxu0 0.0
        %2120 = vmatprep.subr.mxu0 0.0
        %2121 = vmatpush1.msra.mxu0 0.0
        %2122 = vmatprep.subr.mxu0 0.0
        %2123 = vmatpush1.msra.mxu0 0.0
        %2124 = vmatprep.subr.mxu0 0.0
        %2125 = vmatpush1.msra.mxu0 0.0
        %2126 = vmatprep.subr.mxu0 0.0
        %2127 = vmatpush1.msra.mxu0 0.0
        %2128 = vmatprep.subr.mxu0 0.0
        %2129 = vmatpush1.msra.mxu0 0.0
        %2130 = vmatprep.subr.mxu0 0.0
        %2131 = vmatpush1.msra.mxu0 0.0
        %2132 = vmatprep.subr.mxu0 0.0
        %2133 = vmatpush1.msra.mxu0 0.0
        %2134 = vmatprep.subr.mxu0 0.0
        %2135 = vmatpush1.msra.mxu0 0.0
        %2136 = vmatprep.subr.mxu0 0.0
        %2137 = vmatpush1.msra.mxu0 0.0
        %2138 = vmatprep.subr.mxu0 0.0
        %2139 = vmatpush1.msra.mxu0 0.0
        %2140 = vmatprep.subr.mxu0 0.0
        %2141 = vmatpush1.msra.mxu0 0.0
        %2142 = vmatprep.subr.mxu0 0.0
        %2143 = vmatpush1.msra.mxu0 0.0
        %2144 = vmatprep.subr.mxu0 0.0
        %2145 = vmatpush1.msra.mxu0 0.0
        %2146 = vmatprep.subr.mxu0 0.0
        %2147 = vmatpush1.msra.mxu0 0.0
        %2148 = vmatprep.subr.mxu0 0.0
        %2149 = vmatpush1.msra.mxu0 0.0
        %2150 = vmatprep.subr.mxu0 0.0
        %2151 = vmatpush1.msra.mxu0 0.0
        %2152 = vmatprep.subr.mxu0 0.0
        %2153 = vmatpush1.msra.mxu0 0.0
        %2154 = vmatprep.subr.mxu0 0.0
        %2155 = vmatpush1.msra.mxu0 0.0
        %2156 = vmatprep.subr.mxu0 0.0
        %2157 = vmatpush1.msra.mxu0 0.0
        %2158 = vmatprep.subr.mxu0 0.0
        %2159 = vmatpush1.msra.mxu0 0.0
        %2160 = vmatprep.subr.mxu0 0.0
        %2161 = vmatpush1.msra.mxu0 0.0
        %2162 = vmatprep.subr.mxu0 0.0
        %2163 = vmatpush1.msra.mxu0 0.0
        %2164 = vmatprep.subr.mxu0 0.0
        %2165 = vmatpush1.msra.mxu0 0.0
        %2166 = vmatprep.subr.mxu0 0.0
        %2167 = vmatpush1.msra.mxu0 0.0
        %2168 = vmatprep.subr.mxu0 0.0
        %2169 = vmatpush1.msra.mxu0 0.0
        %2170 = vmatprep.subr.mxu0 0.0
        %2171 = vmatpush1.msra.mxu0 0.0
        %2172 = vmatprep.subr.mxu0 0.0
        %2173 = vmatpush1.msra.mxu0 0.0
        %2174 = vmatprep.subr.mxu0 0.0
        %2175 = vmatpush1.msra.mxu0 0.0
        %2176 = vmatprep.subr.mxu0 0.0
        %2177 = vmatpush1.msra.mxu0 0.0
        %2178 = vmatprep.mubr.f32.mxu0 0.0
        %2179 = vmatmul.mubr.f32.gmra.mrb[0].mxu0 %v2112
        %v2180 = vpop.f32.mrb[0].mxu0
        %v2181 = vadd.f32 0.0, %v2180
        %v2182 = vpop.f32.mrb[0].mxu0
        %2183 = vdwg.mxu0
        %2184 = vrot.lane.b32.xlu0 %v981, 56
        %v2185 = vpop.permute.xlu0 %2184
        %2186 = vrot.lane.b32.xlu0 %v981, 48
        %v2187 = vpop.permute.xlu0 %2186
        %v2188 = vsel %vm988, %v2185, 0
        %v2190 = vsel %vm988, %v2187, 0
        %2192 = vmatprep.subr.mxu0 0.0
        %2193 = vmatpush1.xpose.msra.mxu0 %v2190
        %2194 = vmatprep.subr.mxu0 0.0
        %2195 = vmatpush1.xpose.msra.mxu0 0.0
        %2196 = vmatprep.subr.mxu0 0.0
        %2197 = vmatpush1.xpose.msra.mxu0 0.0
        %2198 = vmatprep.subr.mxu0 0.0
        %2199 = vmatpush1.xpose.msra.mxu0 0.0
        %2200 = vmatprep.subr.mxu0 0.0
        %2201 = vmatpush1.xpose.msra.mxu0 0.0
        %2202 = vmatprep.subr.mxu0 0.0
        %2203 = vmatpush1.xpose.msra.mxu0 0.0
        %2204 = vmatprep.subr.mxu0 0.0
        %2205 = vmatpush1.xpose.msra.mxu0 0.0
        %2206 = vmatprep.subr.mxu0 0.0
        %2207 = vmatpush1.xpose.msra.mxu0 0.0
        %2208 = vmatprep.subr.mxu0 0.0
        %2209 = vmatpush1.xpose.msra.mxu0 0.0
        %2210 = vmatprep.subr.mxu0 0.0
        %2211 = vmatpush1.xpose.msra.mxu0 0.0
        %2212 = vmatprep.subr.mxu0 0.0
        %2213 = vmatpush1.xpose.msra.mxu0 0.0
        %2214 = vmatprep.subr.mxu0 0.0
        %2215 = vmatpush1.xpose.msra.mxu0 0.0
        %2216 = vmatprep.subr.mxu0 0.0
        %2217 = vmatpush1.xpose.msra.mxu0 0.0
        %2218 = vmatprep.subr.mxu0 0.0
        %2219 = vmatpush1.xpose.msra.mxu0 0.0
        %2220 = vmatprep.subr.mxu0 0.0
        %2221 = vmatpush1.xpose.msra.mxu0 0.0
        %2222 = vmatprep.subr.mxu0 0.0
        %2223 = vmatpush1.xpose.msra.mxu0 0.0
        %2224 = vmatprep.subr.mxu0 0.0
        %2225 = vmatpush1.xpose.msra.mxu0 0.0
        %2226 = vmatprep.subr.mxu0 0.0
        %2227 = vmatpush1.xpose.msra.mxu0 0.0
        %2228 = vmatprep.subr.mxu0 0.0
        %2229 = vmatpush1.xpose.msra.mxu0 0.0
        %2230 = vmatprep.subr.mxu0 0.0
        %2231 = vmatpush1.xpose.msra.mxu0 0.0
        %2232 = vmatprep.subr.mxu0 0.0
        %2233 = vmatpush1.xpose.msra.mxu0 0.0
        %2234 = vmatprep.subr.mxu0 0.0
        %2235 = vmatpush1.xpose.msra.mxu0 0.0
        %2236 = vmatprep.subr.mxu0 0.0
        %2237 = vmatpush1.xpose.msra.mxu0 0.0
        %2238 = vmatprep.subr.mxu0 0.0
        %2239 = vmatpush1.xpose.msra.mxu0 0.0
        %2240 = vmatprep.subr.mxu0 0.0
        %2241 = vmatpush1.xpose.msra.mxu0 0.0
        %2242 = vmatprep.subr.mxu0 0.0
        %2243 = vmatpush1.xpose.msra.mxu0 0.0
        %2244 = vmatprep.subr.mxu0 0.0
        %2245 = vmatpush1.xpose.msra.mxu0 0.0
        %2246 = vmatprep.subr.mxu0 0.0
        %2247 = vmatpush1.xpose.msra.mxu0 0.0
        %2248 = vmatprep.subr.mxu0 0.0
        %2249 = vmatpush1.xpose.msra.mxu0 0.0
        %2250 = vmatprep.subr.mxu0 0.0
        %2251 = vmatpush1.xpose.msra.mxu0 0.0
        %2252 = vmatprep.subr.mxu0 0.0
        %2253 = vmatpush1.xpose.msra.mxu0 0.0
        %2254 = vmatprep.subr.mxu0 0.0
        %2255 = vmatpush1.xpose.msra.mxu0 0.0
        %2256 = vmatprep.mubr.f32.mxu0 0.0
        %2257 = vmatmul.mubr.f32.gmra.mrb[0].mxu0 %v2188
        %v2258 = vpop.f32.mrb[0].mxu0
        %v2259 = vadd.f32 0.0, %v2258
        %v2260 = vpop.f32.mrb[0].mxu0
        %2261 = vdwg.mxu0
        %v2262 = vmul.f32 %v2259, 0.35355338
        %v2263 = vadd.f32 %v2262, %v1760
        %v2264 = vsel %vm988, %v2263, -inf
        %2265 = vmax.xlane.f32.xlu0 %v2264
        %v2266 = vpop.xlane.xlu0 %2265
        %v2267 = vsub.f32 %v2263, %v2266
        %v2268 = vmul.f32 %v2267, 1.442695
        %v2269 = vpow.pop %v2268
        %v2270 = vsel %vm988, %v2269, 0.0
        %2271 = vadd.xlane.f32.xlu0 %v2270
        %v2272 = vpop.xlane.xlu0 %2271
        %v2273 = vrcp.pop %v2272
        %v2274 = vmul.f32 %v2269, %v2273
        %2275 = vrot.lane.b32.xlu0 %v981, 40
        %v2276 = vpop.permute.xlu0 %2275
        %v2279 = vsel %vm988, %v2274, 0
        %2281 = vmatprep.subr.mxu0 0.0
        %2282 = vmatpush1.msra.mxu0 %v2276
        %2283 = vmatprep.subr.mxu0 0.0
        %2284 = vmatpush1.msra.mxu0 0.0
        %2285 = vmatprep.subr.mxu0 0.0
        %2286 = vmatpush1.msra.mxu0 0.0
        %2287 = vmatprep.subr.mxu0 0.0
        %2288 = vmatpush1.msra.mxu0 0.0
        %2289 = vmatprep.subr.mxu0 0.0
        %2290 = vmatpush1.msra.mxu0 0.0
        %2291 = vmatprep.subr.mxu0 0.0
        %2292 = vmatpush1.msra.mxu0 0.0
        %2293 = vmatprep.subr.mxu0 0.0
        %2294 = vmatpush1.msra.mxu0 0.0
        %2295 = vmatprep.subr.mxu0 0.0
        %2296 = vmatpush1.msra.mxu0 0.0
        %2297 = vmatprep.subr.mxu0 0.0
        %2298 = vmatpush1.msra.mxu0 0.0
        %2299 = vmatprep.subr.mxu0 0.0
        %2300 = vmatpush1.msra.mxu0 0.0
        %2301 = vmatprep.subr.mxu0 0.0
        %2302 = vmatpush1.msra.mxu0 0.0
        %2303 = vmatprep.subr.mxu0 0.0
        %2304 = vmatpush1.msra.mxu0 0.0
        %2305 = vmatprep.subr.mxu0 0.0
        %2306 = vmatpush1.msra.mxu0 0.0
        %2307 = vmatprep.subr.mxu0 0.0
        %2308 = vmatpush1.msra.mxu0 0.0
        %2309 = vmatprep.subr.mxu0 0.0
        %2310 = vmatpush1.msra.mxu0 0.0
        %2311 = vmatprep.subr.mxu0 0.0
        %2312 = vmatpush1.msra.mxu0 0.0
        %2313 = vmatprep.subr.mxu0 0.0
        %2314 = vmatpush1.msra.mxu0 0.0
        %2315 = vmatprep.subr.mxu0 0.0
        %2316 = vmatpush1.msra.mxu0 0.0
        %2317 = vmatprep.subr.mxu0 0.0
        %2318 = vmatpush1.msra.mxu0 0.0
        %2319 = vmatprep.subr.mxu0 0.0
        %2320 = vmatpush1.msra.mxu0 0.0
        %2321 = vmatprep.subr.mxu0 0.0
        %2322 = vmatpush1.msra.mxu0 0.0
        %2323 = vmatprep.subr.mxu0 0.0
        %2324 = vmatpush1.msra.mxu0 0.0
        %2325 = vmatprep.subr.mxu0 0.0
        %2326 = vmatpush1.msra.mxu0 0.0
        %2327 = vmatprep.subr.mxu0 0.0
        %2328 = vmatpush1.msra.mxu0 0.0
        %2329 = vmatprep.subr.mxu0 0.0
        %2330 = vmatpush1.msra.mxu0 0.0
        %2331 = vmatprep.subr.mxu0 0.0
        %2332 = vmatpush1.msra.mxu0 0.0
        %2333 = vmatprep.subr.mxu0 0.0
        %2334 = vmatpush1.msra.mxu0 0.0
        %2335 = vmatprep.subr.mxu0 0.0
        %2336 = vmatpush1.msra.mxu0 0.0
        %2337 = vmatprep.subr.mxu0 0.0
        %2338 = vmatpush1.msra.mxu0 0.0
        %2339 = vmatprep.subr.mxu0 0.0
        %2340 = vmatpush1.msra.mxu0 0.0
        %2341 = vmatprep.subr.mxu0 0.0
        %2342 = vmatpush1.msra.mxu0 0.0
        %2343 = vmatprep.subr.mxu0 0.0
        %2344 = vmatpush1.msra.mxu0 0.0
        %2345 = vmatprep.mubr.f32.mxu0 0.0
        %2346 = vmatmul.mubr.f32.gmra.mrb[0].mxu0 %v2279
        %v2347 = vpop.f32.mrb[0].mxu0
        %v2348 = vadd.f32 0.0, %v2347
        %v2349 = vpop.f32.mrb[0].mxu0
        %2350 = vdwg.mxu0
        %2352 = vrot.lane.b32.xlu0 %v2014, 8
        %v2353 = vpop.permute.xlu0 %2352
        %2356 = vrot.lane.b32.xlu0 %v2181, 16
        %v2357 = vpop.permute.xlu0 %2356
        %2360 = vrot.lane.b32.xlu0 %v2348, 24
        %v2361 = vpop.permute.xlu0 %2360
        %v2363 = vsel %vm988, %v1847, %v2353
        %v2364 = vsel %vm1672, %v2363, %v2357
        %v2365 = vsel %vm1674, %v2364, %v2361
        %v2366 = vld [vmem:[%s796] sm:$0xff]
        %v2367 = vld [vmem:[%s796 + $0x8] sm:$0xff]
        %v2368 = vld [vmem:[%s796 + $0x10] sm:$0xff]
        %v2369 = vld [vmem:[%s796 + $0x18] sm:$0xff]
        %v2370 = vld [vmem:[%s799] sm:$0x1]
        %v2372 = vlaneseq
        %v2373 = vshrl.u32 %v2372, 7
        %v2374 = vsub.s32 0, %v2373
        %v2375 = vrot.slane %v2370, %v2374
        %v2378 = vsel %vm902, %v1675, 0
        %v2381 = vsel %vm902, %v2365, 0
        %2383 = vmatprep.subr.mxu0 0.0
        %2384 = vmatpush1.msra.mxu0 %v2366
        %2385 = vmatprep.subr.mxu0 0.0
        %2386 = vmatpush1.msra.mxu0 %v2367
        %2387 = vmatprep.subr.mxu0 0.0
        %2388 = vmatpush1.msra.mxu0 %v2368
        %2389 = vmatprep.subr.mxu0 0.0
        %2390 = vmatpush1.msra.mxu0 %v2369
        %2391 = vmatprep.subr.mxu0 0.0
        %2392 = vmatpush1.msra.mxu0 0.0
        %2393 = vmatprep.subr.mxu0 0.0
        %2394 = vmatpush1.msra.mxu0 0.0
        %2395 = vmatprep.subr.mxu0 0.0
        %2396 = vmatpush1.msra.mxu0 0.0
        %2397 = vmatprep.subr.mxu0 0.0
        %2398 = vmatpush1.msra.mxu0 0.0
        %2399 = vmatprep.subr.mxu0 0.0
        %2400 = vmatpush1.msra.mxu0 0.0
        %2401 = vmatprep.subr.mxu0 0.0
        %2402 = vmatpush1.msra.mxu0 0.0
        %2403 = vmatprep.subr.mxu0 0.0
        %2404 = vmatpush1.msra.mxu0 0.0
        %2405 = vmatprep.subr.mxu0 0.0
        %2406 = vmatpush1.msra.mxu0 0.0
        %2407 = vmatprep.subr.mxu0 0.0
        %2408 = vmatpush1.msra.mxu0 0.0
        %2409 = vmatprep.subr.mxu0 0.0
        %2410 = vmatpush1.msra.mxu0 0.0
        %2411 = vmatprep.subr.mxu0 0.0
        %2412 = vmatpush1.msra.mxu0 0.0
        %2413 = vmatprep.subr.mxu0 0.0
        %2414 = vmatpush1.msra.mxu0 0.0
        %2415 = vmatprep.subr.mxu0 0.0
        %2416 = vmatpush1.msra.mxu0 0.0
        %2417 = vmatprep.subr.mxu0 0.0
        %2418 = vmatpush1.msra.mxu0 0.0
        %2419 = vmatprep.subr.mxu0 0.0
        %2420 = vmatpush1.msra.mxu0 0.0
        %2421 = vmatprep.subr.mxu0 0.0
        %2422 = vmatpush1.msra.mxu0 0.0
        %2423 = vmatprep.subr.mxu0 0.0
        %2424 = vmatpush1.msra.mxu0 0.0
        %2425 = vmatprep.subr.mxu0 0.0
        %2426 = vmatpush1.msra.mxu0 0.0
        %2427 = vmatprep.subr.mxu0 0.0
        %2428 = vmatpush1.msra.mxu0 0.0
        %2429 = vmatprep.subr.mxu0 0.0
        %2430 = vmatpush1.msra.mxu0 0.0
        %2431 = vmatprep.subr.mxu0 0.0
        %2432 = vmatpush1.msra.mxu0 0.0
        %2433 = vmatprep.subr.mxu0 0.0
        %2434 = vmatpush1.msra.mxu0 0.0
        %2435 = vmatprep.subr.mxu0 0.0
        %2436 = vmatpush1.msra.mxu0 0.0
        %2437 = vmatprep.subr.mxu0 0.0
        %2438 = vmatpush1.msra.mxu0 0.0
        %2439 = vmatprep.subr.mxu0 0.0
        %2440 = vmatpush1.msra.mxu0 0.0
        %2441 = vmatprep.subr.mxu0 0.0
        %2442 = vmatpush1.msra.mxu0 0.0
        %2443 = vmatprep.subr.mxu0 0.0
        %2444 = vmatpush1.msra.mxu0 0.0
        %2445 = vmatprep.subr.mxu0 0.0
        %2446 = vmatpush1.msra.mxu0 0.0
        %2447 = vmatprep.mubr.f32.mxu0 0.0
        %2448 = vmatmul.mubr.f32.gmra.mrb[0].mxu0 %v2378
        %v2449 = vpop.f32.mrb[0].mxu0
        %v2450 = vadd.f32 %v2375, %v2449
        %v2451 = vpop.f32.mrb[0].mxu0
        %2452 = vmatprep.mubr.f32.mxu0 0.0
        %2453 = vmatmul.mubr.f32.gmra.mrb[0].mxu0 %v2381
        %v2454 = vpop.f32.mrb[0].mxu0
        %v2455 = vadd.f32 %v2375, %v2454
        %v2456 = vpop.f32.mrb[0].mxu0
        %2457 = vdwg.mxu0
        %v2458 = vadd.f32 %v2450, %v889
        %v2459 = vadd.f32 %v2455, %v890
        %v2460 = vld [vmem:[%s802] sm:$0x1]
        %v2461 = vld [vmem:[%s805] sm:$0x1]
        %v2462 = vsel %vm902, %v2458, 0.0
        %2463 = vadd.xlane.f32.xlu0 %v2462
        %v2464 = vpop.xlane.xlu0 %2463
        %v2465 = vsel %vm902, %v2459, 0.0
        %2466 = vadd.xlane.f32.xlu0 %v2465
        %v2467 = vpop.xlane.xlu0 %2466
        %v2468 = vrcp.pop 32.0
        %v2469 = vmul.f32 %v2464, %v2468
        %v2470 = vmul.f32 %v2467, %v2468
        %v2471 = vsub.f32 %v2458, %v2469
        %v2472 = vsub.f32 %v2459, %v2470
        %v2473 = vmul.f32 %v2471, %v2471
        %v2474 = vmul.f32 %v2472, %v2472
        %v2475 = vsel %vm902, %v2473, 0.0
        %2476 = vadd.xlane.f32.xlu0 %v2475
        %v2477 = vpop.xlane.xlu0 %2476
        %v2478 = vsel %vm902, %v2474, 0.0
        %2479 = vadd.xlane.f32.xlu0 %v2478
        %v2480 = vpop.xlane.xlu0 %2479
        %v2481 = vmul.f32 %v2477, %v2468
        %v2482 = vmul.f32 %v2480, %v2468
        %v2483 = vadd.f32 %v2481, 1e-12
        %v2484 = vadd.f32 %v2482, 1e-12
        %v2485 = vrsqrt.pop %v2483
        %v2486 = vrsqrt.pop %v2484
        %v2487 = vmul.f32 %v2471, %v2485
        %v2488 = vmul.f32 %v2472, %v2486
        %v2490 = vlaneseq
        %v2491 = vshrl.u32 %v2490, 7
        %v2492 = vsub.s32 0, %v2491
        %v2493 = vrot.slane %v2460, %v2492
        %v2495 = vmul.f32 %v2487, %v2493
        %v2496 = vmul.f32 %v2488, %v2493
        %v2498 = vlaneseq
        %v2499 = vshrl.u32 %v2498, 7
        %v2500 = vsub.s32 0, %v2499
        %v2501 = vrot.slane %v2461, %v2500
        %v2503 = vadd.f32 %v2495, %v2501
        %v2504 = vadd.f32 %v2496, %v2501
        %v2505 = vld [vmem:[%s810] sm:$0xff]
        %v2506 = vld [vmem:[%s810 + $0x8] sm:$0xff]
        %v2507 = vld [vmem:[%s810 + $0x10] sm:$0xff]
        %v2508 = vld [vmem:[%s810 + $0x18] sm:$0xff]
        %v2509 = vld [vmem:[%s813] sm:$0x1]
        %v2511 = vlaneseq
        %v2512 = vshrl.u32 %v2511, 7
        %v2513 = vsub.s32 0, %v2512
        %v2514 = vrot.slane %v2509, %v2513
        %v2517 = vsel %vm902, %v2503, 0
        %v2520 = vsel %vm902, %v2504, 0
        %2522 = vmatprep.subr.mxu0 0.0
        %2523 = vmatpush1.msra.mxu0 %v2505
        %2524 = vmatprep.subr.mxu0 0.0
        %2525 = vmatpush1.msra.mxu0 %v2506
        %2526 = vmatprep.subr.mxu0 0.0
        %2527 = vmatpush1.msra.mxu0 %v2507
        %2528 = vmatprep.subr.mxu0 0.0
        %2529 = vmatpush1.msra.mxu0 %v2508
        %2530 = vmatprep.subr.mxu0 0.0
        %2531 = vmatpush1.msra.mxu0 0.0
        %2532 = vmatprep.subr.mxu0 0.0
        %2533 = vmatpush1.msra.mxu0 0.0
        %2534 = vmatprep.subr.mxu0 0.0
        %2535 = vmatpush1.msra.mxu0 0.0
        %2536 = vmatprep.subr.mxu0 0.0
        %2537 = vmatpush1.msra.mxu0 0.0
        %2538 = vmatprep.subr.mxu0 0.0
        %2539 = vmatpush1.msra.mxu0 0.0
        %2540 = vmatprep.subr.mxu0 0.0
        %2541 = vmatpush1.msra.mxu0 0.0
        %2542 = vmatprep.subr.mxu0 0.0
        %2543 = vmatpush1.msra.mxu0 0.0
        %2544 = vmatprep.subr.mxu0 0.0
        %2545 = vmatpush1.msra.mxu0 0.0
        %2546 = vmatprep.subr.mxu0 0.0
        %2547 = vmatpush1.msra.mxu0 0.0
        %2548 = vmatprep.subr.mxu0 0.0
        %2549 = vmatpush1.msra.mxu0 0.0
        %2550 = vmatprep.subr.mxu0 0.0
        %2551 = vmatpush1.msra.mxu0 0.0
        %2552 = vmatprep.subr.mxu0 0.0
        %2553 = vmatpush1.msra.mxu0 0.0
        %2554 = vmatprep.subr.mxu0 0.0
        %2555 = vmatpush1.msra.mxu0 0.0
        %2556 = vmatprep.subr.mxu0 0.0
        %2557 = vmatpush1.msra.mxu0 0.0
        %2558 = vmatprep.subr.mxu0 0.0
        %2559 = vmatpush1.msra.mxu0 0.0
        %2560 = vmatprep.subr.mxu0 0.0
        %2561 = vmatpush1.msra.mxu0 0.0
        %2562 = vmatprep.subr.mxu0 0.0
        %2563 = vmatpush1.msra.mxu0 0.0
        %2564 = vmatprep.subr.mxu0 0.0
        %2565 = vmatpush1.msra.mxu0 0.0
        %2566 = vmatprep.subr.mxu0 0.0
        %2567 = vmatpush1.msra.mxu0 0.0
        %2568 = vmatprep.subr.mxu0 0.0
        %2569 = vmatpush1.msra.mxu0 0.0
        %2570 = vmatprep.subr.mxu0 0.0
        %2571 = vmatpush1.msra.mxu0 0.0
        %2572 = vmatprep.subr.mxu0 0.0
        %2573 = vmatpush1.msra.mxu0 0.0
        %2574 = vmatprep.subr.mxu0 0.0
        %2575 = vmatpush1.msra.mxu0 0.0
        %2576 = vmatprep.subr.mxu0 0.0
        %2577 = vmatpush1.msra.mxu0 0.0
        %2578 = vmatprep.subr.mxu0 0.0
        %2579 = vmatpush1.msra.mxu0 0.0
        %2580 = vmatprep.subr.mxu0 0.0
        %2581 = vmatpush1.msra.mxu0 0.0
        %2582 = vmatprep.subr.mxu0 0.0
        %2583 = vmatpush1.msra.mxu0 0.0
        %2584 = vmatprep.subr.mxu0 0.0
        %2585 = vmatpush1.msra.mxu0 0.0
        %2586 = vmatprep.mubr.f32.mxu0 0.0
        %2587 = vmatmul.mubr.f32.gmra.mrb[0].mxu0 %v2517
        %v2588 = vpop.f32.mrb[0].mxu0
        %v2589 = vadd.f32 %v2514, %v2588
        %v2590 = vpop.f32.mrb[0].mxu0
        %2591 = vmatprep.mubr.f32.mxu0 0.0
        %2592 = vmatmul.mubr.f32.gmra.mrb[0].mxu0 %v2520
        %v2593 = vpop.f32.mrb[0].mxu0
        %v2594 = vadd.f32 %v2514, %v2593
        %v2595 = vpop.f32.mrb[0].mxu0
        %2596 = vdwg.mxu0
        %v2597 = vmul.f32 %v2589, 0.5
        %v2598 = vmul.f32 %v2594, 0.5
        %v2599 = vmul.f32 %v2589, 0.70710677
        %v2600 = vmul.f32 %v2594, 0.70710677
        %v2601 = verf.f32.pop %v2599
        %v2602 = verf.f32.pop %v2600
        %v2603 = vadd.f32 %v2601, 1.0
        %v2604 = vadd.f32 %v2602, 1.0
        %v2605 = vmul.f32 %v2597, %v2603
        %v2606 = vmul.f32 %v2598, %v2604
        %v2607 = vld [vmem:[%s818] sm:$0xff]
        %v2608 = vld [vmem:[%s818 + $0x8] sm:$0xff]
        %v2609 = vld [vmem:[%s818 + $0x10] sm:$0xff]
        %v2610 = vld [vmem:[%s818 + $0x18] sm:$0xff]
        %v2611 = vld [vmem:[%s818 + $0x20] sm:$0xff]
        %v2612 = vld [vmem:[%s818 + $0x28] sm:$0xff]
        %v2613 = vld [vmem:[%s818 + $0x30] sm:$0xff]
        %v2614 = vld [vmem:[%s818 + $0x38] sm:$0xff]
        %v2615 = vld [vmem:[%s821] sm:$0x1]
        %v2617 = vlaneseq
        %v2618 = vshrl.u32 %v2617, 7
        %v2619 = vsub.s32 0, %v2618
        %v2620 = vrot.slane %v2615, %v2619
        %vm2622 = vcmask 523264
        %v2624 = vsel %vm2622, %v2605, 0
        %v2627 = vsel %vm2622, %v2606, 0
        %2629 = vmatprep.subr.mxu0 0.0
        %2630 = vmatpush1.msra.mxu0 %v2607
        %2631 = vmatprep.subr.mxu0 0.0
        %2632 = vmatpush1.msra.mxu0 %v2608
        %2633 = vmatprep.subr.mxu0 0.0
        %2634 = vmatpush1.msra.mxu0 %v2609
        %2635 = vmatprep.subr.mxu0 0.0
        %2636 = vmatpush1.msra.mxu0 %v2610
        %2637 = vmatprep.subr.mxu0 0.0
        %2638 = vmatpush1.msra.mxu0 %v2611
        %2639 = vmatprep.subr.mxu0 0.0
        %2640 = vmatpush1.msra.mxu0 %v2612
        %2641 = vmatprep.subr.mxu0 0.0
        %2642 = vmatpush1.msra.mxu0 %v2613
        %2643 = vmatprep.subr.mxu0 0.0
        %2644 = vmatpush1.msra.mxu0 %v2614
        %2645 = vmatprep.subr.mxu0 0.0
        %2646 = vmatpush1.msra.mxu0 0.0
        %2647 = vmatprep.subr.mxu0 0.0
        %2648 = vmatpush1.msra.mxu0 0.0
        %2649 = vmatprep.subr.mxu0 0.0
        %2650 = vmatpush1.msra.mxu0 0.0
        %2651 = vmatprep.subr.mxu0 0.0
        %2652 = vmatpush1.msra.mxu0 0.0
        %2653 = vmatprep.subr.mxu0 0.0
        %2654 = vmatpush1.msra.mxu0 0.0
        %2655 = vmatprep.subr.mxu0 0.0
        %2656 = vmatpush1.msra.mxu0 0.0
        %2657 = vmatprep.subr.mxu0 0.0
        %2658 = vmatpush1.msra.mxu0 0.0
        %2659 = vmatprep.subr.mxu0 0.0
        %2660 = vmatpush1.msra.mxu0 0.0
        %2661 = vmatprep.subr.mxu0 0.0
        %2662 = vmatpush1.msra.mxu0 0.0
        %2663 = vmatprep.subr.mxu0 0.0
        %2664 = vmatpush1.msra.mxu0 0.0
        %2665 = vmatprep.subr.mxu0 0.0
        %2666 = vmatpush1.msra.mxu0 0.0
        %2667 = vmatprep.subr.mxu0 0.0
        %2668 = vmatpush1.msra.mxu0 0.0
        %2669 = vmatprep.subr.mxu0 0.0
        %2670 = vmatpush1.msra.mxu0 0.0
        %2671 = vmatprep.subr.mxu0 0.0
        %2672 = vmatpush1.msra.mxu0 0.0
        %2673 = vmatprep.subr.mxu0 0.0
        %2674 = vmatpush1.msra.mxu0 0.0
        %2675 = vmatprep.subr.mxu0 0.0
        %2676 = vmatpush1.msra.mxu0 0.0
        %2677 = vmatprep.subr.mxu0 0.0
        %2678 = vmatpush1.msra.mxu0 0.0
        %2679 = vmatprep.subr.mxu0 0.0
        %2680 = vmatpush1.msra.mxu0 0.0
        %2681 = vmatprep.subr.mxu0 0.0
        %2682 = vmatpush1.msra.mxu0 0.0
        %2683 = vmatprep.subr.mxu0 0.0
        %2684 = vmatpush1.msra.mxu0 0.0
        %2685 = vmatprep.subr.mxu0 0.0
        %2686 = vmatpush1.msra.mxu0 0.0
        %2687 = vmatprep.subr.mxu0 0.0
        %2688 = vmatpush1.msra.mxu0 0.0
        %2689 = vmatprep.subr.mxu0 0.0
        %2690 = vmatpush1.msra.mxu0 0.0
        %2691 = vmatprep.subr.mxu0 0.0
        %2692 = vmatpush1.msra.mxu0 0.0
        %2693 = vmatprep.mubr.f32.mxu0 0.0
        %2694 = vmatmul.mubr.f32.gmra.mrb[0].mxu0 %v2624
        %v2695 = vpop.f32.mrb[0].mxu0
        %v2696 = vadd.f32 %v2620, %v2695
        %v2697 = vpop.f32.mrb[0].mxu0
        %2698 = vmatprep.mubr.f32.mxu0 0.0
        %2699 = vmatmul.mubr.f32.gmra.mrb[0].mxu0 %v2627
        %v2700 = vpop.f32.mrb[0].mxu0
        %v2701 = vadd.f32 %v2620, %v2700
        %v2702 = vpop.f32.mrb[0].mxu0
        %2703 = vdwg.mxu0
        %v2704 = vadd.f32 %v2696, %v2503
        %v2705 = vadd.f32 %v2701, %v2504
        %v2706 = vld [vmem:[%s824] sm:$0x1]
        %v2707 = vld [vmem:[%s827] sm:$0x1]
        %v2708 = vsel %vm902, %v2704, 0.0
        %2709 = vadd.xlane.f32.xlu0 %v2708
        %v2710 = vpop.xlane.xlu0 %2709
        %v2711 = vsel %vm902, %v2705, 0.0
        %2712 = vadd.xlane.f32.xlu0 %v2711
        %v2713 = vpop.xlane.xlu0 %2712
        %v2714 = vmul.f32 %v2710, %v2468
        %v2715 = vmul.f32 %v2713, %v2468
        %v2716 = vsub.f32 %v2704, %v2714
        %v2717 = vsub.f32 %v2705, %v2715
        %v2718 = vmul.f32 %v2716, %v2716
        %v2719 = vmul.f32 %v2717, %v2717
        %v2720 = vsel %vm902, %v2718, 0.0
        %2721 = vadd.xlane.f32.xlu0 %v2720
        %v2722 = vpop.xlane.xlu0 %2721
        %v2723 = vsel %vm902, %v2719, 0.0
        %2724 = vadd.xlane.f32.xlu0 %v2723
        %v2725 = vpop.xlane.xlu0 %2724
        %v2726 = vmul.f32 %v2722, %v2468
        %v2727 = vmul.f32 %v2725, %v2468
        %v2728 = vadd.f32 %v2726, 1e-12
        %v2729 = vadd.f32 %v2727, 1e-12
        %v2730 = vrsqrt.pop %v2728
        %v2731 = vrsqrt.pop %v2729
        %v2732 = vmul.f32 %v2716, %v2730
        %v2733 = vmul.f32 %v2717, %v2731
        %v2735 = vlaneseq
        %v2736 = vshrl.u32 %v2735, 7
        %v2737 = vsub.s32 0, %v2736
        %v2738 = vrot.slane %v2706, %v2737
        %v2740 = vmul.f32 %v2732, %v2738
        %v2741 = vmul.f32 %v2733, %v2738
        %v2743 = vlaneseq
        %v2744 = vshrl.u32 %v2743, 7
        %v2745 = vsub.s32 0, %v2744
        %v2746 = vrot.slane %v2707, %v2745
        %v2748 = vadd.f32 %v2740, %v2746
        %v2749 = vadd.f32 %v2741, %v2746
        %2750 = vst.msk [vmem:[#allocation2] sm:$0xff] %vm902, %v2748
        %2751 = vst.msk [vmem:[#allocation2 + $0x8] sm:$0xff] %vm902, %v2749
        %2752 = vst.msk [vmem:[%s832] sm:$0xff] %vm902, %v2748
        %2753 = vst.msk [vmem:[%s832 + $0x8] sm:$0xff] %vm902, %v2749
        %p2754 = scmp.eq.s32.totalorder %s42, 1
        // Predicated region
        $region101: #{student_forward.1} parent=95 // pred_check
          %p2755 = pneg %p2754
        $region102: #{student_forward.1} parent=95 // pred_check_branch
          %2757 = sbr.rel (%p2755) target = $region104
        $region103: #{student_forward.1} parent=95 // pred_region
          %v2758 = vlaneseq
          %v2759 = vand.u32 %v2758, 127
          %s2760 = sld [smem:[#allocation4]]
          %v2761 = vstv %s2760
          %vm2762 = vcmp.eq.s32.totalorder %v2759, %v2761
          %v2763 = vsel %vm2762, 1, 0
          %v2764 = vcvt.s32.f32 %v2763
          %s2765 = sld [smem:[#allocation4 + $0x1]]
          %s2766 = sadd.s32 %s2765, 8
          %v2767 = vstv %s2766
          %vm2768 = vcmp.eq.s32.totalorder %v2759, %v2767
          %v2769 = vsel %vm2768, 1, 0
          %v2770 = vcvt.s32.f32 %v2769
          %vm2771 = vcmask 1040384
          %v2772 = vsel %vm2771, %v2764, %v2770
          %v2774 = vsel %vm1672, %v2772, 0
          %2776 = vmatprep.subr.mxu0 0.0
          %2777 = vmatpush1.msra.mxu0 %v2748
          %2778 = vmatprep.subr.mxu0 0.0
          %2779 = vmatpush1.msra.mxu0 %v2749
          %2780 = vmatprep.subr.mxu0 0.0
          %2781 = vmatpush1.msra.mxu0 0.0
          %2782 = vmatprep.subr.mxu0 0.0
          %2783 = vmatpush1.msra.mxu0 0.0
          %2784 = vmatprep.subr.mxu0 0.0
          %2785 = vmatpush1.msra.mxu0 0.0
          %2786 = vmatprep.subr.mxu0 0.0
          %2787 = vmatpush1.msra.mxu0 0.0
          %2788 = vmatprep.subr.mxu0 0.0
          %2789 = vmatpush1.msra.mxu0 0.0
          %2790 = vmatprep.subr.mxu0 0.0
          %2791 = vmatpush1.msra.mxu0 0.0
          %2792 = vmatprep.subr.mxu0 0.0
          %2793 = vmatpush1.msra.mxu0 0.0
          %2794 = vmatprep.subr.mxu0 0.0
          %2795 = vmatpush1.msra.mxu0 0.0
          %2796 = vmatprep.subr.mxu0 0.0
          %2797 = vmatpush1.msra.mxu0 0.0
          %2798 = vmatprep.subr.mxu0 0.0
          %2799 = vmatpush1.msra.mxu0 0.0
          %2800 = vmatprep.subr.mxu0 0.0
          %2801 = vmatpush1.msra.mxu0 0.0
          %2802 = vmatprep.subr.mxu0 0.0
          %2803 = vmatpush1.msra.mxu0 0.0
          %2804 = vmatprep.subr.mxu0 0.0
          %2805 = vmatpush1.msra.mxu0 0.0
          %2806 = vmatprep.subr.mxu0 0.0
          %2807 = vmatpush1.msra.mxu0 0.0
          %2808 = vmatprep.subr.mxu0 0.0
          %2809 = vmatpush1.msra.mxu0 0.0
          %2810 = vmatprep.subr.mxu0 0.0
          %2811 = vmatpush1.msra.mxu0 0.0
          %2812 = vmatprep.subr.mxu0 0.0
          %2813 = vmatpush1.msra.mxu0 0.0
          %2814 = vmatprep.subr.mxu0 0.0
          %2815 = vmatpush1.msra.mxu0 0.0
          %2816 = vmatprep.subr.mxu0 0.0
          %2817 = vmatpush1.msra.mxu0 0.0
          %2818 = vmatprep.subr.mxu0 0.0
          %2819 = vmatpush1.msra.mxu0 0.0
          %2820 = vmatprep.subr.mxu0 0.0
          %2821 = vmatpush1.msra.mxu0 0.0
          %2822 = vmatprep.subr.mxu0 0.0
          %2823 = vmatpush1.msra.mxu0 0.0
          %2824 = vmatprep.subr.mxu0 0.0
          %2825 = vmatpush1.msra.mxu0 0.0
          %2826 = vmatprep.subr.mxu0 0.0
          %2827 = vmatpush1.msra.mxu0 0.0
          %2828 = vmatprep.subr.mxu0 0.0
          %2829 = vmatpush1.msra.mxu0 0.0
          %2830 = vmatprep.subr.mxu0 0.0
          %2831 = vmatpush1.msra.mxu0 0.0
          %2832 = vmatprep.subr.mxu0 0.0
          %2833 = vmatpush1.msra.mxu0 0.0
          %2834 = vmatprep.subr.mxu0 0.0
          %2835 = vmatpush1.msra.mxu0 0.0
          %2836 = vmatprep.subr.mxu0 0.0
          %2837 = vmatpush1.msra.mxu0 0.0
          %2838 = vmatprep.subr.mxu0 0.0
          %2839 = vmatpush1.msra.mxu0 0.0
          %2840 = vmatprep.mubr.f32.mxu0 0.0
          %2841 = vmatmul.mubr.f32.gmra.mrb[0].mxu0 %v2774
          %v2842 = vpop.f32.mrb[0].mxu0
          %v2843 = vadd.f32 0.0, %v2842
          %v2844 = vpop.f32.mrb[0].mxu0
          %2845 = vdwg.mxu0
          %v2846 = vld [vmem:[%s17] sm:$0x1]
          %v2847 = vld [vmem:[%s18] sm:$0x1]
          %vm2848 = vcmask 254976
          %v2849 = vsel %vm2848, %v2843, 0.0
          %2850 = vadd.xlane.f32.xlu0 %v2849
          %v2851 = vpop.xlane.xlu0 %2850
          %v2852 = vmul.f32 %v2851, %v2468
          %v2853 = vsub.f32 %v2843, %v2852
          %v2854 = vmul.f32 %v2853, %v2853
          %v2855 = vsel %vm2848, %v2854, 0.0
          %2856 = vadd.xlane.f32.xlu0 %v2855
          %v2857 = vpop.xlane.xlu0 %2856
          %v2858 = vmul.f32 %v2857, %v2468
          %v2859 = vadd.f32 %v2858, 1e-12
          %v2860 = vrsqrt.pop %v2859
          %v2861 = vmul.f32 %v2853, %v2860
          %v2863 = vlaneseq
          %v2864 = vshrl.u32 %v2863, 7
          %v2865 = vsub.s32 0, %v2864
          %v2866 = vrot.slane %v2846, %v2865
          %v2868 = vmul.f32 %v2861, %v2866
          %v2870 = vlaneseq
          %v2871 = vshrl.u32 %v2870, 7
          %v2872 = vsub.s32 0, %v2871
          %v2873 = vrot.slane %v2847, %v2872
          %v2875 = vadd.f32 %v2868, %v2873
          %v2876 = vld [vmem:[%s19] sm:$0xff]
          %v2877 = vld [vmem:[%s19 + $0x8] sm:$0xff]
          %v2878 = vld [vmem:[%s19 + $0x10] sm:$0xff]
          %v2879 = vld [vmem:[%s19 + $0x18] sm:$0xff]
          %v2880 = vld [vmem:[%s19 + $0x20] sm:$0xff]
          %v2881 = vld [vmem:[%s19 + $0x28] sm:$0xff]
          %v2882 = vld [vmem:[%s19 + $0x30] sm:$0xff]
          %v2883 = vld [vmem:[%s19 + $0x38] sm:$0xff]
          %v2884 = vld [vmem:[%s19 + $0x40] sm:$0xff]
          %v2885 = vld [vmem:[%s19 + $0x48] sm:$0xff]
          %v2886 = vld [vmem:[%s19 + $0x50] sm:$0xff]
          %v2887 = vld [vmem:[%s19 + $0x58] sm:$0xff]
          %v2888 = vld [vmem:[%s19 + $0x60] sm:$0xff]
          %v2889 = vld [vmem:[%s19 + $0x68] sm:$0xff]
          %v2890 = vld [vmem:[%s19 + $0x70] sm:$0xff]
          %v2891 = vld [vmem:[%s19 + $0x78] sm:$0xff]
          %v2893 = vsel %vm902, %v2875, 0
          %2895 = vmatprep.subr.mxu0 %v2877
          %2896 = vmatpush1.msra.mxu0 %v2876
          %2897 = vmatprep.subr.mxu0 %v2881
          %2898 = vmatpush1.msra.mxu0 %v2880
          %2899 = vmatprep.subr.mxu0 %v2885
          %2900 = vmatpush1.msra.mxu0 %v2884
          %2901 = vmatprep.subr.mxu0 %v2889
          %2902 = vmatpush1.msra.mxu0 %v2888
          %2903 = vmatprep.subr.mxu0 0.0
          %2904 = vmatpush1.msra.mxu0 0.0
          %2905 = vmatprep.subr.mxu0 0.0
          %2906 = vmatpush1.msra.mxu0 0.0
          %2907 = vmatprep.subr.mxu0 0.0
          %2908 = vmatpush1.msra.mxu0 0.0
          %2909 = vmatprep.subr.mxu0 0.0
          %2910 = vmatpush1.msra.mxu0 0.0
          %2911 = vmatprep.subr.mxu0 0.0
          %2912 = vmatpush1.msra.mxu0 0.0
          %2913 = vmatprep.subr.mxu0 0.0
          %2914 = vmatpush1.msra.mxu0 0.0
          %2915 = vmatprep.subr.mxu0 0.0
          %2916 = vmatpush1.msra.mxu0 0.0
          %2917 = vmatprep.subr.mxu0 0.0
          %2918 = vmatpush1.msra.mxu0 0.0
          %2919 = vmatprep.subr.mxu0 0.0
          %2920 = vmatpush1.msra.mxu0 0.0
          %2921 = vmatprep.subr.mxu0 0.0
          %2922 = vmatpush1.msra.mxu0 0.0
          %2923 = vmatprep.subr.mxu0 0.0
          %2924 = vmatpush1.msra.mxu0 0.0
          %2925 = vmatprep.subr.mxu0 0.0
          %2926 = vmatpush1.msra.mxu0 0.0
          %2927 = vmatprep.subr.mxu0 0.0
          %2928 = vmatpush1.msra.mxu0 0.0
          %2929 = vmatprep.subr.mxu0 0.0
          %2930 = vmatpush1.msra.mxu0 0.0
          %2931 = vmatprep.subr.mxu0 0.0
          %2932 = vmatpush1.msra.mxu0 0.0
          %2933 = vmatprep.subr.mxu0 0.0
          %2934 = vmatpush1.msra.mxu0 0.0
          %2935 = vmatprep.subr.mxu0 0.0
          %2936 = vmatpush1.msra.mxu0 0.0
          %2937 = vmatprep.subr.mxu0 0.0
          %2938 = vmatpush1.msra.mxu0 0.0
          %2939 = vmatprep.subr.mxu0 0.0
          %2940 = vmatpush1.msra.mxu0 0.0
          %2941 = vmatprep.subr.mxu0 0.0
          %2942 = vmatpush1.msra.mxu0 0.0
          %2943 = vmatprep.subr.mxu0 0.0
          %2944 = vmatpush1.msra.mxu0 0.0
          %2945 = vmatprep.subr.mxu0 0.0
          %2946 = vmatpush1.msra.mxu0 0.0
          %2947 = vmatprep.subr.mxu0 0.0
          %2948 = vmatpush1.msra.mxu0 0.0
          %2949 = vmatprep.subr.mxu0 0.0
          %2950 = vmatpush1.msra.mxu0 0.0
          %2951 = vmatprep.subr.mxu0 0.0
          %2952 = vmatpush1.msra.mxu0 0.0
          %2953 = vmatprep.subr.mxu0 0.0
          %2954 = vmatpush1.msra.mxu0 0.0
          %2955 = vmatprep.subr.mxu0 0.0
          %2956 = vmatpush1.msra.mxu0 0.0
          %2957 = vmatprep.subr.mxu0 0.0
          %2958 = vmatpush1.msra.mxu0 0.0
          %2959 = vmatprep.mubr.f32.mxu0 0.0
          %2960 = vmatmul.mubr.f32.gmra.mrb[0].mxu0 %v2893
          %v2961 = vpop.f32.mrb[0].mxu0
          %v2962 = vadd.f32 0.0, %v2961
          %v2963 = vpop.f32.mrb[0].mxu0
          %v2964 = vadd.f32 0.0, %v2963
          %2965 = vdwg.mxu0
          %2966 = vmatprep.subr.mxu0 %v2879
          %2967 = vmatpush1.msra.mxu0 %v2878
          %2968 = vmatprep.subr.mxu0 %v2883
          %2969 = vmatpush1.msra.mxu0 %v2882
          %2970 = vmatprep.subr.mxu0 %v2887
          %2971 = vmatpush1.msra.mxu0 %v2886
          %2972 = vmatprep.subr.mxu0 %v2891
          %2973 = vmatpush1.msra.mxu0 %v2890
          %2974 = vmatprep.subr.mxu0 0.0
          %2975 = vmatpush1.msra.mxu0 0.0
          %2976 = vmatprep.subr.mxu0 0.0
          %2977 = vmatpush1.msra.mxu0 0.0
          %2978 = vmatprep.subr.mxu0 0.0
          %2979 = vmatpush1.msra.mxu0 0.0
          %2980 = vmatprep.subr.mxu0 0.0
          %2981 = vmatpush1.msra.mxu0 0.0
          %2982 = vmatprep.subr.mxu0 0.0
          %2983 = vmatpush1.msra.mxu0 0.0
          %2984 = vmatprep.subr.mxu0 0.0
          %2985 = vmatpush1.msra.mxu0 0.0
          %2986 = vmatprep.subr.mxu0 0.0
          %2987 = vmatpush1.msra.mxu0 0.0
          %2988 = vmatprep.subr.mxu0 0.0
          %2989 = vmatpush1.msra.mxu0 0.0
          %2990 = vmatprep.subr.mxu0 0.0
          %2991 = vmatpush1.msra.mxu0 0.0
          %2992 = vmatprep.subr.mxu0 0.0
          %2993 = vmatpush1.msra.mxu0 0.0
          %2994 = vmatprep.subr.mxu0 0.0
          %2995 = vmatpush1.msra.mxu0 0.0
          %2996 = vmatprep.subr.mxu0 0.0
          %2997 = vmatpush1.msra.mxu0 0.0
          %2998 = vmatprep.subr.mxu0 0.0
          %2999 = vmatpush1.msra.mxu0 0.0
          %3000 = vmatprep.subr.mxu0 0.0
          %3001 = vmatpush1.msra.mxu0 0.0
          %3002 = vmatprep.subr.mxu0 0.0
          %3003 = vmatpush1.msra.mxu0 0.0
          %3004 = vmatprep.subr.mxu0 0.0
          %3005 = vmatpush1.msra.mxu0 0.0
          %3006 = vmatprep.subr.mxu0 0.0
          %3007 = vmatpush1.msra.mxu0 0.0
          %3008 = vmatprep.subr.mxu0 0.0
          %3009 = vmatpush1.msra.mxu0 0.0
          %3010 = vmatprep.subr.mxu0 0.0
          %3011 = vmatpush1.msra.mxu0 0.0
          %3012 = vmatprep.subr.mxu0 0.0
          %3013 = vmatpush1.msra.mxu0 0.0
          %3014 = vmatprep.subr.mxu0 0.0
          %3015 = vmatpush1.msra.mxu0 0.0
          %3016 = vmatprep.subr.mxu0 0.0
          %3017 = vmatpush1.msra.mxu0 0.0
          %3018 = vmatprep.subr.mxu0 0.0
          %3019 = vmatpush1.msra.mxu0 0.0
          %3020 = vmatprep.subr.mxu0 0.0
          %3021 = vmatpush1.msra.mxu0 0.0
          %3022 = vmatprep.subr.mxu0 0.0
          %3023 = vmatpush1.msra.mxu0 0.0
          %3024 = vmatprep.subr.mxu0 0.0
          %3025 = vmatpush1.msra.mxu0 0.0
          %3026 = vmatprep.subr.mxu0 0.0
          %3027 = vmatpush1.msra.mxu0 0.0
          %3028 = vmatprep.subr.mxu0 0.0
          %3029 = vmatpush1.msra.mxu0 0.0
          %3030 = vmatprep.mubr.f32.mxu0 0.0
          %3031 = vmatmul.mubr.f32.gmra.mrb[0].mxu0 %v2893
          %v3032 = vpop.f32.mrb[0].mxu0
          %v3033 = vadd.f32 0.0, %v3032
          %v3034 = vpop.f32.mrb[0].mxu0
          %v3035 = vadd.f32 0.0, %v3034
          %3036 = vdwg.mxu0
          %v3041 = vcombine.low %v2962, %v2964
          %v3042 = vcombine.low %v3033, %v3035
          %v3044 = vunpack.c.l.s4 1983009808
          %v3045 = vunpack.c.0.s8 %v3044
          %v3046 = vlaneseq
          %v3047 = vshrl.u32 %v3046, 7
          %v3048 = vsub.s32 %v3045, %v3047
          %v3049 = vrot.slane %v3041, %v3048
          %v3051 = vunpack.c.l.s4 1983009808
          %v3052 = vunpack.c.0.s8 %v3051
          %v3053 = vlaneseq
          %v3054 = vshrl.u32 %v3053, 7
          %v3055 = vsub.s32 %v3052, %v3054
          %v3056 = vrot.slane %v3042, %v3055
          %v3057 = vcombine.low %v3049, %v3056
          %3059 = vst [vmem:[#allocation7] sm:$0xff] %v3057
        $region104: #{student_forward.1} parent=95 // pred_fallthru
          _
        %p3060 = scmp.lt.s32.totalorder %s42, 1
        %s3061 = scalar_select %p3060, %s42, 1
        %s3062 = smul.addr %s3061, 2
        %s3063 = smul.addr %s3062, 8
        %s3064 = scalar_lea.vmem %s21, %s3063
        // Predicated region
        $region105: #{student_forward.1} parent=95 // pred_check
          %p3065 = pneg %p514
        $region106: #{student_forward.1} parent=95 // pred_check_branch
          %3067 = sbr.rel (%p3065) target = $region108
        $region107: #{student_forward.1} parent=95 // pred_region
          %s3069 = ssub.s32 256, 256
          %3070 = vsyncadd [#allocation6], %s3069
          %s3071 = sshll.u32 [#allocation5], 4
          %s3072 = int_to_ptr.vmem [resolvable:$true] %s3071
          %3077 = dma.vmem_to_hbm [thread:$0]  %s3072, 256, %s20, [#allocation6], 128, 128, 8
        $region108: #{student_forward.1} parent=95 // pred_fallthru
          _
        // Predicated region
        $region109: #{student_forward.1} parent=95 // pred_check
          %p3078 = pneg %p540
        $region110: #{student_forward.1} parent=95 // pred_check_branch
          %3080 = sbr.rel (%p3078) target = $region112
        $region111: #{student_forward.1} parent=95 // pred_region
          _
        $region112: #{student_forward.1} parent=95 // pred_fallthru
          _
        // Predicated region
        $region113: #{student_forward.1} parent=95 // pred_check
          %p3081 = pneg %p561
        $region114: #{student_forward.1} parent=95 // pred_check_branch
          %3083 = sbr.rel (%p3081) target = $region116
        $region115: #{student_forward.1} parent=95 // pred_region
          %s3085 = ssub.s32 128, 128
          %3086 = vsyncadd [#allocation8], %s3085
          %s3088 = sshll.u32 [#allocation7], 4
          %s3089 = int_to_ptr.vmem [resolvable:$true] %s3088
          %3091 = dma.vmem_to_hbm [thread:$0]  %s3089, 128, %s22, [#allocation8]
        $region116: #{student_forward.1} parent=95 // pred_fallthru
          _
        // Predicated region
        $region117: #{student_forward.1} parent=95 // pred_check
          %p3092 = pneg %p514
        $region118: #{student_forward.1} parent=95 // pred_check_branch
          %3094 = sbr.rel (%p3092) target = $region120
        $region119: #{student_forward.1} parent=95 // pred_region
          %3095 = dma.done [#allocation6], 256
        $region120: #{student_forward.1} parent=95 // pred_fallthru
          _
        // Predicated region
        $region121: #{student_forward.1} parent=95 // pred_check
          %p3096 = pneg %p561
        $region122: #{student_forward.1} parent=95 // pred_check_branch
          %3098 = sbr.rel (%p3096) target = $region124
        $region123: #{student_forward.1} parent=95 // pred_region
          %3099 = dma.done [#allocation8], 128
        $region124: #{student_forward.1} parent=95 // pred_fallthru
          _
      $region96: #{student_forward.1} parent=5 // pred_fallthru
        _
      %p3100 = scmp.le.s32.totalorder 2, %s37
      // Predicated region
      $region125: #{student_forward.1} parent=5 // pred_check
        %p3101 = pneg %p3100
      $region126: #{student_forward.1} parent=5 // pred_check_branch
        %3103 = sbr.rel (%p3101) target = $region128
      $region127: #{student_forward.1} parent=5 // pred_region
        %s3104 = ssub.s32 %s37, 2
        // Predicated region
        $region129: #{student_forward.1} parent=127 // pred_check
          %p3105 = pneg %p546
        $region130: #{student_forward.1} parent=127 // pred_check_branch
          %3107 = sbr.rel (%p3105) target = $region132
        $region131: #{student_forward.1} parent=127 // pred_region
          %p3108 = scmp.lt.s32.totalorder %s43, 1
          %s3109 = scalar_select %p3108, %s43, 1
          %s3110 = smul.addr %s3109, 2
          %s3111 = smul.addr %s3110, 8
          %s3112 = scalar_lea.vmem %s21, %s3111
        $region132: #{student_forward.1} parent=127 // pred_fallthru
          _
      $region128: #{student_forward.1} parent=5 // pred_fallthru
        _
    $region6: #{student_forward.1} parent=1 // loop_footer
      %s41 = sadd.s32 1, %s37
    $region7: #{student_forward.1} parent=1 // loop_footer_branch
      %36 = sbr.rel target = $region3
    $region8: #{student_forward.1} parent=1 // loop_exit
      _
    %3113 = vsyncpa [#allocation6], 1
    %s3114 = scalar_lea.sflag [#allocation6], 1
    %3115 = vsyncpa %s3114, 1
    %3116 = vsyncpa [#allocation8], 1

</llo_original>
